<compile_context>
chip_gen: v6e
topology: v6e:2x2x1
jax: 0.10.0
libtpu: 0.0.40
codegen_flags: <defaults>
</compile_context>

<pallas_src>
import functools

import jax
import jax.numpy as jnp
from jax import lax
from jax.experimental import pallas as pl
from jax.experimental.pallas import tpu as pltpu

_SQRT_HALF = 0.7071067811865476  # 1/sqrt(2) for the exact (erf) GELU


def _pick_token_chunk(hw: int, max_chunk: int = 2048) -> int:
    """Largest divisor of hw <= max_chunk, preferring multiples of 128."""
    if hw <= max_chunk:
        return hw
    best, best128 = 1, 0
    for d in range(1, max_chunk + 1):
        if hw % d == 0:
            best = d
            if d % 128 == 0:
                best128 = d
    return best128 if best128 else best


def _convnext_block_kernel(x_ref, dw_w_ref, dw_b_ref, nw_ref, nb_ref,
                           w1_ref, b1_ref, w2_ref, b2_ref, g_ref,
                           o_ref, *, H, W, TM):
    # x_ref / o_ref : (1, C, H*W)   one image, NCHW flattened (lane-dense)
    # dw_w_ref      : (C, 49)       depthwise weights, tap index = kh*7 + kw
    # w1_ref        : (4C, C)       pwconv1.weight (PyTorch layout), f32
    # w2_ref        : (C, 4C)       pwconv2.weight (PyTorch layout), f32
    # remaining params are (C, 1) / (4C, 1) column vectors.
    C = x_ref.shape[1]
    HW = H * W
    C4 = w1_ref.shape[0]

    # ---- depthwise 7x7 conv (padding=3, groups=C), channels-first ----------
    # acc[c, h*W + w] = sum_{kh,kw} k[c, kh, kw] * x[c, h+kh-3, w+kw-3]
    # Vertical out-of-range taps read the zero pad of `xz`; horizontal
    # out-of-range taps are killed by the per-kw row-edge mask.
    PAD = ((3 * W + 3 + 127) // 128) * 128          # >= max |shift| = 3*W + 3
    x_cf = x_ref[0].astype(jnp.float32)             # (C, HW) lane-dense
    zpad = jnp.zeros((C, PAD), jnp.float32)
    xz = jnp.concatenate([zpad, x_cf, zpad], axis=1)   # (C, HW + 2*PAD)

    w_idx = lax.broadcasted_iota(jnp.int32, (1, HW), 1) % W
    mask_w = [((w_idx + (kw - 3) >= 0) & (w_idx + (kw - 3) < W))
              .astype(jnp.float32) for kw in range(7)]   # 7 row-edge masks

    dw_w = dw_w_ref[...]                             # (C, 49)
    acc = jnp.zeros((C, HW), jnp.float32)
    for kh in range(7):
        dh = kh - 3
        for kw in range(7):
            d = dh * W + (kw - 3)
            src = xz[:, PAD + d:PAD + d + HW]        # static lane shift
            tap = kh * 7 + kw
            acc = acc + (src * mask_w[kw]) * dw_w[:, tap:tap + 1]
    y = acc + dw_b_ref[...]                          # (C, HW) dwconv output

    # ---- LayerNorm -> pwconv1 -> GELU -> pwconv2 -> gamma -> residual ------
    nw = nw_ref[...]                                 # (C, 1)
    nb = nb_ref[...]
    g = g_ref[...]
    w1 = w1_ref[...]                                 # (4C, C)
    w2 = w2_ref[...]                                 # (C, 4C)
    use_mxu = C >= 64   # at tiny C the MXU would run at <1% utilization
    # Hoisted lane-broadcasts (JAX does not CSE broadcast_in_dim per chunk).
    b1_b = jnp.broadcast_to(b1_ref[...], (C4, TM))
    b2_b = jnp.broadcast_to(b2_ref[...], (C, TM))

    # Static token-chunk loop; TM divides HW and the trip count stays small by
    # construction of _pick_token_chunk (it is 1 at the demo shape).
    for ci in range(HW // TM):
        s0 = ci * TM
        t = y[:, s0:s0 + TM]                         # (C, TM)
        # LayerNorm over channels (eps=1e-6, biased variance) - matches torch.
        mean = jnp.mean(t, axis=0, keepdims=True)
        var = jnp.mean(jnp.square(t - mean), axis=0, keepdims=True)
        xn = (t - mean) * lax.rsqrt(var + 1e-6) * nw + nb

        # pwconv1: (4C, C) x (C, TM) -> (4C, TM)
        if use_mxu:
            h = lax.dot_general(w1, xn, (((1,), (0,)), ((), ())),
                                preferred_element_type=jnp.float32) + b1_ref[...]
        else:                                        # C broadcast-FMAs on VPU
            h = b1_b
            for c in range(C):
                h = h + w1[:, c:c + 1] * xn[c:c + 1, :]
        # Exact erf GELU (parity with torch.nn.GELU()).  The tanh-approx GELU
        # would move this to the otherwise-idle EUP slot if parity is relaxed.
        h = 0.5 * h * (1.0 + lax.erf(h * _SQRT_HALF))

        # pwconv2: (C, 4C) x (4C, TM) -> (C, TM)
        if use_mxu:
            z = lax.dot_general(w2, h, (((1,), (0,)), ((), ())),
                                preferred_element_type=jnp.float32) + b2_ref[...]
        else:                                        # 4C broadcast-FMAs on VPU
            z = b2_b
            for j in range(C4):
                z = z + w2[:, j:j + 1] * h[j:j + 1, :]

        # Layer scale + residual; residual re-read per chunk so no whole-image
        # value stays live across the kernel.  Lane-dense (C, TM) store.
        res = x_ref[0, :, s0:s0 + TM].astype(jnp.float32)
        o_ref[0, :, s0:s0 + TM] = (res + g * z).astype(o_ref.dtype)


def _convnext_block_pallas(x_flat, dw_w_cf, dw_b, norm_w, norm_b,
                           w1, b1, w2, b2, gamma, *, H, W):
    N, C, HW = x_flat.shape
    C4 = w1.shape[0]
    TM = _pick_token_chunk(HW)
    kernel = functools.partial(_convnext_block_kernel, H=H, W=W, TM=TM)
    return pl.pallas_call(
        kernel,
        out_shape=jax.ShapeDtypeStruct((N, C, HW), x_flat.dtype),
        grid_spec=pltpu.PrefetchScalarGridSpec(
            num_scalar_prefetch=0,
            grid=(N,),                                        # one image/step
            in_specs=[
                pl.BlockSpec((1, C, HW), lambda n: (n, 0, 0)),  # x (flat NCHW)
                pl.BlockSpec((C, 49), lambda n: (0, 0)),        # dwconv weight
                pl.BlockSpec((C, 1), lambda n: (0, 0)),         # dwconv bias
                pl.BlockSpec((C, 1), lambda n: (0, 0)),         # norm weight
                pl.BlockSpec((C, 1), lambda n: (0, 0)),         # norm bias
                pl.BlockSpec((C4, C), lambda n: (0, 0)),        # pwconv1 w
                pl.BlockSpec((C4, 1), lambda n: (0, 0)),        # pwconv1 b
                pl.BlockSpec((C, C4), lambda n: (0, 0)),        # pwconv2 w
                pl.BlockSpec((C, 1), lambda n: (0, 0)),         # pwconv2 b
                pl.BlockSpec((C, 1), lambda n: (0, 0)),         # gamma
            ],
            out_specs=pl.BlockSpec((1, C, HW), lambda n: (n, 0, 0)),
        ),
        compiler_params=pltpu.CompilerParams(
            # Per-image iterations are independent -> megacore-shardable on
            # v7x; harmless on single-core v5e/v6e.
            dimension_semantics=("parallel",),
            # Tiny footprint now (no padded scratch); 48 MiB leaves headroom
            # under v7x's 64 MiB physical VMEM and is fine on v5e/v6e.
            vmem_limit_bytes=48 * 1024 * 1024,
        ),
    )(x_flat, dw_w_cf, dw_b.reshape(C, 1), norm_w.reshape(C, 1),
      norm_b.reshape(C, 1), w1, b1.reshape(C4, 1), w2, b2.reshape(C, 1),
      gamma.reshape(C, 1))


@jax.jit
def convnext_block(x_nchw, params):
    """ConvNeXtBlock.forward for NCHW input (drop_path=0.0 -> identity)."""
    N, C, H, W = x_nchw.shape
    x_flat = x_nchw.reshape(N, C, H * W)             # metadata-only reshape
    dw_w_cf = params["dw_w"].reshape(C, 49)          # (C,1,7,7) -> (C, 49)
    out_flat = _convnext_block_pallas(
        x_flat, dw_w_cf,
        params["dw_b"], params["norm_w"], params["norm_b"],
        params["w1"], params["b1"], params["w2"], params["b2"],
        params["gamma"], H=H, W=W)
    return out_flat.reshape(N, C, H, W)


# ---------------------------- Pure-JAX reference -----------------------------
def convnext_block_ref(x_nchw, params):
    N, C, H, W = x_nchw.shape
    x = jnp.transpose(x_nchw, (0, 2, 3, 1))                      # NHWC
    k = jnp.transpose(params["dw_w"][:, 0], (1, 2, 0)).reshape(7, 7, 1, C)
    y = lax.conv_general_dilated(
        x, k, window_strides=(1, 1), padding=((3, 3), (3, 3)),
        dimension_numbers=("NHWC", "HWIO", "NHWC"),
        feature_group_count=C,
        precision=lax.Precision.HIGHEST) + params["dw_b"]
    mean = jnp.mean(y, axis=-1, keepdims=True)
    var = jnp.mean(jnp.square(y - mean), axis=-1, keepdims=True)
    yn = (y - mean) * lax.rsqrt(var + 1e-6) * params["norm_w"] + params["norm_b"]
    h = jnp.einsum("nhwc,kc->nhwk", yn, params["w1"],
                   precision=lax.Precision.HIGHEST) + params["b1"]
    h = 0.5 * h * (1.0 + lax.erf(h * jnp.float32(_SQRT_HALF)))
    z = jnp.einsum("nhwk,ck->nhwc", h, params["w2"],
                   precision=lax.Precision.HIGHEST) + params["b2"]
    z = z * params["gamma"]
    out = x + z
    return jnp.transpose(out, (0, 3, 1, 2))


# ------------------------------------ main ------------------------------------
if __name__ == "__main__":
    N, C, H, W = 2, 4, 16, 16
    dim = C
    key = jax.random.PRNGKey(0)
    ks = jax.random.split(key, 9)

    # Synthetic parameters in the PyTorch module's native layouts.
    params = {
        "dw_w": 0.1 * jax.random.normal(ks[0], (dim, 1, 7, 7), jnp.float32),
        "dw_b": 0.1 * jax.random.normal(ks[1], (dim,), jnp.float32),
        "norm_w": 1.0 + 0.1 * jax.random.normal(ks[2], (dim,), jnp.float32),
        "norm_b": 0.1 * jax.random.normal(ks[3], (dim,), jnp.float32),
        "w1": 0.1 * jax.random.normal(ks[4], (4 * dim, dim), jnp.float32),
        "b1": 0.1 * jax.random.normal(ks[5], (4 * dim,), jnp.float32),
        "w2": 0.1 * jax.random.normal(ks[6], (dim, 4 * dim), jnp.float32),
        "b2": 0.1 * jax.random.normal(ks[7], (dim,), jnp.float32),
        "gamma": 1e-6 * jnp.ones((dim,), jnp.float32),            # default init
    }
    x = jax.random.normal(ks[8], (N, C, H, W), jnp.float32)

    # Check 1: module-default layer-scale (gamma = 1e-6), tight tolerance.
    out = jax.block_until_ready(convnext_block(x, params))
    ref = convnext_block_ref(x, params)
    assert out.shape == (N, C, H, W)
    err = float(jnp.max(jnp.abs(out - ref)))
    assert err < 1e-4, f"mismatch vs reference (gamma=1e-6): {err}"

    # Check 2: amplified layer-scale so the dwconv/LN/MLP branch is exercised
    # numerically.  The kernel is now fully f32, so the tolerance is tight.
    params_big = dict(params, gamma=jnp.ones((dim,), jnp.float32))
    out_big = jax.block_until_ready(convnext_block(x, params_big))
    ref_big = convnext_block_ref(x, params_big)
    err_big = float(jnp.max(jnp.abs(out_big - ref_big)))
    assert err_big < 1e-3, f"mismatch vs reference (gamma=1): {err_big}"

    print("KERNEL_OK")
</pallas_src>

<mosaic_0001>
module attributes {stable_mosaic.version = 11 : i64} {
  func.func @_convnext_block_kernel(%arg0: i32, %arg1: memref<1x4x256xf32, #tpu.memory_space<vmem>>, %arg2: memref<4x49xf32, #tpu.memory_space<vmem>>, %arg3: memref<4x1xf32, #tpu.memory_space<vmem>>, %arg4: memref<4x1xf32, #tpu.memory_space<vmem>>, %arg5: memref<4x1xf32, #tpu.memory_space<vmem>>, %arg6: memref<16x4xf32, #tpu.memory_space<vmem>>, %arg7: memref<16x1xf32, #tpu.memory_space<vmem>>, %arg8: memref<4x16xf32, #tpu.memory_space<vmem>>, %arg9: memref<4x1xf32, #tpu.memory_space<vmem>>, %arg10: memref<4x1xf32, #tpu.memory_space<vmem>>, %arg11: memref<1x4x256xf32, #tpu.memory_space<vmem>>) attributes {dimension_semantics = [#tpu.dimension_semantics<parallel>], iteration_bounds = array<i64: 2>, scalar_prefetch = 0 : i64, scratch_operands = 0 : i64, tpu.core_type = #tpu.core_type<tc>, window_params = [{transform_indices = @transform_0, window_bounds = array<i64: 1, 4, 256>}, {pipeline_mode = #tpu.pipeline_mode<synchronous>, transform_indices = @transform_1, window_bounds = array<i64: 4, 49>}, {pipeline_mode = #tpu.pipeline_mode<synchronous>, transform_indices = @transform_2, window_bounds = array<i64: 4, 1>}, {pipeline_mode = #tpu.pipeline_mode<synchronous>, transform_indices = @transform_3, window_bounds = array<i64: 4, 1>}, {pipeline_mode = #tpu.pipeline_mode<synchronous>, transform_indices = @transform_4, window_bounds = array<i64: 4, 1>}, {pipeline_mode = #tpu.pipeline_mode<synchronous>, transform_indices = @transform_5, window_bounds = array<i64: 16, 4>}, {pipeline_mode = #tpu.pipeline_mode<synchronous>, transform_indices = @transform_6, window_bounds = array<i64: 16, 1>}, {pipeline_mode = #tpu.pipeline_mode<synchronous>, transform_indices = @transform_7, window_bounds = array<i64: 4, 16>}, {pipeline_mode = #tpu.pipeline_mode<synchronous>, transform_indices = @transform_8, window_bounds = array<i64: 4, 1>}, {pipeline_mode = #tpu.pipeline_mode<synchronous>, transform_indices = @transform_9, window_bounds = array<i64: 4, 1>}, {transform_indices = @transform_10, window_bounds = array<i64: 1, 4, 256>}]} {
    %c0 = arith.constant 0 : index
    %c0_0 = arith.constant 0 : index
    %c0_1 = arith.constant 0 : index
    %0 = vector.load %arg1[%c0, %c0_0, %c0_1] : memref<1x4x256xf32, #tpu.memory_space<vmem>>, vector<1x4x256xf32>
    %1 = vector.shape_cast %0 : vector<1x4x256xf32> to vector<4x256xf32>
    %cst = arith.constant 0.000000e+00 : f32
    %2 = vector.broadcast %cst : f32 to vector<4x128xf32>
    %3 = tpu.concatenate %2, %1, %2 in 1 : vector<4x128xf32>, vector<4x256xf32>, vector<4x128xf32> -> vector<4x512xf32>
    %4 = tpu.iota {dimensions = array<i32: 1>} : vector<1x256xi32>
    %c16_i32 = arith.constant 16 : i32
    %c0_i32 = arith.constant 0 : i32
    %5 = arith.cmpi eq, %c16_i32, %c0_i32 : i32
    %c1_i32 = arith.constant 1 : i32
    %6 = arith.select %5, %c1_i32, %c16_i32 : i32
    %7 = vector.broadcast %6 : i32 to vector<1x256xi32>
    %8 = arith.remsi %4, %7 : vector<1x256xi32>
    %c0_i32_2 = arith.constant 0 : i32
    %9 = vector.broadcast %c0_i32_2 : i32 to vector<1x256xi32>
    %10 = arith.cmpi ne, %8, %9 : vector<1x256xi32>
    %c0_i32_3 = arith.constant 0 : i32
    %11 = vector.broadcast %c0_i32_3 : i32 to vector<1x256xi32>
    %12 = arith.cmpi slt, %8, %11 : vector<1x256xi32>
    %c0_i32_4 = arith.constant 0 : i32
    %13 = arith.cmpi slt, %6, %c0_i32_4 : i32
    %14 = vector.broadcast %13 : i1 to vector<1x256xi1>
    %15 = vector.broadcast %14 : vector<1x256xi1> to vector<1x256xi1>
    %16 = arith.xori %12, %15 : vector<1x256xi1>
    %17 = arith.andi %16, %10 : vector<1x256xi1>
    %18 = vector.broadcast %6 : i32 to vector<1x256xi32>
    %19 = arith.addi %8, %18 : vector<1x256xi32>
    %20 = arith.select %17, %19, %8 : vector<1x256xi1>, vector<1x256xi32>
    %c-3_i32 = arith.constant -3 : i32
    %21 = vector.broadcast %c-3_i32 : i32 to vector<1x256xi32>
    %22 = arith.addi %20, %21 : vector<1x256xi32>
    %c0_i32_5 = arith.constant 0 : i32
    %23 = vector.broadcast %c0_i32_5 : i32 to vector<1x256xi32>
    %24 = arith.cmpi sge, %22, %23 : vector<1x256xi32>
    %c-3_i32_6 = arith.constant -3 : i32
    %25 = vector.broadcast %c-3_i32_6 : i32 to vector<1x256xi32>
    %26 = arith.addi %20, %25 : vector<1x256xi32>
    %c16_i32_7 = arith.constant 16 : i32
    %27 = vector.broadcast %c16_i32_7 : i32 to vector<1x256xi32>
    %28 = arith.cmpi slt, %26, %27 : vector<1x256xi32>
    %29 = arith.andi %24, %28 : vector<1x256xi1>
    %30 = arith.extui %29 : vector<1x256xi1> to vector<1x256xi32>
    %31 = arith.sitofp %30 : vector<1x256xi32> to vector<1x256xf32>
    %c-2_i32 = arith.constant -2 : i32
    %32 = vector.broadcast %c-2_i32 : i32 to vector<1x256xi32>
    %33 = arith.addi %20, %32 : vector<1x256xi32>
    %c0_i32_8 = arith.constant 0 : i32
    %34 = vector.broadcast %c0_i32_8 : i32 to vector<1x256xi32>
    %35 = arith.cmpi sge, %33, %34 : vector<1x256xi32>
    %c-2_i32_9 = arith.constant -2 : i32
    %36 = vector.broadcast %c-2_i32_9 : i32 to vector<1x256xi32>
    %37 = arith.addi %20, %36 : vector<1x256xi32>
    %c16_i32_10 = arith.constant 16 : i32
    %38 = vector.broadcast %c16_i32_10 : i32 to vector<1x256xi32>
    %39 = arith.cmpi slt, %37, %38 : vector<1x256xi32>
    %40 = arith.andi %35, %39 : vector<1x256xi1>
    %41 = arith.extui %40 : vector<1x256xi1> to vector<1x256xi32>
    %42 = arith.sitofp %41 : vector<1x256xi32> to vector<1x256xf32>
    %c-1_i32 = arith.constant -1 : i32
    %43 = vector.broadcast %c-1_i32 : i32 to vector<1x256xi32>
    %44 = arith.addi %20, %43 : vector<1x256xi32>
    %c0_i32_11 = arith.constant 0 : i32
    %45 = vector.broadcast %c0_i32_11 : i32 to vector<1x256xi32>
    %46 = arith.cmpi sge, %44, %45 : vector<1x256xi32>
    %c-1_i32_12 = arith.constant -1 : i32
    %47 = vector.broadcast %c-1_i32_12 : i32 to vector<1x256xi32>
    %48 = arith.addi %20, %47 : vector<1x256xi32>
    %c16_i32_13 = arith.constant 16 : i32
    %49 = vector.broadcast %c16_i32_13 : i32 to vector<1x256xi32>
    %50 = arith.cmpi slt, %48, %49 : vector<1x256xi32>
    %51 = arith.andi %46, %50 : vector<1x256xi1>
    %52 = arith.extui %51 : vector<1x256xi1> to vector<1x256xi32>
    %53 = arith.sitofp %52 : vector<1x256xi32> to vector<1x256xf32>
    %c0_i32_14 = arith.constant 0 : i32
    %54 = vector.broadcast %c0_i32_14 : i32 to vector<1x256xi32>
    %55 = arith.addi %20, %54 : vector<1x256xi32>
    %c0_i32_15 = arith.constant 0 : i32
    %56 = vector.broadcast %c0_i32_15 : i32 to vector<1x256xi32>
    %57 = arith.cmpi sge, %55, %56 : vector<1x256xi32>
    %c0_i32_16 = arith.constant 0 : i32
    %58 = vector.broadcast %c0_i32_16 : i32 to vector<1x256xi32>
    %59 = arith.addi %20, %58 : vector<1x256xi32>
    %c16_i32_17 = arith.constant 16 : i32
    %60 = vector.broadcast %c16_i32_17 : i32 to vector<1x256xi32>
    %61 = arith.cmpi slt, %59, %60 : vector<1x256xi32>
    %62 = arith.andi %57, %61 : vector<1x256xi1>
    %63 = arith.extui %62 : vector<1x256xi1> to vector<1x256xi32>
    %64 = arith.sitofp %63 : vector<1x256xi32> to vector<1x256xf32>
    %c1_i32_18 = arith.constant 1 : i32
    %65 = vector.broadcast %c1_i32_18 : i32 to vector<1x256xi32>
    %66 = arith.addi %20, %65 : vector<1x256xi32>
    %c0_i32_19 = arith.constant 0 : i32
    %67 = vector.broadcast %c0_i32_19 : i32 to vector<1x256xi32>
    %68 = arith.cmpi sge, %66, %67 : vector<1x256xi32>
    %c1_i32_20 = arith.constant 1 : i32
    %69 = vector.broadcast %c1_i32_20 : i32 to vector<1x256xi32>
    %70 = arith.addi %20, %69 : vector<1x256xi32>
    %c16_i32_21 = arith.constant 16 : i32
    %71 = vector.broadcast %c16_i32_21 : i32 to vector<1x256xi32>
    %72 = arith.cmpi slt, %70, %71 : vector<1x256xi32>
    %73 = arith.andi %68, %72 : vector<1x256xi1>
    %74 = arith.extui %73 : vector<1x256xi1> to vector<1x256xi32>
    %75 = arith.sitofp %74 : vector<1x256xi32> to vector<1x256xf32>
    %c2_i32 = arith.constant 2 : i32
    %76 = vector.broadcast %c2_i32 : i32 to vector<1x256xi32>
    %77 = arith.addi %20, %76 : vector<1x256xi32>
    %c0_i32_22 = arith.constant 0 : i32
    %78 = vector.broadcast %c0_i32_22 : i32 to vector<1x256xi32>
    %79 = arith.cmpi sge, %77, %78 : vector<1x256xi32>
    %c2_i32_23 = arith.constant 2 : i32
    %80 = vector.broadcast %c2_i32_23 : i32 to vector<1x256xi32>
    %81 = arith.addi %20, %80 : vector<1x256xi32>
    %c16_i32_24 = arith.constant 16 : i32
    %82 = vector.broadcast %c16_i32_24 : i32 to vector<1x256xi32>
    %83 = arith.cmpi slt, %81, %82 : vector<1x256xi32>
    %84 = arith.andi %79, %83 : vector<1x256xi1>
    %85 = arith.extui %84 : vector<1x256xi1> to vector<1x256xi32>
    %86 = arith.sitofp %85 : vector<1x256xi32> to vector<1x256xf32>
    %c3_i32 = arith.constant 3 : i32
    %87 = vector.broadcast %c3_i32 : i32 to vector<1x256xi32>
    %88 = arith.addi %20, %87 : vector<1x256xi32>
    %c0_i32_25 = arith.constant 0 : i32
    %89 = vector.broadcast %c0_i32_25 : i32 to vector<1x256xi32>
    %90 = arith.cmpi sge, %88, %89 : vector<1x256xi32>
    %c3_i32_26 = arith.constant 3 : i32
    %91 = vector.broadcast %c3_i32_26 : i32 to vector<1x256xi32>
    %92 = arith.addi %20, %91 : vector<1x256xi32>
    %c16_i32_27 = arith.constant 16 : i32
    %93 = vector.broadcast %c16_i32_27 : i32 to vector<1x256xi32>
    %94 = arith.cmpi slt, %92, %93 : vector<1x256xi32>
    %95 = arith.andi %90, %94 : vector<1x256xi1>
    %96 = arith.extui %95 : vector<1x256xi1> to vector<1x256xi32>
    %97 = arith.sitofp %96 : vector<1x256xi32> to vector<1x256xf32>
    %c0_28 = arith.constant 0 : index
    %c0_29 = arith.constant 0 : index
    %98 = vector.load %arg2[%c0_28, %c0_29] : memref<4x49xf32, #tpu.memory_space<vmem>>, vector<4x49xf32>
    %cst_30 = arith.constant 0.000000e+00 : f32
    %99 = vector.broadcast %cst_30 : f32 to vector<4x256xf32>
    %100 = vector.extract_strided_slice %3 {offsets = [0, 77], sizes = [4, 256], strides = [1, 1]} : vector<4x512xf32> to vector<4x256xf32>
    %101 = vector.broadcast %31 : vector<1x256xf32> to vector<4x256xf32>
    %102 = arith.mulf %100, %101 : vector<4x256xf32>
    %103 = vector.extract_strided_slice %98 {offsets = [0, 0], sizes = [4, 1], strides = [1, 1]} : vector<4x49xf32> to vector<4x1xf32>
    %104 = vector.broadcast %103 : vector<4x1xf32> to vector<4x256xf32>
    %105 = arith.mulf %102, %104 : vector<4x256xf32>
    %106 = arith.addf %99, %105 : vector<4x256xf32>
    %107 = vector.extract_strided_slice %3 {offsets = [0, 78], sizes = [4, 256], strides = [1, 1]} : vector<4x512xf32> to vector<4x256xf32>
    %108 = vector.broadcast %42 : vector<1x256xf32> to vector<4x256xf32>
    %109 = arith.mulf %107, %108 : vector<4x256xf32>
    %110 = vector.extract_strided_slice %98 {offsets = [0, 1], sizes = [4, 1], strides = [1, 1]} : vector<4x49xf32> to vector<4x1xf32>
    %111 = vector.broadcast %110 : vector<4x1xf32> to vector<4x256xf32>
    %112 = arith.mulf %109, %111 : vector<4x256xf32>
    %113 = arith.addf %106, %112 : vector<4x256xf32>
    %114 = vector.extract_strided_slice %3 {offsets = [0, 79], sizes = [4, 256], strides = [1, 1]} : vector<4x512xf32> to vector<4x256xf32>
    %115 = vector.broadcast %53 : vector<1x256xf32> to vector<4x256xf32>
    %116 = arith.mulf %114, %115 : vector<4x256xf32>
    %117 = vector.extract_strided_slice %98 {offsets = [0, 2], sizes = [4, 1], strides = [1, 1]} : vector<4x49xf32> to vector<4x1xf32>
    %118 = vector.broadcast %117 : vector<4x1xf32> to vector<4x256xf32>
    %119 = arith.mulf %116, %118 : vector<4x256xf32>
    %120 = arith.addf %113, %119 : vector<4x256xf32>
    %121 = vector.extract_strided_slice %3 {offsets = [0, 80], sizes = [4, 256], strides = [1, 1]} : vector<4x512xf32> to vector<4x256xf32>
    %122 = vector.broadcast %64 : vector<1x256xf32> to vector<4x256xf32>
    %123 = arith.mulf %121, %122 : vector<4x256xf32>
    %124 = vector.extract_strided_slice %98 {offsets = [0, 3], sizes = [4, 1], strides = [1, 1]} : vector<4x49xf32> to vector<4x1xf32>
    %125 = vector.broadcast %124 : vector<4x1xf32> to vector<4x256xf32>
    %126 = arith.mulf %123, %125 : vector<4x256xf32>
    %127 = arith.addf %120, %126 : vector<4x256xf32>
    %128 = vector.extract_strided_slice %3 {offsets = [0, 81], sizes = [4, 256], strides = [1, 1]} : vector<4x512xf32> to vector<4x256xf32>
    %129 = vector.broadcast %75 : vector<1x256xf32> to vector<4x256xf32>
    %130 = arith.mulf %128, %129 : vector<4x256xf32>
    %131 = vector.extract_strided_slice %98 {offsets = [0, 4], sizes = [4, 1], strides = [1, 1]} : vector<4x49xf32> to vector<4x1xf32>
    %132 = vector.broadcast %131 : vector<4x1xf32> to vector<4x256xf32>
    %133 = arith.mulf %130, %132 : vector<4x256xf32>
    %134 = arith.addf %127, %133 : vector<4x256xf32>
    %135 = vector.extract_strided_slice %3 {offsets = [0, 82], sizes = [4, 256], strides = [1, 1]} : vector<4x512xf32> to vector<4x256xf32>
    %136 = vector.broadcast %86 : vector<1x256xf32> to vector<4x256xf32>
    %137 = arith.mulf %135, %136 : vector<4x256xf32>
    %138 = vector.extract_strided_slice %98 {offsets = [0, 5], sizes = [4, 1], strides = [1, 1]} : vector<4x49xf32> to vector<4x1xf32>
    %139 = vector.broadcast %138 : vector<4x1xf32> to vector<4x256xf32>
    %140 = arith.mulf %137, %139 : vector<4x256xf32>
    %141 = arith.addf %134, %140 : vector<4x256xf32>
    %142 = vector.extract_strided_slice %3 {offsets = [0, 83], sizes = [4, 256], strides = [1, 1]} : vector<4x512xf32> to vector<4x256xf32>
    %143 = vector.broadcast %97 : vector<1x256xf32> to vector<4x256xf32>
    %144 = arith.mulf %142, %143 : vector<4x256xf32>
    %145 = vector.extract_strided_slice %98 {offsets = [0, 6], sizes = [4, 1], strides = [1, 1]} : vector<4x49xf32> to vector<4x1xf32>
    %146 = vector.broadcast %145 : vector<4x1xf32> to vector<4x256xf32>
    %147 = arith.mulf %144, %146 : vector<4x256xf32>
    %148 = arith.addf %141, %147 : vector<4x256xf32>
    %149 = vector.extract_strided_slice %3 {offsets = [0, 93], sizes = [4, 256], strides = [1, 1]} : vector<4x512xf32> to vector<4x256xf32>
    %150 = vector.broadcast %31 : vector<1x256xf32> to vector<4x256xf32>
    %151 = arith.mulf %149, %150 : vector<4x256xf32>
    %152 = vector.extract_strided_slice %98 {offsets = [0, 7], sizes = [4, 1], strides = [1, 1]} : vector<4x49xf32> to vector<4x1xf32>
    %153 = vector.broadcast %152 : vector<4x1xf32> to vector<4x256xf32>
    %154 = arith.mulf %151, %153 : vector<4x256xf32>
    %155 = arith.addf %148, %154 : vector<4x256xf32>
    %156 = vector.extract_strided_slice %3 {offsets = [0, 94], sizes = [4, 256], strides = [1, 1]} : vector<4x512xf32> to vector<4x256xf32>
    %157 = vector.broadcast %42 : vector<1x256xf32> to vector<4x256xf32>
    %158 = arith.mulf %156, %157 : vector<4x256xf32>
    %159 = vector.extract_strided_slice %98 {offsets = [0, 8], sizes = [4, 1], strides = [1, 1]} : vector<4x49xf32> to vector<4x1xf32>
    %160 = vector.broadcast %159 : vector<4x1xf32> to vector<4x256xf32>
    %161 = arith.mulf %158, %160 : vector<4x256xf32>
    %162 = arith.addf %155, %161 : vector<4x256xf32>
    %163 = vector.extract_strided_slice %3 {offsets = [0, 95], sizes = [4, 256], strides = [1, 1]} : vector<4x512xf32> to vector<4x256xf32>
    %164 = vector.broadcast %53 : vector<1x256xf32> to vector<4x256xf32>
    %165 = arith.mulf %163, %164 : vector<4x256xf32>
    %166 = vector.extract_strided_slice %98 {offsets = [0, 9], sizes = [4, 1], strides = [1, 1]} : vector<4x49xf32> to vector<4x1xf32>
    %167 = vector.broadcast %166 : vector<4x1xf32> to vector<4x256xf32>
    %168 = arith.mulf %165, %167 : vector<4x256xf32>
    %169 = arith.addf %162, %168 : vector<4x256xf32>
    %170 = vector.extract_strided_slice %3 {offsets = [0, 96], sizes = [4, 256], strides = [1, 1]} : vector<4x512xf32> to vector<4x256xf32>
    %171 = vector.broadcast %64 : vector<1x256xf32> to vector<4x256xf32>
    %172 = arith.mulf %170, %171 : vector<4x256xf32>
    %173 = vector.extract_strided_slice %98 {offsets = [0, 10], sizes = [4, 1], strides = [1, 1]} : vector<4x49xf32> to vector<4x1xf32>
    %174 = vector.broadcast %173 : vector<4x1xf32> to vector<4x256xf32>
    %175 = arith.mulf %172, %174 : vector<4x256xf32>
    %176 = arith.addf %169, %175 : vector<4x256xf32>
    %177 = vector.extract_strided_slice %3 {offsets = [0, 97], sizes = [4, 256], strides = [1, 1]} : vector<4x512xf32> to vector<4x256xf32>
    %178 = vector.broadcast %75 : vector<1x256xf32> to vector<4x256xf32>
    %179 = arith.mulf %177, %178 : vector<4x256xf32>
    %180 = vector.extract_strided_slice %98 {offsets = [0, 11], sizes = [4, 1], strides = [1, 1]} : vector<4x49xf32> to vector<4x1xf32>
    %181 = vector.broadcast %180 : vector<4x1xf32> to vector<4x256xf32>
    %182 = arith.mulf %179, %181 : vector<4x256xf32>
    %183 = arith.addf %176, %182 : vector<4x256xf32>
    %184 = vector.extract_strided_slice %3 {offsets = [0, 98], sizes = [4, 256], strides = [1, 1]} : vector<4x512xf32> to vector<4x256xf32>
    %185 = vector.broadcast %86 : vector<1x256xf32> to vector<4x256xf32>
    %186 = arith.mulf %184, %185 : vector<4x256xf32>
    %187 = vector.extract_strided_slice %98 {offsets = [0, 12], sizes = [4, 1], strides = [1, 1]} : vector<4x49xf32> to vector<4x1xf32>
    %188 = vector.broadcast %187 : vector<4x1xf32> to vector<4x256xf32>
    %189 = arith.mulf %186, %188 : vector<4x256xf32>
    %190 = arith.addf %183, %189 : vector<4x256xf32>
    %191 = vector.extract_strided_slice %3 {offsets = [0, 99], sizes = [4, 256], strides = [1, 1]} : vector<4x512xf32> to vector<4x256xf32>
    %192 = vector.broadcast %97 : vector<1x256xf32> to vector<4x256xf32>
    %193 = arith.mulf %191, %192 : vector<4x256xf32>
    %194 = vector.extract_strided_slice %98 {offsets = [0, 13], sizes = [4, 1], strides = [1, 1]} : vector<4x49xf32> to vector<4x1xf32>
    %195 = vector.broadcast %194 : vector<4x1xf32> to vector<4x256xf32>
    %196 = arith.mulf %193, %195 : vector<4x256xf32>
    %197 = arith.addf %190, %196 : vector<4x256xf32>
    %198 = vector.extract_strided_slice %3 {offsets = [0, 109], sizes = [4, 256], strides = [1, 1]} : vector<4x512xf32> to vector<4x256xf32>
    %199 = vector.broadcast %31 : vector<1x256xf32> to vector<4x256xf32>
    %200 = arith.mulf %198, %199 : vector<4x256xf32>
    %201 = vector.extract_strided_slice %98 {offsets = [0, 14], sizes = [4, 1], strides = [1, 1]} : vector<4x49xf32> to vector<4x1xf32>
    %202 = vector.broadcast %201 : vector<4x1xf32> to vector<4x256xf32>
    %203 = arith.mulf %200, %202 : vector<4x256xf32>
    %204 = arith.addf %197, %203 : vector<4x256xf32>
    %205 = vector.extract_strided_slice %3 {offsets = [0, 110], sizes = [4, 256], strides = [1, 1]} : vector<4x512xf32> to vector<4x256xf32>
    %206 = vector.broadcast %42 : vector<1x256xf32> to vector<4x256xf32>
    %207 = arith.mulf %205, %206 : vector<4x256xf32>
    %208 = vector.extract_strided_slice %98 {offsets = [0, 15], sizes = [4, 1], strides = [1, 1]} : vector<4x49xf32> to vector<4x1xf32>
    %209 = vector.broadcast %208 : vector<4x1xf32> to vector<4x256xf32>
    %210 = arith.mulf %207, %209 : vector<4x256xf32>
    %211 = arith.addf %204, %210 : vector<4x256xf32>
    %212 = vector.extract_strided_slice %3 {offsets = [0, 111], sizes = [4, 256], strides = [1, 1]} : vector<4x512xf32> to vector<4x256xf32>
    %213 = vector.broadcast %53 : vector<1x256xf32> to vector<4x256xf32>
    %214 = arith.mulf %212, %213 : vector<4x256xf32>
    %215 = vector.extract_strided_slice %98 {offsets = [0, 16], sizes = [4, 1], strides = [1, 1]} : vector<4x49xf32> to vector<4x1xf32>
    %216 = vector.broadcast %215 : vector<4x1xf32> to vector<4x256xf32>
    %217 = arith.mulf %214, %216 : vector<4x256xf32>
    %218 = arith.addf %211, %217 : vector<4x256xf32>
    %219 = vector.extract_strided_slice %3 {offsets = [0, 112], sizes = [4, 256], strides = [1, 1]} : vector<4x512xf32> to vector<4x256xf32>
    %220 = vector.broadcast %64 : vector<1x256xf32> to vector<4x256xf32>
    %221 = arith.mulf %219, %220 : vector<4x256xf32>
    %222 = vector.extract_strided_slice %98 {offsets = [0, 17], sizes = [4, 1], strides = [1, 1]} : vector<4x49xf32> to vector<4x1xf32>
    %223 = vector.broadcast %222 : vector<4x1xf32> to vector<4x256xf32>
    %224 = arith.mulf %221, %223 : vector<4x256xf32>
    %225 = arith.addf %218, %224 : vector<4x256xf32>
    %226 = vector.extract_strided_slice %3 {offsets = [0, 113], sizes = [4, 256], strides = [1, 1]} : vector<4x512xf32> to vector<4x256xf32>
    %227 = vector.broadcast %75 : vector<1x256xf32> to vector<4x256xf32>
    %228 = arith.mulf %226, %227 : vector<4x256xf32>
    %229 = vector.extract_strided_slice %98 {offsets = [0, 18], sizes = [4, 1], strides = [1, 1]} : vector<4x49xf32> to vector<4x1xf32>
    %230 = vector.broadcast %229 : vector<4x1xf32> to vector<4x256xf32>
    %231 = arith.mulf %228, %230 : vector<4x256xf32>
    %232 = arith.addf %225, %231 : vector<4x256xf32>
    %233 = vector.extract_strided_slice %3 {offsets = [0, 114], sizes = [4, 256], strides = [1, 1]} : vector<4x512xf32> to vector<4x256xf32>
    %234 = vector.broadcast %86 : vector<1x256xf32> to vector<4x256xf32>
    %235 = arith.mulf %233, %234 : vector<4x256xf32>
    %236 = vector.extract_strided_slice %98 {offsets = [0, 19], sizes = [4, 1], strides = [1, 1]} : vector<4x49xf32> to vector<4x1xf32>
    %237 = vector.broadcast %236 : vector<4x1xf32> to vector<4x256xf32>
    %238 = arith.mulf %235, %237 : vector<4x256xf32>
    %239 = arith.addf %232, %238 : vector<4x256xf32>
    %240 = vector.extract_strided_slice %3 {offsets = [0, 115], sizes = [4, 256], strides = [1, 1]} : vector<4x512xf32> to vector<4x256xf32>
    %241 = vector.broadcast %97 : vector<1x256xf32> to vector<4x256xf32>
    %242 = arith.mulf %240, %241 : vector<4x256xf32>
    %243 = vector.extract_strided_slice %98 {offsets = [0, 20], sizes = [4, 1], strides = [1, 1]} : vector<4x49xf32> to vector<4x1xf32>
    %244 = vector.broadcast %243 : vector<4x1xf32> to vector<4x256xf32>
    %245 = arith.mulf %242, %244 : vector<4x256xf32>
    %246 = arith.addf %239, %245 : vector<4x256xf32>
    %247 = vector.extract_strided_slice %3 {offsets = [0, 125], sizes = [4, 256], strides = [1, 1]} : vector<4x512xf32> to vector<4x256xf32>
    %248 = vector.broadcast %31 : vector<1x256xf32> to vector<4x256xf32>
    %249 = arith.mulf %247, %248 : vector<4x256xf32>
    %250 = vector.extract_strided_slice %98 {offsets = [0, 21], sizes = [4, 1], strides = [1, 1]} : vector<4x49xf32> to vector<4x1xf32>
    %251 = vector.broadcast %250 : vector<4x1xf32> to vector<4x256xf32>
    %252 = arith.mulf %249, %251 : vector<4x256xf32>
    %253 = arith.addf %246, %252 : vector<4x256xf32>
    %254 = vector.extract_strided_slice %3 {offsets = [0, 126], sizes = [4, 256], strides = [1, 1]} : vector<4x512xf32> to vector<4x256xf32>
    %255 = vector.broadcast %42 : vector<1x256xf32> to vector<4x256xf32>
    %256 = arith.mulf %254, %255 : vector<4x256xf32>
    %257 = vector.extract_strided_slice %98 {offsets = [0, 22], sizes = [4, 1], strides = [1, 1]} : vector<4x49xf32> to vector<4x1xf32>
    %258 = vector.broadcast %257 : vector<4x1xf32> to vector<4x256xf32>
    %259 = arith.mulf %256, %258 : vector<4x256xf32>
    %260 = arith.addf %253, %259 : vector<4x256xf32>
    %261 = vector.extract_strided_slice %3 {offsets = [0, 127], sizes = [4, 256], strides = [1, 1]} : vector<4x512xf32> to vector<4x256xf32>
    %262 = vector.broadcast %53 : vector<1x256xf32> to vector<4x256xf32>
    %263 = arith.mulf %261, %262 : vector<4x256xf32>
    %264 = vector.extract_strided_slice %98 {offsets = [0, 23], sizes = [4, 1], strides = [1, 1]} : vector<4x49xf32> to vector<4x1xf32>
    %265 = vector.broadcast %264 : vector<4x1xf32> to vector<4x256xf32>
    %266 = arith.mulf %263, %265 : vector<4x256xf32>
    %267 = arith.addf %260, %266 : vector<4x256xf32>
    %268 = vector.extract_strided_slice %3 {offsets = [0, 128], sizes = [4, 256], strides = [1, 1]} : vector<4x512xf32> to vector<4x256xf32>
    %269 = vector.broadcast %64 : vector<1x256xf32> to vector<4x256xf32>
    %270 = arith.mulf %268, %269 : vector<4x256xf32>
    %271 = vector.extract_strided_slice %98 {offsets = [0, 24], sizes = [4, 1], strides = [1, 1]} : vector<4x49xf32> to vector<4x1xf32>
    %272 = vector.broadcast %271 : vector<4x1xf32> to vector<4x256xf32>
    %273 = arith.mulf %270, %272 : vector<4x256xf32>
    %274 = arith.addf %267, %273 : vector<4x256xf32>
    %275 = vector.extract_strided_slice %3 {offsets = [0, 129], sizes = [4, 256], strides = [1, 1]} : vector<4x512xf32> to vector<4x256xf32>
    %276 = vector.broadcast %75 : vector<1x256xf32> to vector<4x256xf32>
    %277 = arith.mulf %275, %276 : vector<4x256xf32>
    %278 = vector.extract_strided_slice %98 {offsets = [0, 25], sizes = [4, 1], strides = [1, 1]} : vector<4x49xf32> to vector<4x1xf32>
    %279 = vector.broadcast %278 : vector<4x1xf32> to vector<4x256xf32>
    %280 = arith.mulf %277, %279 : vector<4x256xf32>
    %281 = arith.addf %274, %280 : vector<4x256xf32>
    %282 = vector.extract_strided_slice %3 {offsets = [0, 130], sizes = [4, 256], strides = [1, 1]} : vector<4x512xf32> to vector<4x256xf32>
    %283 = vector.broadcast %86 : vector<1x256xf32> to vector<4x256xf32>
    %284 = arith.mulf %282, %283 : vector<4x256xf32>
    %285 = vector.extract_strided_slice %98 {offsets = [0, 26], sizes = [4, 1], strides = [1, 1]} : vector<4x49xf32> to vector<4x1xf32>
    %286 = vector.broadcast %285 : vector<4x1xf32> to vector<4x256xf32>
    %287 = arith.mulf %284, %286 : vector<4x256xf32>
    %288 = arith.addf %281, %287 : vector<4x256xf32>
    %289 = vector.extract_strided_slice %3 {offsets = [0, 131], sizes = [4, 256], strides = [1, 1]} : vector<4x512xf32> to vector<4x256xf32>
    %290 = vector.broadcast %97 : vector<1x256xf32> to vector<4x256xf32>
    %291 = arith.mulf %289, %290 : vector<4x256xf32>
    %292 = vector.extract_strided_slice %98 {offsets = [0, 27], sizes = [4, 1], strides = [1, 1]} : vector<4x49xf32> to vector<4x1xf32>
    %293 = vector.broadcast %292 : vector<4x1xf32> to vector<4x256xf32>
    %294 = arith.mulf %291, %293 : vector<4x256xf32>
    %295 = arith.addf %288, %294 : vector<4x256xf32>
    %296 = vector.extract_strided_slice %3 {offsets = [0, 141], sizes = [4, 256], strides = [1, 1]} : vector<4x512xf32> to vector<4x256xf32>
    %297 = vector.broadcast %31 : vector<1x256xf32> to vector<4x256xf32>
    %298 = arith.mulf %296, %297 : vector<4x256xf32>
    %299 = vector.extract_strided_slice %98 {offsets = [0, 28], sizes = [4, 1], strides = [1, 1]} : vector<4x49xf32> to vector<4x1xf32>
    %300 = vector.broadcast %299 : vector<4x1xf32> to vector<4x256xf32>
    %301 = arith.mulf %298, %300 : vector<4x256xf32>
    %302 = arith.addf %295, %301 : vector<4x256xf32>
    %303 = vector.extract_strided_slice %3 {offsets = [0, 142], sizes = [4, 256], strides = [1, 1]} : vector<4x512xf32> to vector<4x256xf32>
    %304 = vector.broadcast %42 : vector<1x256xf32> to vector<4x256xf32>
    %305 = arith.mulf %303, %304 : vector<4x256xf32>
    %306 = vector.extract_strided_slice %98 {offsets = [0, 29], sizes = [4, 1], strides = [1, 1]} : vector<4x49xf32> to vector<4x1xf32>
    %307 = vector.broadcast %306 : vector<4x1xf32> to vector<4x256xf32>
    %308 = arith.mulf %305, %307 : vector<4x256xf32>
    %309 = arith.addf %302, %308 : vector<4x256xf32>
    %310 = vector.extract_strided_slice %3 {offsets = [0, 143], sizes = [4, 256], strides = [1, 1]} : vector<4x512xf32> to vector<4x256xf32>
    %311 = vector.broadcast %53 : vector<1x256xf32> to vector<4x256xf32>
    %312 = arith.mulf %310, %311 : vector<4x256xf32>
    %313 = vector.extract_strided_slice %98 {offsets = [0, 30], sizes = [4, 1], strides = [1, 1]} : vector<4x49xf32> to vector<4x1xf32>
    %314 = vector.broadcast %313 : vector<4x1xf32> to vector<4x256xf32>
    %315 = arith.mulf %312, %314 : vector<4x256xf32>
    %316 = arith.addf %309, %315 : vector<4x256xf32>
    %317 = vector.extract_strided_slice %3 {offsets = [0, 144], sizes = [4, 256], strides = [1, 1]} : vector<4x512xf32> to vector<4x256xf32>
    %318 = vector.broadcast %64 : vector<1x256xf32> to vector<4x256xf32>
    %319 = arith.mulf %317, %318 : vector<4x256xf32>
    %320 = vector.extract_strided_slice %98 {offsets = [0, 31], sizes = [4, 1], strides = [1, 1]} : vector<4x49xf32> to vector<4x1xf32>
    %321 = vector.broadcast %320 : vector<4x1xf32> to vector<4x256xf32>
    %322 = arith.mulf %319, %321 : vector<4x256xf32>
    %323 = arith.addf %316, %322 : vector<4x256xf32>
    %324 = vector.extract_strided_slice %3 {offsets = [0, 145], sizes = [4, 256], strides = [1, 1]} : vector<4x512xf32> to vector<4x256xf32>
    %325 = vector.broadcast %75 : vector<1x256xf32> to vector<4x256xf32>
    %326 = arith.mulf %324, %325 : vector<4x256xf32>
    %327 = vector.extract_strided_slice %98 {offsets = [0, 32], sizes = [4, 1], strides = [1, 1]} : vector<4x49xf32> to vector<4x1xf32>
    %328 = vector.broadcast %327 : vector<4x1xf32> to vector<4x256xf32>
    %329 = arith.mulf %326, %328 : vector<4x256xf32>
    %330 = arith.addf %323, %329 : vector<4x256xf32>
    %331 = vector.extract_strided_slice %3 {offsets = [0, 146], sizes = [4, 256], strides = [1, 1]} : vector<4x512xf32> to vector<4x256xf32>
    %332 = vector.broadcast %86 : vector<1x256xf32> to vector<4x256xf32>
    %333 = arith.mulf %331, %332 : vector<4x256xf32>
    %334 = vector.extract_strided_slice %98 {offsets = [0, 33], sizes = [4, 1], strides = [1, 1]} : vector<4x49xf32> to vector<4x1xf32>
    %335 = vector.broadcast %334 : vector<4x1xf32> to vector<4x256xf32>
    %336 = arith.mulf %333, %335 : vector<4x256xf32>
    %337 = arith.addf %330, %336 : vector<4x256xf32>
    %338 = vector.extract_strided_slice %3 {offsets = [0, 147], sizes = [4, 256], strides = [1, 1]} : vector<4x512xf32> to vector<4x256xf32>
    %339 = vector.broadcast %97 : vector<1x256xf32> to vector<4x256xf32>
    %340 = arith.mulf %338, %339 : vector<4x256xf32>
    %341 = vector.extract_strided_slice %98 {offsets = [0, 34], sizes = [4, 1], strides = [1, 1]} : vector<4x49xf32> to vector<4x1xf32>
    %342 = vector.broadcast %341 : vector<4x1xf32> to vector<4x256xf32>
    %343 = arith.mulf %340, %342 : vector<4x256xf32>
    %344 = arith.addf %337, %343 : vector<4x256xf32>
    %345 = vector.extract_strided_slice %3 {offsets = [0, 157], sizes = [4, 256], strides = [1, 1]} : vector<4x512xf32> to vector<4x256xf32>
    %346 = vector.broadcast %31 : vector<1x256xf32> to vector<4x256xf32>
    %347 = arith.mulf %345, %346 : vector<4x256xf32>
    %348 = vector.extract_strided_slice %98 {offsets = [0, 35], sizes = [4, 1], strides = [1, 1]} : vector<4x49xf32> to vector<4x1xf32>
    %349 = vector.broadcast %348 : vector<4x1xf32> to vector<4x256xf32>
    %350 = arith.mulf %347, %349 : vector<4x256xf32>
    %351 = arith.addf %344, %350 : vector<4x256xf32>
    %352 = vector.extract_strided_slice %3 {offsets = [0, 158], sizes = [4, 256], strides = [1, 1]} : vector<4x512xf32> to vector<4x256xf32>
    %353 = vector.broadcast %42 : vector<1x256xf32> to vector<4x256xf32>
    %354 = arith.mulf %352, %353 : vector<4x256xf32>
    %355 = vector.extract_strided_slice %98 {offsets = [0, 36], sizes = [4, 1], strides = [1, 1]} : vector<4x49xf32> to vector<4x1xf32>
    %356 = vector.broadcast %355 : vector<4x1xf32> to vector<4x256xf32>
    %357 = arith.mulf %354, %356 : vector<4x256xf32>
    %358 = arith.addf %351, %357 : vector<4x256xf32>
    %359 = vector.extract_strided_slice %3 {offsets = [0, 159], sizes = [4, 256], strides = [1, 1]} : vector<4x512xf32> to vector<4x256xf32>
    %360 = vector.broadcast %53 : vector<1x256xf32> to vector<4x256xf32>
    %361 = arith.mulf %359, %360 : vector<4x256xf32>
    %362 = vector.extract_strided_slice %98 {offsets = [0, 37], sizes = [4, 1], strides = [1, 1]} : vector<4x49xf32> to vector<4x1xf32>
    %363 = vector.broadcast %362 : vector<4x1xf32> to vector<4x256xf32>
    %364 = arith.mulf %361, %363 : vector<4x256xf32>
    %365 = arith.addf %358, %364 : vector<4x256xf32>
    %366 = vector.extract_strided_slice %3 {offsets = [0, 160], sizes = [4, 256], strides = [1, 1]} : vector<4x512xf32> to vector<4x256xf32>
    %367 = vector.broadcast %64 : vector<1x256xf32> to vector<4x256xf32>
    %368 = arith.mulf %366, %367 : vector<4x256xf32>
    %369 = vector.extract_strided_slice %98 {offsets = [0, 38], sizes = [4, 1], strides = [1, 1]} : vector<4x49xf32> to vector<4x1xf32>
    %370 = vector.broadcast %369 : vector<4x1xf32> to vector<4x256xf32>
    %371 = arith.mulf %368, %370 : vector<4x256xf32>
    %372 = arith.addf %365, %371 : vector<4x256xf32>
    %373 = vector.extract_strided_slice %3 {offsets = [0, 161], sizes = [4, 256], strides = [1, 1]} : vector<4x512xf32> to vector<4x256xf32>
    %374 = vector.broadcast %75 : vector<1x256xf32> to vector<4x256xf32>
    %375 = arith.mulf %373, %374 : vector<4x256xf32>
    %376 = vector.extract_strided_slice %98 {offsets = [0, 39], sizes = [4, 1], strides = [1, 1]} : vector<4x49xf32> to vector<4x1xf32>
    %377 = vector.broadcast %376 : vector<4x1xf32> to vector<4x256xf32>
    %378 = arith.mulf %375, %377 : vector<4x256xf32>
    %379 = arith.addf %372, %378 : vector<4x256xf32>
    %380 = vector.extract_strided_slice %3 {offsets = [0, 162], sizes = [4, 256], strides = [1, 1]} : vector<4x512xf32> to vector<4x256xf32>
    %381 = vector.broadcast %86 : vector<1x256xf32> to vector<4x256xf32>
    %382 = arith.mulf %380, %381 : vector<4x256xf32>
    %383 = vector.extract_strided_slice %98 {offsets = [0, 40], sizes = [4, 1], strides = [1, 1]} : vector<4x49xf32> to vector<4x1xf32>
    %384 = vector.broadcast %383 : vector<4x1xf32> to vector<4x256xf32>
    %385 = arith.mulf %382, %384 : vector<4x256xf32>
    %386 = arith.addf %379, %385 : vector<4x256xf32>
    %387 = vector.extract_strided_slice %3 {offsets = [0, 163], sizes = [4, 256], strides = [1, 1]} : vector<4x512xf32> to vector<4x256xf32>
    %388 = vector.broadcast %97 : vector<1x256xf32> to vector<4x256xf32>
    %389 = arith.mulf %387, %388 : vector<4x256xf32>
    %390 = vector.extract_strided_slice %98 {offsets = [0, 41], sizes = [4, 1], strides = [1, 1]} : vector<4x49xf32> to vector<4x1xf32>
    %391 = vector.broadcast %390 : vector<4x1xf32> to vector<4x256xf32>
    %392 = arith.mulf %389, %391 : vector<4x256xf32>
    %393 = arith.addf %386, %392 : vector<4x256xf32>
    %394 = vector.extract_strided_slice %3 {offsets = [0, 173], sizes = [4, 256], strides = [1, 1]} : vector<4x512xf32> to vector<4x256xf32>
    %395 = vector.broadcast %31 : vector<1x256xf32> to vector<4x256xf32>
    %396 = arith.mulf %394, %395 : vector<4x256xf32>
    %397 = vector.extract_strided_slice %98 {offsets = [0, 42], sizes = [4, 1], strides = [1, 1]} : vector<4x49xf32> to vector<4x1xf32>
    %398 = vector.broadcast %397 : vector<4x1xf32> to vector<4x256xf32>
    %399 = arith.mulf %396, %398 : vector<4x256xf32>
    %400 = arith.addf %393, %399 : vector<4x256xf32>
    %401 = vector.extract_strided_slice %3 {offsets = [0, 174], sizes = [4, 256], strides = [1, 1]} : vector<4x512xf32> to vector<4x256xf32>
    %402 = vector.broadcast %42 : vector<1x256xf32> to vector<4x256xf32>
    %403 = arith.mulf %401, %402 : vector<4x256xf32>
    %404 = vector.extract_strided_slice %98 {offsets = [0, 43], sizes = [4, 1], strides = [1, 1]} : vector<4x49xf32> to vector<4x1xf32>
    %405 = vector.broadcast %404 : vector<4x1xf32> to vector<4x256xf32>
    %406 = arith.mulf %403, %405 : vector<4x256xf32>
    %407 = arith.addf %400, %406 : vector<4x256xf32>
    %408 = vector.extract_strided_slice %3 {offsets = [0, 175], sizes = [4, 256], strides = [1, 1]} : vector<4x512xf32> to vector<4x256xf32>
    %409 = vector.broadcast %53 : vector<1x256xf32> to vector<4x256xf32>
    %410 = arith.mulf %408, %409 : vector<4x256xf32>
    %411 = vector.extract_strided_slice %98 {offsets = [0, 44], sizes = [4, 1], strides = [1, 1]} : vector<4x49xf32> to vector<4x1xf32>
    %412 = vector.broadcast %411 : vector<4x1xf32> to vector<4x256xf32>
    %413 = arith.mulf %410, %412 : vector<4x256xf32>
    %414 = arith.addf %407, %413 : vector<4x256xf32>
    %415 = vector.extract_strided_slice %3 {offsets = [0, 176], sizes = [4, 256], strides = [1, 1]} : vector<4x512xf32> to vector<4x256xf32>
    %416 = vector.broadcast %64 : vector<1x256xf32> to vector<4x256xf32>
    %417 = arith.mulf %415, %416 : vector<4x256xf32>
    %418 = vector.extract_strided_slice %98 {offsets = [0, 45], sizes = [4, 1], strides = [1, 1]} : vector<4x49xf32> to vector<4x1xf32>
    %419 = vector.broadcast %418 : vector<4x1xf32> to vector<4x256xf32>
    %420 = arith.mulf %417, %419 : vector<4x256xf32>
    %421 = arith.addf %414, %420 : vector<4x256xf32>
    %422 = vector.extract_strided_slice %3 {offsets = [0, 177], sizes = [4, 256], strides = [1, 1]} : vector<4x512xf32> to vector<4x256xf32>
    %423 = vector.broadcast %75 : vector<1x256xf32> to vector<4x256xf32>
    %424 = arith.mulf %422, %423 : vector<4x256xf32>
    %425 = vector.extract_strided_slice %98 {offsets = [0, 46], sizes = [4, 1], strides = [1, 1]} : vector<4x49xf32> to vector<4x1xf32>
    %426 = vector.broadcast %425 : vector<4x1xf32> to vector<4x256xf32>
    %427 = arith.mulf %424, %426 : vector<4x256xf32>
    %428 = arith.addf %421, %427 : vector<4x256xf32>
    %429 = vector.extract_strided_slice %3 {offsets = [0, 178], sizes = [4, 256], strides = [1, 1]} : vector<4x512xf32> to vector<4x256xf32>
    %430 = vector.broadcast %86 : vector<1x256xf32> to vector<4x256xf32>
    %431 = arith.mulf %429, %430 : vector<4x256xf32>
    %432 = vector.extract_strided_slice %98 {offsets = [0, 47], sizes = [4, 1], strides = [1, 1]} : vector<4x49xf32> to vector<4x1xf32>
    %433 = vector.broadcast %432 : vector<4x1xf32> to vector<4x256xf32>
    %434 = arith.mulf %431, %433 : vector<4x256xf32>
    %435 = arith.addf %428, %434 : vector<4x256xf32>
    %436 = vector.extract_strided_slice %3 {offsets = [0, 179], sizes = [4, 256], strides = [1, 1]} : vector<4x512xf32> to vector<4x256xf32>
    %437 = vector.broadcast %97 : vector<1x256xf32> to vector<4x256xf32>
    %438 = arith.mulf %436, %437 : vector<4x256xf32>
    %439 = vector.extract_strided_slice %98 {offsets = [0, 48], sizes = [4, 1], strides = [1, 1]} : vector<4x49xf32> to vector<4x1xf32>
    %440 = vector.broadcast %439 : vector<4x1xf32> to vector<4x256xf32>
    %441 = arith.mulf %438, %440 : vector<4x256xf32>
    %442 = arith.addf %435, %441 : vector<4x256xf32>
    %c0_31 = arith.constant 0 : index
    %c0_32 = arith.constant 0 : index
    %443 = vector.load %arg3[%c0_31, %c0_32] : memref<4x1xf32, #tpu.memory_space<vmem>>, vector<4x1xf32>
    %444 = vector.broadcast %443 : vector<4x1xf32> to vector<4x256xf32>
    %445 = arith.addf %442, %444 : vector<4x256xf32>
    %c0_33 = arith.constant 0 : index
    %c0_34 = arith.constant 0 : index
    %446 = vector.load %arg4[%c0_33, %c0_34] : memref<4x1xf32, #tpu.memory_space<vmem>>, vector<4x1xf32>
    %c0_35 = arith.constant 0 : index
    %c0_36 = arith.constant 0 : index
    %447 = vector.load %arg5[%c0_35, %c0_36] : memref<4x1xf32, #tpu.memory_space<vmem>>, vector<4x1xf32>
    %c0_37 = arith.constant 0 : index
    %c0_38 = arith.constant 0 : index
    %448 = vector.load %arg10[%c0_37, %c0_38] : memref<4x1xf32, #tpu.memory_space<vmem>>, vector<4x1xf32>
    %c0_39 = arith.constant 0 : index
    %c0_40 = arith.constant 0 : index
    %449 = vector.load %arg6[%c0_39, %c0_40] : memref<16x4xf32, #tpu.memory_space<vmem>>, vector<16x4xf32>
    %c0_41 = arith.constant 0 : index
    %c0_42 = arith.constant 0 : index
    %450 = vector.load %arg8[%c0_41, %c0_42] : memref<4x16xf32, #tpu.memory_space<vmem>>, vector<4x16xf32>
    %c0_43 = arith.constant 0 : index
    %c0_44 = arith.constant 0 : index
    %451 = vector.load %arg7[%c0_43, %c0_44] : memref<16x1xf32, #tpu.memory_space<vmem>>, vector<16x1xf32>
    %452 = vector.shape_cast %451 : vector<16x1xf32> to vector<16x1xf32>
    %453 = vector.broadcast %452 : vector<16x1xf32> to vector<16x256xf32>
    %c0_45 = arith.constant 0 : index
    %c0_46 = arith.constant 0 : index
    %454 = vector.load %arg9[%c0_45, %c0_46] : memref<4x1xf32, #tpu.memory_space<vmem>>, vector<4x1xf32>
    %455 = vector.shape_cast %454 : vector<4x1xf32> to vector<4x1xf32>
    %456 = vector.broadcast %455 : vector<4x1xf32> to vector<4x256xf32>
    %cst_47 = arith.constant dense<0.000000e+00> : vector<256xf32>
    %457 = vector.multi_reduction <add>, %445, %cst_47 [0] : vector<4x256xf32> to vector<256xf32>
    %458 = vector.shape_cast %457 : vector<256xf32> to vector<1x256xf32>
    %cst_48 = arith.constant 4.000000e+00 : f32
    %459 = vector.broadcast %cst_48 : f32 to vector<1x256xf32>
    %460 = arith.divf %458, %459 : vector<1x256xf32>
    %461 = vector.broadcast %460 : vector<1x256xf32> to vector<4x256xf32>
    %462 = arith.subf %445, %461 : vector<4x256xf32>
    %463 = arith.mulf %462, %462 : vector<4x256xf32>
    %cst_49 = arith.constant dense<0.000000e+00> : vector<256xf32>
    %464 = vector.multi_reduction <add>, %463, %cst_49 [0] : vector<4x256xf32> to vector<256xf32>
    %465 = vector.shape_cast %464 : vector<256xf32> to vector<1x256xf32>
    %cst_50 = arith.constant 4.000000e+00 : f32
    %466 = vector.broadcast %cst_50 : f32 to vector<1x256xf32>
    %467 = arith.divf %465, %466 : vector<1x256xf32>
    %468 = vector.broadcast %460 : vector<1x256xf32> to vector<4x256xf32>
    %469 = arith.subf %445, %468 : vector<4x256xf32>
    %cst_51 = arith.constant 9.99999997E-7 : f32
    %470 = vector.broadcast %cst_51 : f32 to vector<1x256xf32>
    %471 = arith.addf %467, %470 : vector<1x256xf32>
    %472 = math.rsqrt %471 : vector<1x256xf32>
    %473 = vector.broadcast %472 : vector<1x256xf32> to vector<4x256xf32>
    %474 = arith.mulf %469, %473 : vector<4x256xf32>
    %475 = vector.broadcast %446 : vector<4x1xf32> to vector<4x256xf32>
    %476 = arith.mulf %474, %475 : vector<4x256xf32>
    %477 = vector.broadcast %447 : vector<4x1xf32> to vector<4x256xf32>
    %478 = arith.addf %476, %477 : vector<4x256xf32>
    %479 = vector.extract_strided_slice %449 {offsets = [0, 0], sizes = [16, 1], strides = [1, 1]} : vector<16x4xf32> to vector<16x1xf32>
    %480 = vector.extract_strided_slice %478 {offsets = [0, 0], sizes = [1, 256], strides = [1, 1]} : vector<4x256xf32> to vector<1x256xf32>
    %481 = vector.broadcast %479 : vector<16x1xf32> to vector<16x256xf32>
    %482 = vector.broadcast %480 : vector<1x256xf32> to vector<16x256xf32>
    %483 = arith.mulf %481, %482 : vector<16x256xf32>
    %484 = arith.addf %453, %483 : vector<16x256xf32>
    %485 = vector.extract_strided_slice %449 {offsets = [0, 1], sizes = [16, 1], strides = [1, 1]} : vector<16x4xf32> to vector<16x1xf32>
    %486 = vector.extract_strided_slice %478 {offsets = [1, 0], sizes = [1, 256], strides = [1, 1]} : vector<4x256xf32> to vector<1x256xf32>
    %487 = vector.broadcast %485 : vector<16x1xf32> to vector<16x256xf32>
    %488 = vector.broadcast %486 : vector<1x256xf32> to vector<16x256xf32>
    %489 = arith.mulf %487, %488 : vector<16x256xf32>
    %490 = arith.addf %484, %489 : vector<16x256xf32>
    %491 = vector.extract_strided_slice %449 {offsets = [0, 2], sizes = [16, 1], strides = [1, 1]} : vector<16x4xf32> to vector<16x1xf32>
    %492 = vector.extract_strided_slice %478 {offsets = [2, 0], sizes = [1, 256], strides = [1, 1]} : vector<4x256xf32> to vector<1x256xf32>
    %493 = vector.broadcast %491 : vector<16x1xf32> to vector<16x256xf32>
    %494 = vector.broadcast %492 : vector<1x256xf32> to vector<16x256xf32>
    %495 = arith.mulf %493, %494 : vector<16x256xf32>
    %496 = arith.addf %490, %495 : vector<16x256xf32>
    %497 = vector.extract_strided_slice %449 {offsets = [0, 3], sizes = [16, 1], strides = [1, 1]} : vector<16x4xf32> to vector<16x1xf32>
    %498 = vector.extract_strided_slice %478 {offsets = [3, 0], sizes = [1, 256], strides = [1, 1]} : vector<4x256xf32> to vector<1x256xf32>
    %499 = vector.broadcast %497 : vector<16x1xf32> to vector<16x256xf32>
    %500 = vector.broadcast %498 : vector<1x256xf32> to vector<16x256xf32>
    %501 = arith.mulf %499, %500 : vector<16x256xf32>
    %502 = arith.addf %496, %501 : vector<16x256xf32>
    %cst_52 = arith.constant 5.000000e-01 : f32
    %503 = vector.broadcast %cst_52 : f32 to vector<16x256xf32>
    %504 = arith.mulf %503, %502 : vector<16x256xf32>
    %cst_53 = arith.constant 0.707106769 : f32
    %505 = vector.broadcast %cst_53 : f32 to vector<16x256xf32>
    %506 = arith.mulf %502, %505 : vector<16x256xf32>
    %507 = math.erf %506 : vector<16x256xf32>
    %cst_54 = arith.constant 1.000000e+00 : f32
    %508 = vector.broadcast %cst_54 : f32 to vector<16x256xf32>
    %509 = arith.addf %508, %507 : vector<16x256xf32>
    %510 = arith.mulf %504, %509 : vector<16x256xf32>
    %511 = vector.extract_strided_slice %450 {offsets = [0, 0], sizes = [4, 1], strides = [1, 1]} : vector<4x16xf32> to vector<4x1xf32>
    %512 = vector.extract_strided_slice %510 {offsets = [0, 0], sizes = [1, 256], strides = [1, 1]} : vector<16x256xf32> to vector<1x256xf32>
    %513 = vector.broadcast %511 : vector<4x1xf32> to vector<4x256xf32>
    %514 = vector.broadcast %512 : vector<1x256xf32> to vector<4x256xf32>
    %515 = arith.mulf %513, %514 : vector<4x256xf32>
    %516 = arith.addf %456, %515 : vector<4x256xf32>
    %517 = vector.extract_strided_slice %450 {offsets = [0, 1], sizes = [4, 1], strides = [1, 1]} : vector<4x16xf32> to vector<4x1xf32>
    %518 = vector.extract_strided_slice %510 {offsets = [1, 0], sizes = [1, 256], strides = [1, 1]} : vector<16x256xf32> to vector<1x256xf32>
    %519 = vector.broadcast %517 : vector<4x1xf32> to vector<4x256xf32>
    %520 = vector.broadcast %518 : vector<1x256xf32> to vector<4x256xf32>
    %521 = arith.mulf %519, %520 : vector<4x256xf32>
    %522 = arith.addf %516, %521 : vector<4x256xf32>
    %523 = vector.extract_strided_slice %450 {offsets = [0, 2], sizes = [4, 1], strides = [1, 1]} : vector<4x16xf32> to vector<4x1xf32>
    %524 = vector.extract_strided_slice %510 {offsets = [2, 0], sizes = [1, 256], strides = [1, 1]} : vector<16x256xf32> to vector<1x256xf32>
    %525 = vector.broadcast %523 : vector<4x1xf32> to vector<4x256xf32>
    %526 = vector.broadcast %524 : vector<1x256xf32> to vector<4x256xf32>
    %527 = arith.mulf %525, %526 : vector<4x256xf32>
    %528 = arith.addf %522, %527 : vector<4x256xf32>
    %529 = vector.extract_strided_slice %450 {offsets = [0, 3], sizes = [4, 1], strides = [1, 1]} : vector<4x16xf32> to vector<4x1xf32>
    %530 = vector.extract_strided_slice %510 {offsets = [3, 0], sizes = [1, 256], strides = [1, 1]} : vector<16x256xf32> to vector<1x256xf32>
    %531 = vector.broadcast %529 : vector<4x1xf32> to vector<4x256xf32>
    %532 = vector.broadcast %530 : vector<1x256xf32> to vector<4x256xf32>
    %533 = arith.mulf %531, %532 : vector<4x256xf32>
    %534 = arith.addf %528, %533 : vector<4x256xf32>
    %535 = vector.extract_strided_slice %450 {offsets = [0, 4], sizes = [4, 1], strides = [1, 1]} : vector<4x16xf32> to vector<4x1xf32>
    %536 = vector.extract_strided_slice %510 {offsets = [4, 0], sizes = [1, 256], strides = [1, 1]} : vector<16x256xf32> to vector<1x256xf32>
    %537 = vector.broadcast %535 : vector<4x1xf32> to vector<4x256xf32>
    %538 = vector.broadcast %536 : vector<1x256xf32> to vector<4x256xf32>
    %539 = arith.mulf %537, %538 : vector<4x256xf32>
    %540 = arith.addf %534, %539 : vector<4x256xf32>
    %541 = vector.extract_strided_slice %450 {offsets = [0, 5], sizes = [4, 1], strides = [1, 1]} : vector<4x16xf32> to vector<4x1xf32>
    %542 = vector.extract_strided_slice %510 {offsets = [5, 0], sizes = [1, 256], strides = [1, 1]} : vector<16x256xf32> to vector<1x256xf32>
    %543 = vector.broadcast %541 : vector<4x1xf32> to vector<4x256xf32>
    %544 = vector.broadcast %542 : vector<1x256xf32> to vector<4x256xf32>
    %545 = arith.mulf %543, %544 : vector<4x256xf32>
    %546 = arith.addf %540, %545 : vector<4x256xf32>
    %547 = vector.extract_strided_slice %450 {offsets = [0, 6], sizes = [4, 1], strides = [1, 1]} : vector<4x16xf32> to vector<4x1xf32>
    %548 = vector.extract_strided_slice %510 {offsets = [6, 0], sizes = [1, 256], strides = [1, 1]} : vector<16x256xf32> to vector<1x256xf32>
    %549 = vector.broadcast %547 : vector<4x1xf32> to vector<4x256xf32>
    %550 = vector.broadcast %548 : vector<1x256xf32> to vector<4x256xf32>
    %551 = arith.mulf %549, %550 : vector<4x256xf32>
    %552 = arith.addf %546, %551 : vector<4x256xf32>
    %553 = vector.extract_strided_slice %450 {offsets = [0, 7], sizes = [4, 1], strides = [1, 1]} : vector<4x16xf32> to vector<4x1xf32>
    %554 = vector.extract_strided_slice %510 {offsets = [7, 0], sizes = [1, 256], strides = [1, 1]} : vector<16x256xf32> to vector<1x256xf32>
    %555 = vector.broadcast %553 : vector<4x1xf32> to vector<4x256xf32>
    %556 = vector.broadcast %554 : vector<1x256xf32> to vector<4x256xf32>
    %557 = arith.mulf %555, %556 : vector<4x256xf32>
    %558 = arith.addf %552, %557 : vector<4x256xf32>
    %559 = vector.extract_strided_slice %450 {offsets = [0, 8], sizes = [4, 1], strides = [1, 1]} : vector<4x16xf32> to vector<4x1xf32>
    %560 = vector.extract_strided_slice %510 {offsets = [8, 0], sizes = [1, 256], strides = [1, 1]} : vector<16x256xf32> to vector<1x256xf32>
    %561 = vector.broadcast %559 : vector<4x1xf32> to vector<4x256xf32>
    %562 = vector.broadcast %560 : vector<1x256xf32> to vector<4x256xf32>
    %563 = arith.mulf %561, %562 : vector<4x256xf32>
    %564 = arith.addf %558, %563 : vector<4x256xf32>
    %565 = vector.extract_strided_slice %450 {offsets = [0, 9], sizes = [4, 1], strides = [1, 1]} : vector<4x16xf32> to vector<4x1xf32>
    %566 = vector.extract_strided_slice %510 {offsets = [9, 0], sizes = [1, 256], strides = [1, 1]} : vector<16x256xf32> to vector<1x256xf32>
    %567 = vector.broadcast %565 : vector<4x1xf32> to vector<4x256xf32>
    %568 = vector.broadcast %566 : vector<1x256xf32> to vector<4x256xf32>
    %569 = arith.mulf %567, %568 : vector<4x256xf32>
    %570 = arith.addf %564, %569 : vector<4x256xf32>
    %571 = vector.extract_strided_slice %450 {offsets = [0, 10], sizes = [4, 1], strides = [1, 1]} : vector<4x16xf32> to vector<4x1xf32>
    %572 = vector.extract_strided_slice %510 {offsets = [10, 0], sizes = [1, 256], strides = [1, 1]} : vector<16x256xf32> to vector<1x256xf32>
    %573 = vector.broadcast %571 : vector<4x1xf32> to vector<4x256xf32>
    %574 = vector.broadcast %572 : vector<1x256xf32> to vector<4x256xf32>
    %575 = arith.mulf %573, %574 : vector<4x256xf32>
    %576 = arith.addf %570, %575 : vector<4x256xf32>
    %577 = vector.extract_strided_slice %450 {offsets = [0, 11], sizes = [4, 1], strides = [1, 1]} : vector<4x16xf32> to vector<4x1xf32>
    %578 = vector.extract_strided_slice %510 {offsets = [11, 0], sizes = [1, 256], strides = [1, 1]} : vector<16x256xf32> to vector<1x256xf32>
    %579 = vector.broadcast %577 : vector<4x1xf32> to vector<4x256xf32>
    %580 = vector.broadcast %578 : vector<1x256xf32> to vector<4x256xf32>
    %581 = arith.mulf %579, %580 : vector<4x256xf32>
    %582 = arith.addf %576, %581 : vector<4x256xf32>
    %583 = vector.extract_strided_slice %450 {offsets = [0, 12], sizes = [4, 1], strides = [1, 1]} : vector<4x16xf32> to vector<4x1xf32>
    %584 = vector.extract_strided_slice %510 {offsets = [12, 0], sizes = [1, 256], strides = [1, 1]} : vector<16x256xf32> to vector<1x256xf32>
    %585 = vector.broadcast %583 : vector<4x1xf32> to vector<4x256xf32>
    %586 = vector.broadcast %584 : vector<1x256xf32> to vector<4x256xf32>
    %587 = arith.mulf %585, %586 : vector<4x256xf32>
    %588 = arith.addf %582, %587 : vector<4x256xf32>
    %589 = vector.extract_strided_slice %450 {offsets = [0, 13], sizes = [4, 1], strides = [1, 1]} : vector<4x16xf32> to vector<4x1xf32>
    %590 = vector.extract_strided_slice %510 {offsets = [13, 0], sizes = [1, 256], strides = [1, 1]} : vector<16x256xf32> to vector<1x256xf32>
    %591 = vector.broadcast %589 : vector<4x1xf32> to vector<4x256xf32>
    %592 = vector.broadcast %590 : vector<1x256xf32> to vector<4x256xf32>
    %593 = arith.mulf %591, %592 : vector<4x256xf32>
    %594 = arith.addf %588, %593 : vector<4x256xf32>
    %595 = vector.extract_strided_slice %450 {offsets = [0, 14], sizes = [4, 1], strides = [1, 1]} : vector<4x16xf32> to vector<4x1xf32>
    %596 = vector.extract_strided_slice %510 {offsets = [14, 0], sizes = [1, 256], strides = [1, 1]} : vector<16x256xf32> to vector<1x256xf32>
    %597 = vector.broadcast %595 : vector<4x1xf32> to vector<4x256xf32>
    %598 = vector.broadcast %596 : vector<1x256xf32> to vector<4x256xf32>
    %599 = arith.mulf %597, %598 : vector<4x256xf32>
    %600 = arith.addf %594, %599 : vector<4x256xf32>
    %601 = vector.extract_strided_slice %450 {offsets = [0, 15], sizes = [4, 1], strides = [1, 1]} : vector<4x16xf32> to vector<4x1xf32>
    %602 = vector.extract_strided_slice %510 {offsets = [15, 0], sizes = [1, 256], strides = [1, 1]} : vector<16x256xf32> to vector<1x256xf32>
    %603 = vector.broadcast %601 : vector<4x1xf32> to vector<4x256xf32>
    %604 = vector.broadcast %602 : vector<1x256xf32> to vector<4x256xf32>
    %605 = arith.mulf %603, %604 : vector<4x256xf32>
    %606 = arith.addf %600, %605 : vector<4x256xf32>
    %c0_55 = arith.constant 0 : index
    %c0_56 = arith.constant 0 : index
    %c0_57 = arith.constant 0 : index
    %607 = vector.load %arg1[%c0_55, %c0_56, %c0_57] : memref<1x4x256xf32, #tpu.memory_space<vmem>>, vector<1x4x256xf32>
    %608 = vector.shape_cast %607 : vector<1x4x256xf32> to vector<4x256xf32>
    %609 = vector.broadcast %448 : vector<4x1xf32> to vector<4x256xf32>
    %610 = arith.mulf %609, %606 : vector<4x256xf32>
    %611 = arith.addf %608, %610 : vector<4x256xf32>
    %c0_58 = arith.constant 0 : index
    %c0_59 = arith.constant 0 : index
    %c0_60 = arith.constant 0 : index
    %612 = vector.load %arg11[%c0_58, %c0_59, %c0_60] : memref<1x4x256xf32, #tpu.memory_space<vmem>>, vector<1x4x256xf32>
    %613 = vector.shape_cast %612 : vector<1x4x256xf32> to vector<4x256xf32>
    %614 = vector.shape_cast %611 : vector<4x256xf32> to vector<1x4x256xf32>
    tpu.vector_store %arg11[%c0_58, %c0_59, %c0_60], %614 {strides = array<i32>} : memref<1x4x256xf32, #tpu.memory_space<vmem>>, vector<1x4x256xf32>,
    return
  }
  func.func @transform_0(%arg0: i32) -> (i32, i32, i32) {
    %c0_i32 = arith.constant 0 : i32
    %c0_i32_0 = arith.constant 0 : i32
    %c0_i32_1 = arith.constant 0 : i32
    return %arg0, %c0_i32, %c0_i32_0 : i32, i32, i32
  }
  func.func @transform_1(%arg0: i32) -> (i32, i32) {
    %c0_i32 = arith.constant 0 : i32
    %c0_i32_0 = arith.constant 0 : i32
    %c0_i32_1 = arith.constant 0 : i32
    return %c0_i32, %c0_i32_0 : i32, i32
  }
  func.func @transform_2(%arg0: i32) -> (i32, i32) {
    %c0_i32 = arith.constant 0 : i32
    %c0_i32_0 = arith.constant 0 : i32
    %c0_i32_1 = arith.constant 0 : i32
    return %c0_i32, %c0_i32_0 : i32, i32
  }
  func.func @transform_3(%arg0: i32) -> (i32, i32) {
    %c0_i32 = arith.constant 0 : i32
    %c0_i32_0 = arith.constant 0 : i32
    %c0_i32_1 = arith.constant 0 : i32
    return %c0_i32, %c0_i32_0 : i32, i32
  }
  func.func @transform_4(%arg0: i32) -> (i32, i32) {
    %c0_i32 = arith.constant 0 : i32
    %c0_i32_0 = arith.constant 0 : i32
    %c0_i32_1 = arith.constant 0 : i32
    return %c0_i32, %c0_i32_0 : i32, i32
  }
  func.func @transform_5(%arg0: i32) -> (i32, i32) {
    %c0_i32 = arith.constant 0 : i32
    %c0_i32_0 = arith.constant 0 : i32
    %c0_i32_1 = arith.constant 0 : i32
    return %c0_i32, %c0_i32_0 : i32, i32
  }
  func.func @transform_6(%arg0: i32) -> (i32, i32) {
    %c0_i32 = arith.constant 0 : i32
    %c0_i32_0 = arith.constant 0 : i32
    %c0_i32_1 = arith.constant 0 : i32
    return %c0_i32, %c0_i32_0 : i32, i32
  }
  func.func @transform_7(%arg0: i32) -> (i32, i32) {
    %c0_i32 = arith.constant 0 : i32
    %c0_i32_0 = arith.constant 0 : i32
    %c0_i32_1 = arith.constant 0 : i32
    return %c0_i32, %c0_i32_0 : i32, i32
  }
  func.func @transform_8(%arg0: i32) -> (i32, i32) {
    %c0_i32 = arith.constant 0 : i32
    %c0_i32_0 = arith.constant 0 : i32
    %c0_i32_1 = arith.constant 0 : i32
    return %c0_i32, %c0_i32_0 : i32, i32
  }
  func.func @transform_9(%arg0: i32) -> (i32, i32) {
    %c0_i32 = arith.constant 0 : i32
    %c0_i32_0 = arith.constant 0 : i32
    %c0_i32_1 = arith.constant 0 : i32
    return %c0_i32, %c0_i32_0 : i32, i32
  }
  func.func @transform_10(%arg0: i32) -> (i32, i32, i32) {
    %c0_i32 = arith.constant 0 : i32
    %c0_i32_0 = arith.constant 0 : i32
    %c0_i32_1 = arith.constant 0 : i32
    return %arg0, %c0_i32, %c0_i32_0 : i32, i32, i32
  }
}

</mosaic_0001>

<llo_original>
// kernel: convnext_block.1
$region0: #{convnext_block.1}
  #allocation0 [shape = 'u32[]', space=smem, size = 0x4, offset = 0x4, fixed_abs, tag = 'smem constant byte address 0x4 - core index']
  #allocation1 [shape = 'u32[144,128]{1,0:T(1,128)}', space=vmem, size = 0x12000, scoped, tag = 'internal scratch']
  %s0 = inlined_call_operand.vmem [shape: f32[2,4,256], index: 0, kind: input, shape index: {}]
  %s1 = inlined_call_operand.vmem [shape: f32[4,49], index: 1, kind: input, shape index: {}]
  %s2 = inlined_call_operand.vmem [shape: f32[4,1], index: 2, kind: input, shape index: {}]
  %s3 = inlined_call_operand.vmem [shape: f32[4,1], index: 3, kind: input, shape index: {}]
  %s4 = inlined_call_operand.vmem [shape: f32[4,1], index: 4, kind: input, shape index: {}]
  %s5 = inlined_call_operand.vmem [shape: f32[16,4], index: 5, kind: input, shape index: {}]
  %s6 = inlined_call_operand.vmem [shape: f32[16,1], index: 6, kind: input, shape index: {}]
  %s7 = inlined_call_operand.vmem [shape: f32[4,16], index: 7, kind: input, shape index: {}]
  %s8 = inlined_call_operand.vmem [shape: f32[4,1], index: 8, kind: input, shape index: {}]
  %s9 = inlined_call_operand.vmem [shape: f32[4,1], index: 9, kind: input, shape index: {}]
  %s10 = inlined_call_operand.vmem [shape: f32[2,4,256], index: 10, kind: output, shape index: {}]
  %s11 = sld [smem:[#allocation0]]
  $region73: #{convnext_block.1} parent=0
    _
  %s13 = ssub.s32 1, %s11
  %s14 = scalar_select 0, %s13, %s11
  loop: start=0, step=1, limit=4
  $region2: #{convnext_block.1} parent=0 // loop_pre_header
    _
  $region3: #{convnext_block.1} parent=0 // loop_header
    %s16 = sphi 0, %s20
    %p17 = scmp.ge.s32.totalorder %s16, 4
    %s26 = sphi 0, %s28
    %s29 = sphi 0, %s26
    %s30 = sphi 0, %s29
    %s46 = sphi 0, %s30
    %s50 = sphi 0, %s50
    %s52 = sphi 0, %s50
    %s53 = sphi 0, %s52
    %s67 = sphi 0, %s53
    %s71 = sphi 0, %s71
    %s73 = sphi 0, %s71
    %s74 = sphi 0, %s73
    %s88 = sphi 0, %s74
    %s92 = sphi 0, %s92
    %s94 = sphi 0, %s92
    %s95 = sphi 0, %s94
    %s109 = sphi 0, %s95
    %s113 = sphi 0, %s113
    %s115 = sphi 0, %s113
    %s116 = sphi 0, %s115
    %s130 = sphi 0, %s116
    %s134 = sphi 0, %s134
    %s136 = sphi 0, %s134
    %s137 = sphi 0, %s136
    %s151 = sphi 0, %s137
    %s155 = sphi 0, %s155
    %s157 = sphi 0, %s155
    %s158 = sphi 0, %s157
    %s172 = sphi 0, %s158
    %s176 = sphi 0, %s176
    %s178 = sphi 0, %s176
    %s179 = sphi 0, %s178
    %s193 = sphi 0, %s179
    %s197 = sphi 0, %s197
    %s199 = sphi 0, %s197
    %s200 = sphi 0, %s199
    %s214 = sphi 0, %s200
    %s218 = sphi 0, %s218
    %s220 = sphi 0, %s218
    %s221 = sphi 0, %s220
    %s235 = sphi 0, %s221
    %s241 = sphi 0, %s243
    %s244 = sphi 0, %s241
    %s245 = sphi 0, %s244
    %s261 = sphi 0, %s245
  $region4: #{convnext_block.1} parent=0 // loop_header_branch
    %19 = sbr.rel (%p17) target = $region8
  $region5: #{convnext_block.1} parent=0 // loop_body
    %s21 = ssub.s32 %s16, 1
    %s22 = ssub.s32 %s16, 2
    %s23 = sadd.s32 %s16, 1
    %s24 = ssub.s32 %s16, %s23
    %p25 = scmp.eq.s32.totalorder %s24, 0
    %s27 = sadd.s32 %s26, 1
    %s28 = scalar_select %p25, %s26, %s27
    %p31 = pneg %p25
    %p32 = scmp.eq.s32.totalorder %s16, 1
    %p33 = por %p31, %p32
    %p34 = scmp.ne.s32.totalorder %s26, %s29
    %p35 = scmp.eq.s32.totalorder %s16, 0
    %p36 = por %p34, %p35
    %p37 = scmp.ne.s32.totalorder %s26, %s29
    %p38 = scmp.eq.s32.totalorder %s21, 1
    %p39 = por %p37, %p38
    %p40 = scmp.ne.s32.totalorder %s29, %s30
    %p41 = scmp.eq.s32.totalorder %s21, 0
    %p42 = por %p40, %p41
    %p43 = scmp.ne.s32.totalorder %s29, %s30
    %p44 = scmp.eq.s32.totalorder %s22, 1
    %p45 = por %p43, %p44
    %p47 = scmp.ne.s32.totalorder %s30, %s46
    %p48 = scmp.eq.s32.totalorder %s22, 0
    %p49 = por %p47, %p48
    %s51 = sadd.s32 %s50, 1
    %p54 = scmp.eq.s32.totalorder %s16, 1
    %p55 = scmp.ne.s32.totalorder %s50, %s52
    %p56 = scmp.eq.s32.totalorder %s16, 0
    %p57 = por %p55, %p56
    %p58 = scmp.ne.s32.totalorder %s50, %s52
    %p59 = scmp.eq.s32.totalorder %s21, 1
    %p60 = por %p58, %p59
    %p61 = scmp.ne.s32.totalorder %s52, %s53
    %p62 = scmp.eq.s32.totalorder %s21, 0
    %p63 = por %p61, %p62
    %p64 = scmp.ne.s32.totalorder %s52, %s53
    %p65 = scmp.eq.s32.totalorder %s22, 1
    %p66 = por %p64, %p65
    %p68 = scmp.ne.s32.totalorder %s53, %s67
    %p69 = scmp.eq.s32.totalorder %s22, 0
    %p70 = por %p68, %p69
    %s72 = sadd.s32 %s71, 1
    %p75 = scmp.eq.s32.totalorder %s16, 1
    %p76 = scmp.ne.s32.totalorder %s71, %s73
    %p77 = scmp.eq.s32.totalorder %s16, 0
    %p78 = por %p76, %p77
    %p79 = scmp.ne.s32.totalorder %s71, %s73
    %p80 = scmp.eq.s32.totalorder %s21, 1
    %p81 = por %p79, %p80
    %p82 = scmp.ne.s32.totalorder %s73, %s74
    %p83 = scmp.eq.s32.totalorder %s21, 0
    %p84 = por %p82, %p83
    %p85 = scmp.ne.s32.totalorder %s73, %s74
    %p86 = scmp.eq.s32.totalorder %s22, 1
    %p87 = por %p85, %p86
    %p89 = scmp.ne.s32.totalorder %s74, %s88
    %p90 = scmp.eq.s32.totalorder %s22, 0
    %p91 = por %p89, %p90
    %s93 = sadd.s32 %s92, 1
    %p96 = scmp.eq.s32.totalorder %s16, 1
    %p97 = scmp.ne.s32.totalorder %s92, %s94
    %p98 = scmp.eq.s32.totalorder %s16, 0
    %p99 = por %p97, %p98
    %p100 = scmp.ne.s32.totalorder %s92, %s94
    %p101 = scmp.eq.s32.totalorder %s21, 1
    %p102 = por %p100, %p101
    %p103 = scmp.ne.s32.totalorder %s94, %s95
    %p104 = scmp.eq.s32.totalorder %s21, 0
    %p105 = por %p103, %p104
    %p106 = scmp.ne.s32.totalorder %s94, %s95
    %p107 = scmp.eq.s32.totalorder %s22, 1
    %p108 = por %p106, %p107
    %p110 = scmp.ne.s32.totalorder %s95, %s109
    %p111 = scmp.eq.s32.totalorder %s22, 0
    %p112 = por %p110, %p111
    %s114 = sadd.s32 %s113, 1
    %p117 = scmp.eq.s32.totalorder %s16, 1
    %p118 = scmp.ne.s32.totalorder %s113, %s115
    %p119 = scmp.eq.s32.totalorder %s16, 0
    %p120 = por %p118, %p119
    %p121 = scmp.ne.s32.totalorder %s113, %s115
    %p122 = scmp.eq.s32.totalorder %s21, 1
    %p123 = por %p121, %p122
    %p124 = scmp.ne.s32.totalorder %s115, %s116
    %p125 = scmp.eq.s32.totalorder %s21, 0
    %p126 = por %p124, %p125
    %p127 = scmp.ne.s32.totalorder %s115, %s116
    %p128 = scmp.eq.s32.totalorder %s22, 1
    %p129 = por %p127, %p128
    %p131 = scmp.ne.s32.totalorder %s116, %s130
    %p132 = scmp.eq.s32.totalorder %s22, 0
    %p133 = por %p131, %p132
    %s135 = sadd.s32 %s134, 1
    %p138 = scmp.eq.s32.totalorder %s16, 1
    %p139 = scmp.ne.s32.totalorder %s134, %s136
    %p140 = scmp.eq.s32.totalorder %s16, 0
    %p141 = por %p139, %p140
    %p142 = scmp.ne.s32.totalorder %s134, %s136
    %p143 = scmp.eq.s32.totalorder %s21, 1
    %p144 = por %p142, %p143
    %p145 = scmp.ne.s32.totalorder %s136, %s137
    %p146 = scmp.eq.s32.totalorder %s21, 0
    %p147 = por %p145, %p146
    %p148 = scmp.ne.s32.totalorder %s136, %s137
    %p149 = scmp.eq.s32.totalorder %s22, 1
    %p150 = por %p148, %p149
    %p152 = scmp.ne.s32.totalorder %s137, %s151
    %p153 = scmp.eq.s32.totalorder %s22, 0
    %p154 = por %p152, %p153
    %s156 = sadd.s32 %s155, 1
    %p159 = scmp.eq.s32.totalorder %s16, 1
    %p160 = scmp.ne.s32.totalorder %s155, %s157
    %p161 = scmp.eq.s32.totalorder %s16, 0
    %p162 = por %p160, %p161
    %p163 = scmp.ne.s32.totalorder %s155, %s157
    %p164 = scmp.eq.s32.totalorder %s21, 1
    %p165 = por %p163, %p164
    %p166 = scmp.ne.s32.totalorder %s157, %s158
    %p167 = scmp.eq.s32.totalorder %s21, 0
    %p168 = por %p166, %p167
    %p169 = scmp.ne.s32.totalorder %s157, %s158
    %p170 = scmp.eq.s32.totalorder %s22, 1
    %p171 = por %p169, %p170
    %p173 = scmp.ne.s32.totalorder %s158, %s172
    %p174 = scmp.eq.s32.totalorder %s22, 0
    %p175 = por %p173, %p174
    %s177 = sadd.s32 %s176, 1
    %p180 = scmp.eq.s32.totalorder %s16, 1
    %p181 = scmp.ne.s32.totalorder %s176, %s178
    %p182 = scmp.eq.s32.totalorder %s16, 0
    %p183 = por %p181, %p182
    %p184 = scmp.ne.s32.totalorder %s176, %s178
    %p185 = scmp.eq.s32.totalorder %s21, 1
    %p186 = por %p184, %p185
    %p187 = scmp.ne.s32.totalorder %s178, %s179
    %p188 = scmp.eq.s32.totalorder %s21, 0
    %p189 = por %p187, %p188
    %p190 = scmp.ne.s32.totalorder %s178, %s179
    %p191 = scmp.eq.s32.totalorder %s22, 1
    %p192 = por %p190, %p191
    %p194 = scmp.ne.s32.totalorder %s179, %s193
    %p195 = scmp.eq.s32.totalorder %s22, 0
    %p196 = por %p194, %p195
    %s198 = sadd.s32 %s197, 1
    %p201 = scmp.eq.s32.totalorder %s16, 1
    %p202 = scmp.ne.s32.totalorder %s197, %s199
    %p203 = scmp.eq.s32.totalorder %s16, 0
    %p204 = por %p202, %p203
    %p205 = scmp.ne.s32.totalorder %s197, %s199
    %p206 = scmp.eq.s32.totalorder %s21, 1
    %p207 = por %p205, %p206
    %p208 = scmp.ne.s32.totalorder %s199, %s200
    %p209 = scmp.eq.s32.totalorder %s21, 0
    %p210 = por %p208, %p209
    %p211 = scmp.ne.s32.totalorder %s199, %s200
    %p212 = scmp.eq.s32.totalorder %s22, 1
    %p213 = por %p211, %p212
    %p215 = scmp.ne.s32.totalorder %s200, %s214
    %p216 = scmp.eq.s32.totalorder %s22, 0
    %p217 = por %p215, %p216
    %s219 = sadd.s32 %s218, 1
    %p222 = scmp.eq.s32.totalorder %s16, 1
    %p223 = scmp.ne.s32.totalorder %s218, %s220
    %p224 = scmp.eq.s32.totalorder %s16, 0
    %p225 = por %p223, %p224
    %p226 = scmp.ne.s32.totalorder %s218, %s220
    %p227 = scmp.eq.s32.totalorder %s21, 1
    %p228 = por %p226, %p227
    %p229 = scmp.ne.s32.totalorder %s220, %s221
    %p230 = scmp.eq.s32.totalorder %s21, 0
    %p231 = por %p229, %p230
    %p232 = scmp.ne.s32.totalorder %s220, %s221
    %p233 = scmp.eq.s32.totalorder %s22, 1
    %p234 = por %p232, %p233
    %p236 = scmp.ne.s32.totalorder %s221, %s235
    %p237 = scmp.eq.s32.totalorder %s22, 0
    %p238 = por %p236, %p237
    %s239 = ssub.s32 %s16, %s23
    %p240 = scmp.eq.s32.totalorder %s239, 0
    %s242 = sadd.s32 %s241, 1
    %s243 = scalar_select %p240, %s241, %s242
    %p246 = pneg %p240
    %p247 = scmp.eq.s32.totalorder %s16, 1
    %p248 = por %p246, %p247
    %p249 = scmp.ne.s32.totalorder %s241, %s244
    %p250 = scmp.eq.s32.totalorder %s16, 0
    %p251 = por %p249, %p250
    %p252 = scmp.ne.s32.totalorder %s241, %s244
    %p253 = scmp.eq.s32.totalorder %s21, 1
    %p254 = por %p252, %p253
    %p255 = scmp.ne.s32.totalorder %s244, %s245
    %p256 = scmp.eq.s32.totalorder %s21, 0
    %p257 = por %p255, %p256
    %p258 = scmp.ne.s32.totalorder %s244, %s245
    %p259 = scmp.eq.s32.totalorder %s22, 1
    %p260 = por %p258, %p259
    %p262 = scmp.ne.s32.totalorder %s245, %s261
    %p263 = scmp.eq.s32.totalorder %s22, 0
    %p264 = por %p262, %p263
    %p265 = scmp.le.s32.totalorder 1, %s16
    %p266 = scmp.lt.s32.totalorder %s16, 3
    %p267 = pnand %p265, %p266
    %p268 = pneg %p267
    // Predicated region
    $region9: #{convnext_block.1} parent=5 // pred_check
      _
    $region10: #{convnext_block.1} parent=5 // pred_check_branch
      %270 = sbr.rel (%p267) target = $region12
    $region11: #{convnext_block.1} parent=5 // pred_region
      %s271 = ssub.s32 %s16, 1
      // Predicated region
      $region13: #{convnext_block.1} parent=11 // pred_check
        %p272 = pneg %p63
      $region14: #{convnext_block.1} parent=11 // pred_check_branch
        %274 = sbr.rel (%p272) target = $region16
      $region15: #{convnext_block.1} parent=11 // pred_region
        _
      $region16: #{convnext_block.1} parent=11 // pred_fallthru
        _
      // Predicated region
      $region17: #{convnext_block.1} parent=11 // pred_check
        %p275 = pneg %p84
      $region18: #{convnext_block.1} parent=11 // pred_check_branch
        %277 = sbr.rel (%p275) target = $region20
      $region19: #{convnext_block.1} parent=11 // pred_region
        _
      $region20: #{convnext_block.1} parent=11 // pred_fallthru
        _
      // Predicated region
      $region21: #{convnext_block.1} parent=11 // pred_check
        %p278 = pneg %p105
      $region22: #{convnext_block.1} parent=11 // pred_check_branch
        %280 = sbr.rel (%p278) target = $region24
      $region23: #{convnext_block.1} parent=11 // pred_region
        _
      $region24: #{convnext_block.1} parent=11 // pred_fallthru
        _
      // Predicated region
      $region25: #{convnext_block.1} parent=11 // pred_check
        %p281 = pneg %p126
      $region26: #{convnext_block.1} parent=11 // pred_check_branch
        %283 = sbr.rel (%p281) target = $region28
      $region27: #{convnext_block.1} parent=11 // pred_region
        _
      $region28: #{convnext_block.1} parent=11 // pred_fallthru
        _
      // Predicated region
      $region29: #{convnext_block.1} parent=11 // pred_check
        %p284 = pneg %p147
      $region30: #{convnext_block.1} parent=11 // pred_check_branch
        %286 = sbr.rel (%p284) target = $region32
      $region31: #{convnext_block.1} parent=11 // pred_region
        _
      $region32: #{convnext_block.1} parent=11 // pred_fallthru
        _
      // Predicated region
      $region33: #{convnext_block.1} parent=11 // pred_check
        %p287 = pneg %p168
      $region34: #{convnext_block.1} parent=11 // pred_check_branch
        %289 = sbr.rel (%p287) target = $region36
      $region35: #{convnext_block.1} parent=11 // pred_region
        _
      $region36: #{convnext_block.1} parent=11 // pred_fallthru
        _
      // Predicated region
      $region37: #{convnext_block.1} parent=11 // pred_check
        %p290 = pneg %p189
      $region38: #{convnext_block.1} parent=11 // pred_check_branch
        %292 = sbr.rel (%p290) target = $region40
      $region39: #{convnext_block.1} parent=11 // pred_region
        _
      $region40: #{convnext_block.1} parent=11 // pred_fallthru
        _
      // Predicated region
      $region41: #{convnext_block.1} parent=11 // pred_check
        %p293 = pneg %p210
      $region42: #{convnext_block.1} parent=11 // pred_check_branch
        %295 = sbr.rel (%p293) target = $region44
      $region43: #{convnext_block.1} parent=11 // pred_region
        _
      $region44: #{convnext_block.1} parent=11 // pred_fallthru
        _
      // Predicated region
      $region45: #{convnext_block.1} parent=11 // pred_check
        %p296 = pneg %p231
      $region46: #{convnext_block.1} parent=11 // pred_check_branch
        %298 = sbr.rel (%p296) target = $region48
      $region47: #{convnext_block.1} parent=11 // pred_region
        _
      $region48: #{convnext_block.1} parent=11 // pred_fallthru
        _
    $region12: #{convnext_block.1} parent=5 // pred_fallthru
      _
    %p299 = scmp.lt.s32.totalorder %s16, 2
    // Predicated region
    $region49: #{convnext_block.1} parent=5 // pred_check
      %p300 = pneg %p299
    $region50: #{convnext_block.1} parent=5 // pred_check_branch
      %302 = sbr.rel (%p300) target = $region52
    $region51: #{convnext_block.1} parent=5 // pred_region
      // Predicated region
      $region53: #{convnext_block.1} parent=51 // pred_check
        %p303 = pneg %p36
      $region54: #{convnext_block.1} parent=51 // pred_check_branch
        %305 = sbr.rel (%p303) target = $region56
      $region55: #{convnext_block.1} parent=51 // pred_region
        %p306 = scmp.lt.s32.totalorder %s16, 1
        %s307 = scalar_select %p306, %s16, 1
        %s308 = smul.addr %s307, 2
        %s309 = smul.addr %s308, 4
        %s310 = scalar_lea.vmem %s0, %s309
      $region56: #{convnext_block.1} parent=51 // pred_fallthru
        _
    $region52: #{convnext_block.1} parent=5 // pred_fallthru
      _
    %p311 = scmp.le.s32.totalorder 1, %s16
    %p312 = scmp.lt.s32.totalorder %s16, 3
    %p313 = pnand %p311, %p312
    %p314 = pneg %p313
    // Predicated region
    $region57: #{convnext_block.1} parent=5 // pred_check
      _
    $region58: #{convnext_block.1} parent=5 // pred_check_branch
      %316 = sbr.rel (%p313) target = $region60
    $region59: #{convnext_block.1} parent=5 // pred_region
      %s317 = ssub.s32 %s16, 1
      %p318 = scmp.lt.s32.totalorder %s21, 1
      %s319 = scalar_select %p318, %s21, 1
      %s320 = smul.addr %s319, 2
      %s321 = smul.addr %s320, 4
      %s322 = scalar_lea.vmem %s0, %s321
      %p323 = pneg %p42
      %p324 = pneg %p39
      %p325 = pneg %p63
      %p326 = pneg %p60
      %p327 = pneg %p84
      %p328 = pneg %p81
      %p329 = pneg %p105
      %p330 = pneg %p102
      %p331 = pneg %p126
      %p332 = pneg %p123
      %p333 = pneg %p147
      %p334 = pneg %p144
      %p335 = pneg %p168
      %p336 = pneg %p165
      %p337 = pneg %p189
      %p338 = pneg %p186
      %p339 = pneg %p210
      %p340 = pneg %p207
      %p341 = pneg %p231
      %p342 = pneg %p228
      %p343 = pneg %p257
      %p344 = pneg %p254
      %p345 = scmp.lt.s32.totalorder %s21, 1
      %s346 = scalar_select %p345, %s21, 1
      %s347 = smul.addr %s346, 2
      %s348 = smul.addr %s347, 4
      %s349 = scalar_lea.vmem %s10, %s348
      %p350 = scmp.lt.s32.totalorder %s21, 1
      %s351 = scalar_select %p350, %s21, 1
      %s352 = smul.addr %s351, 2
      %s353 = smul.addr %s352, 4
      %s354 = scalar_lea.vmem %s0, %s353
      %p355 = scmp.lt.s32.totalorder %s21, 1
      %s356 = scalar_select %p355, %s21, 1
      %s357 = smul.addr %s356, 2
      %s358 = smul.addr %s357, 4
      %s359 = scalar_lea.vmem %s10, %s358
      %v360 = vld [vmem:[%s354] sm:$0xff]
      %v362 = vcombine.high %v360, %v360
      %v364 = vlaneseq
      %v365 = vand.u32 %v364, 127
      %v366 = vadd.s32 %v365, 128
      %vm367 = vcmp.lt.s32.totalorder %v365, 0
      %v368 = vsub.s32 0, %v365
      %v369 = vsel %vm367, %v368, %v365
      %v370 = vshrl.u32 %v369, 4
      %v371 = vand.u32 %v369, 15
      %v372 = vsub.s32 0, %v371
      %v373 = vsel %vm367, %v372, %v371
      %vm374 = vcmp.lt.s32.totalorder %v366, 0
      %v375 = vsub.s32 0, %v366
      %v376 = vsel %vm374, %v375, %v366
      %v377 = vshrl.u32 %v376, 4
      %v378 = vand.u32 %v376, 15
      %v379 = vsub.s32 0, %v378
      %v380 = vsel %vm374, %v379, %v378
      %vm381 = vcmp.ne.s32.totalorder %v373, 0
      %vm382 = vcmp.ne.s32.totalorder %v380, 0
      %vm383 = vcmp.lt.s32.totalorder %v373, 0
      %vm384 = vcmp.lt.s32.totalorder %v380, 0
      %vm385 = vmand %vm383, %vm381
      %vm386 = vmand %vm384, %vm382
      %v387 = vadd.s32 %v373, 16
      %v388 = vadd.s32 %v380, 16
      %v389 = vsel %vm385, %v387, %v373
      %v390 = vsel %vm386, %v388, %v380
      %v391 = vadd.s32 %v389, 4294967293
      %v392 = vadd.s32 %v390, 4294967293
      %vm393 = vcmp.ge.s32.totalorder %v391, 0
      %vm394 = vcmp.ge.s32.totalorder %v392, 0
      %vm395 = vcmp.lt.s32.totalorder %v391, 16
      %vm396 = vcmp.lt.s32.totalorder %v392, 16
      %vm397 = vmand %vm393, %vm395
      %vm398 = vmand %vm394, %vm396
      %v399 = vsel %vm397, 1, 0
      %v400 = vsel %vm398, 1, 0
      %v401 = vcvt.s32.f32 %v399
      %v402 = vcvt.s32.f32 %v400
      %v403 = vadd.s32 %v389, 4294967294
      %v404 = vadd.s32 %v390, 4294967294
      %vm405 = vcmp.ge.s32.totalorder %v403, 0
      %vm406 = vcmp.ge.s32.totalorder %v404, 0
      %vm407 = vcmp.lt.s32.totalorder %v403, 16
      %vm408 = vcmp.lt.s32.totalorder %v404, 16
      %vm409 = vmand %vm405, %vm407
      %vm410 = vmand %vm406, %vm408
      %v411 = vsel %vm409, 1, 0
      %v412 = vsel %vm410, 1, 0
      %v413 = vcvt.s32.f32 %v411
      %v414 = vcvt.s32.f32 %v412
      %v415 = vadd.s32 %v389, 4294967295
      %v416 = vadd.s32 %v390, 4294967295
      %vm417 = vcmp.ge.s32.totalorder %v415, 0
      %vm418 = vcmp.ge.s32.totalorder %v416, 0
      %vm419 = vcmp.lt.s32.totalorder %v415, 16
      %vm420 = vcmp.lt.s32.totalorder %v416, 16
      %vm421 = vmand %vm417, %vm419
      %vm422 = vmand %vm418, %vm420
      %v423 = vsel %vm421, 1, 0
      %v424 = vsel %vm422, 1, 0
      %v425 = vcvt.s32.f32 %v423
      %v426 = vcvt.s32.f32 %v424
      %vm427 = vcmp.ge.s32.totalorder %v389, 0
      %vm428 = vcmp.ge.s32.totalorder %v390, 0
      %vm429 = vcmp.lt.s32.totalorder %v389, 16
      %vm430 = vcmp.lt.s32.totalorder %v390, 16
      %vm431 = vmand %vm427, %vm429
      %vm432 = vmand %vm428, %vm430
      %v433 = vsel %vm431, 1, 0
      %v434 = vsel %vm432, 1, 0
      %v435 = vcvt.s32.f32 %v433
      %v436 = vcvt.s32.f32 %v434
      %v437 = vadd.s32 %v389, 1
      %v438 = vadd.s32 %v390, 1
      %vm439 = vcmp.ge.s32.totalorder %v437, 0
      %vm440 = vcmp.ge.s32.totalorder %v438, 0
      %vm441 = vcmp.lt.s32.totalorder %v437, 16
      %vm442 = vcmp.lt.s32.totalorder %v438, 16
      %vm443 = vmand %vm439, %vm441
      %vm444 = vmand %vm440, %vm442
      %v445 = vsel %vm443, 1, 0
      %v446 = vsel %vm444, 1, 0
      %v447 = vcvt.s32.f32 %v445
      %v448 = vcvt.s32.f32 %v446
      %v449 = vadd.s32 %v389, 2
      %v450 = vadd.s32 %v390, 2
      %vm451 = vcmp.ge.s32.totalorder %v449, 0
      %vm452 = vcmp.ge.s32.totalorder %v450, 0
      %vm453 = vcmp.lt.s32.totalorder %v449, 16
      %vm454 = vcmp.lt.s32.totalorder %v450, 16
      %vm455 = vmand %vm451, %vm453
      %vm456 = vmand %vm452, %vm454
      %v457 = vsel %vm455, 1, 0
      %v458 = vsel %vm456, 1, 0
      %v459 = vcvt.s32.f32 %v457
      %v460 = vcvt.s32.f32 %v458
      %v461 = vadd.s32 %v389, 3
      %v462 = vadd.s32 %v390, 3
      %vm463 = vcmp.ge.s32.totalorder %v461, 0
      %vm464 = vcmp.ge.s32.totalorder %v462, 0
      %vm465 = vcmp.lt.s32.totalorder %v461, 16
      %vm466 = vcmp.lt.s32.totalorder %v462, 16
      %vm467 = vmand %vm463, %vm465
      %vm468 = vmand %vm464, %vm466
      %v469 = vsel %vm467, 1, 0
      %v470 = vsel %vm468, 1, 0
      %v471 = vcvt.s32.f32 %v469
      %v472 = vcvt.s32.f32 %v470
      %v473 = vld [vmem:[%s1] sm:$0xf]
      %476 = vrot.lane.b32.xlu0 %v401, 77
      %v477 = vpop.permute.xlu0 %476
      %478 = vrot.lane.b32.xlu0 %v402, 77
      %v479 = vpop.permute.xlu0 %478
      %vm480 = vcmask 629760
      %v481 = vsel %vm480, %v477, %v479
      %v485 = vmul.f32 %v477, 0.0
      %v486 = vmul.f32 %v360, %v481
      %v487 = vmul.f32 %v362, %v479
      %489 = vset.pattern.permute.xlu0 0
      %490 = vperm.xlu0 %489, %v473
      %v491 = vpop.permute.xlu0 %490
      %v493 = vmul.f32 %v485, %v491
      %v494 = vmul.f32 %v486, %v491
      %v495 = vmul.f32 %v487, %v491
      %v496 = vadd.f32 %v493, 0.0
      %v497 = vadd.f32 %v494, 0.0
      %v498 = vadd.f32 %v495, 0.0
      %501 = vrot.lane.b32.xlu0 %v413, 78
      %v502 = vpop.permute.xlu0 %501
      %503 = vrot.lane.b32.xlu0 %v414, 78
      %v504 = vpop.permute.xlu0 %503
      %vm505 = vcmask 637952
      %v506 = vsel %vm505, %v502, %v504
      %v510 = vmul.f32 %v502, 0.0
      %v511 = vmul.f32 %v360, %v506
      %v512 = vmul.f32 %v362, %v504
      %513 = vset.pattern.permute.xlu0 1
      %514 = vperm.xlu0 %513, %v473
      %v515 = vpop.permute.xlu0 %514
      %v517 = vmul.f32 %v510, %v515
      %v518 = vmul.f32 %v511, %v515
      %v519 = vmul.f32 %v512, %v515
      %523 = vrot.lane.b32.xlu0 %v517, 127
      %v524 = vpop.permute.xlu0 %523
      %525 = vrot.lane.b32.xlu0 %v518, 127
      %v526 = vpop.permute.xlu0 %525
      %527 = vrot.lane.b32.xlu0 %v519, 127
      %v528 = vpop.permute.xlu0 %527
      %vm529 = vcmask 1039360
      %v530 = vsel %vm529, %v524, %v526
      %v531 = vsel %vm529, %v526, %v528
      %v535 = vadd.f32 %v496, %v530
      %v536 = vadd.f32 %v497, %v531
      %v537 = vadd.f32 %v498, %v528
      %540 = vrot.lane.b32.xlu0 %v425, 79
      %v541 = vpop.permute.xlu0 %540
      %542 = vrot.lane.b32.xlu0 %v426, 79
      %v543 = vpop.permute.xlu0 %542
      %vm544 = vcmask 646144
      %v545 = vsel %vm544, %v541, %v543
      %v549 = vmul.f32 %v541, 0.0
      %v550 = vmul.f32 %v360, %v545
      %v551 = vmul.f32 %v362, %v543
      %552 = vset.pattern.permute.xlu0 2
      %553 = vperm.xlu0 %552, %v473
      %v554 = vpop.permute.xlu0 %553
      %v556 = vmul.f32 %v549, %v554
      %v557 = vmul.f32 %v550, %v554
      %v558 = vmul.f32 %v551, %v554
      %562 = vrot.lane.b32.xlu0 %v556, 126
      %v563 = vpop.permute.xlu0 %562
      %564 = vrot.lane.b32.xlu0 %v557, 126
      %v565 = vpop.permute.xlu0 %564
      %566 = vrot.lane.b32.xlu0 %v558, 126
      %v567 = vpop.permute.xlu0 %566
      %vm568 = vcmask 1031168
      %v569 = vsel %vm568, %v563, %v565
      %v570 = vsel %vm568, %v565, %v567
      %v574 = vadd.f32 %v535, %v569
      %v575 = vadd.f32 %v536, %v570
      %v576 = vadd.f32 %v537, %v567
      %579 = vrot.lane.b32.xlu0 %v435, 80
      %v580 = vpop.permute.xlu0 %579
      %581 = vrot.lane.b32.xlu0 %v436, 80
      %v582 = vpop.permute.xlu0 %581
      %vm583 = vcmask 654336
      %v584 = vsel %vm583, %v580, %v582
      %v588 = vmul.f32 %v580, 0.0
      %v589 = vmul.f32 %v360, %v584
      %v590 = vmul.f32 %v362, %v582
      %591 = vset.pattern.permute.xlu0 3
      %592 = vperm.xlu0 %591, %v473
      %v593 = vpop.permute.xlu0 %592
      %v595 = vmul.f32 %v588, %v593
      %v596 = vmul.f32 %v589, %v593
      %v597 = vmul.f32 %v590, %v593
      %601 = vrot.lane.b32.xlu0 %v595, 125
      %v602 = vpop.permute.xlu0 %601
      %603 = vrot.lane.b32.xlu0 %v596, 125
      %v604 = vpop.permute.xlu0 %603
      %605 = vrot.lane.b32.xlu0 %v597, 125
      %v606 = vpop.permute.xlu0 %605
      %vm607 = vcmask 1022976
      %v608 = vsel %vm607, %v602, %v604
      %v609 = vsel %vm607, %v604, %v606
      %v613 = vadd.f32 %v574, %v608
      %v614 = vadd.f32 %v575, %v609
      %v615 = vadd.f32 %v576, %v606
      %618 = vrot.lane.b32.xlu0 %v447, 81
      %v619 = vpop.permute.xlu0 %618
      %620 = vrot.lane.b32.xlu0 %v448, 81
      %v621 = vpop.permute.xlu0 %620
      %vm622 = vcmask 662528
      %v623 = vsel %vm622, %v619, %v621
      %v627 = vmul.f32 %v619, 0.0
      %v628 = vmul.f32 %v360, %v623
      %v629 = vmul.f32 %v362, %v621
      %630 = vset.pattern.permute.xlu0 4
      %631 = vperm.xlu0 %630, %v473
      %v632 = vpop.permute.xlu0 %631
      %v634 = vmul.f32 %v627, %v632
      %v635 = vmul.f32 %v628, %v632
      %v636 = vmul.f32 %v629, %v632
      %640 = vrot.lane.b32.xlu0 %v634, 124
      %v641 = vpop.permute.xlu0 %640
      %642 = vrot.lane.b32.xlu0 %v635, 124
      %v643 = vpop.permute.xlu0 %642
      %644 = vrot.lane.b32.xlu0 %v636, 124
      %v645 = vpop.permute.xlu0 %644
      %vm646 = vcmask 1014784
      %v647 = vsel %vm646, %v641, %v643
      %v648 = vsel %vm646, %v643, %v645
      %v652 = vadd.f32 %v613, %v647
      %v653 = vadd.f32 %v614, %v648
      %v654 = vadd.f32 %v615, %v645
      %657 = vrot.lane.b32.xlu0 %v459, 82
      %v658 = vpop.permute.xlu0 %657
      %659 = vrot.lane.b32.xlu0 %v460, 82
      %v660 = vpop.permute.xlu0 %659
      %vm661 = vcmask 670720
      %v662 = vsel %vm661, %v658, %v660
      %v666 = vmul.f32 %v658, 0.0
      %v667 = vmul.f32 %v360, %v662
      %v668 = vmul.f32 %v362, %v660
      %669 = vset.pattern.permute.xlu0 5
      %670 = vperm.xlu0 %669, %v473
      %v671 = vpop.permute.xlu0 %670
      %v673 = vmul.f32 %v666, %v671
      %v674 = vmul.f32 %v667, %v671
      %v675 = vmul.f32 %v668, %v671
      %679 = vrot.lane.b32.xlu0 %v673, 123
      %v680 = vpop.permute.xlu0 %679
      %681 = vrot.lane.b32.xlu0 %v674, 123
      %v682 = vpop.permute.xlu0 %681
      %683 = vrot.lane.b32.xlu0 %v675, 123
      %v684 = vpop.permute.xlu0 %683
      %vm685 = vcmask 1006592
      %v686 = vsel %vm685, %v680, %v682
      %v687 = vsel %vm685, %v682, %v684
      %v691 = vadd.f32 %v652, %v686
      %v692 = vadd.f32 %v653, %v687
      %v693 = vadd.f32 %v654, %v684
      %696 = vrot.lane.b32.xlu0 %v471, 83
      %v697 = vpop.permute.xlu0 %696
      %698 = vrot.lane.b32.xlu0 %v472, 83
      %v699 = vpop.permute.xlu0 %698
      %vm700 = vcmask 678912
      %v701 = vsel %vm700, %v697, %v699
      %v705 = vmul.f32 %v697, 0.0
      %v706 = vmul.f32 %v360, %v701
      %v707 = vmul.f32 %v362, %v699
      %708 = vset.pattern.permute.xlu0 6
      %709 = vperm.xlu0 %708, %v473
      %v710 = vpop.permute.xlu0 %709
      %v712 = vmul.f32 %v705, %v710
      %v713 = vmul.f32 %v706, %v710
      %v714 = vmul.f32 %v707, %v710
      %718 = vrot.lane.b32.xlu0 %v712, 122
      %v719 = vpop.permute.xlu0 %718
      %720 = vrot.lane.b32.xlu0 %v713, 122
      %v721 = vpop.permute.xlu0 %720
      %722 = vrot.lane.b32.xlu0 %v714, 122
      %v723 = vpop.permute.xlu0 %722
      %vm724 = vcmask 998400
      %v725 = vsel %vm724, %v719, %v721
      %v726 = vsel %vm724, %v721, %v723
      %v730 = vadd.f32 %v691, %v725
      %v731 = vadd.f32 %v692, %v726
      %v732 = vadd.f32 %v693, %v723
      %733 = vrot.lane.b32.xlu0 %v401, 93
      %v734 = vpop.permute.xlu0 %733
      %735 = vrot.lane.b32.xlu0 %v402, 93
      %v736 = vpop.permute.xlu0 %735
      %vm737 = vcmask 760832
      %v738 = vsel %vm737, %v734, %v736
      %v742 = vmul.f32 %v734, 0.0
      %v743 = vmul.f32 %v360, %v738
      %v744 = vmul.f32 %v362, %v736
      %745 = vset.pattern.permute.xlu0 7
      %746 = vperm.xlu0 %745, %v473
      %v747 = vpop.permute.xlu0 %746
      %v749 = vmul.f32 %v742, %v747
      %v750 = vmul.f32 %v743, %v747
      %v751 = vmul.f32 %v744, %v747
      %755 = vrot.lane.b32.xlu0 %v749, 112
      %v756 = vpop.permute.xlu0 %755
      %757 = vrot.lane.b32.xlu0 %v750, 112
      %v758 = vpop.permute.xlu0 %757
      %759 = vrot.lane.b32.xlu0 %v751, 112
      %v760 = vpop.permute.xlu0 %759
      %vm761 = vcmask 916480
      %v762 = vsel %vm761, %v756, %v758
      %v763 = vsel %vm761, %v758, %v760
      %v767 = vadd.f32 %v730, %v762
      %v768 = vadd.f32 %v731, %v763
      %v769 = vadd.f32 %v732, %v760
      %770 = vrot.lane.b32.xlu0 %v413, 94
      %v771 = vpop.permute.xlu0 %770
      %772 = vrot.lane.b32.xlu0 %v414, 94
      %v773 = vpop.permute.xlu0 %772
      %vm774 = vcmask 769024
      %v775 = vsel %vm774, %v771, %v773
      %v779 = vmul.f32 %v771, 0.0
      %v780 = vmul.f32 %v360, %v775
      %v781 = vmul.f32 %v362, %v773
      %782 = vset.pattern.permute.xlu0 8
      %783 = vperm.xlu0 %782, %v473
      %v784 = vpop.permute.xlu0 %783
      %v786 = vmul.f32 %v779, %v784
      %v787 = vmul.f32 %v780, %v784
      %v788 = vmul.f32 %v781, %v784
      %792 = vrot.lane.b32.xlu0 %v786, 111
      %v793 = vpop.permute.xlu0 %792
      %794 = vrot.lane.b32.xlu0 %v787, 111
      %v795 = vpop.permute.xlu0 %794
      %796 = vrot.lane.b32.xlu0 %v788, 111
      %v797 = vpop.permute.xlu0 %796
      %vm798 = vcmask 908288
      %v799 = vsel %vm798, %v793, %v795
      %v800 = vsel %vm798, %v795, %v797
      %v804 = vadd.f32 %v767, %v799
      %v805 = vadd.f32 %v768, %v800
      %v806 = vadd.f32 %v769, %v797
      %807 = vrot.lane.b32.xlu0 %v425, 95
      %v808 = vpop.permute.xlu0 %807
      %809 = vrot.lane.b32.xlu0 %v426, 95
      %v810 = vpop.permute.xlu0 %809
      %vm811 = vcmask 777216
      %v812 = vsel %vm811, %v808, %v810
      %v816 = vmul.f32 %v808, 0.0
      %v817 = vmul.f32 %v360, %v812
      %v818 = vmul.f32 %v362, %v810
      %819 = vset.pattern.permute.xlu0 9
      %820 = vperm.xlu0 %819, %v473
      %v821 = vpop.permute.xlu0 %820
      %v823 = vmul.f32 %v816, %v821
      %v824 = vmul.f32 %v817, %v821
      %v825 = vmul.f32 %v818, %v821
      %829 = vrot.lane.b32.xlu0 %v823, 110
      %v830 = vpop.permute.xlu0 %829
      %831 = vrot.lane.b32.xlu0 %v824, 110
      %v832 = vpop.permute.xlu0 %831
      %833 = vrot.lane.b32.xlu0 %v825, 110
      %v834 = vpop.permute.xlu0 %833
      %vm835 = vcmask 900096
      %v836 = vsel %vm835, %v830, %v832
      %v837 = vsel %vm835, %v832, %v834
      %v841 = vadd.f32 %v804, %v836
      %v842 = vadd.f32 %v805, %v837
      %v843 = vadd.f32 %v806, %v834
      %844 = vrot.lane.b32.xlu0 %v435, 96
      %v845 = vpop.permute.xlu0 %844
      %846 = vrot.lane.b32.xlu0 %v436, 96
      %v847 = vpop.permute.xlu0 %846
      %vm848 = vcmask 785408
      %v849 = vsel %vm848, %v845, %v847
      %v853 = vmul.f32 %v845, 0.0
      %v854 = vmul.f32 %v360, %v849
      %v855 = vmul.f32 %v362, %v847
      %856 = vset.pattern.permute.xlu0 10
      %857 = vperm.xlu0 %856, %v473
      %v858 = vpop.permute.xlu0 %857
      %v860 = vmul.f32 %v853, %v858
      %v861 = vmul.f32 %v854, %v858
      %v862 = vmul.f32 %v855, %v858
      %866 = vrot.lane.b32.xlu0 %v860, 109
      %v867 = vpop.permute.xlu0 %866
      %868 = vrot.lane.b32.xlu0 %v861, 109
      %v869 = vpop.permute.xlu0 %868
      %870 = vrot.lane.b32.xlu0 %v862, 109
      %v871 = vpop.permute.xlu0 %870
      %vm872 = vcmask 891904
      %v873 = vsel %vm872, %v867, %v869
      %v874 = vsel %vm872, %v869, %v871
      %v878 = vadd.f32 %v841, %v873
      %v879 = vadd.f32 %v842, %v874
      %v880 = vadd.f32 %v843, %v871
      %881 = vrot.lane.b32.xlu0 %v447, 97
      %v882 = vpop.permute.xlu0 %881
      %883 = vrot.lane.b32.xlu0 %v448, 97
      %v884 = vpop.permute.xlu0 %883
      %vm885 = vcmask 793600
      %v886 = vsel %vm885, %v882, %v884
      %v890 = vmul.f32 %v882, 0.0
      %v891 = vmul.f32 %v360, %v886
      %v892 = vmul.f32 %v362, %v884
      %893 = vset.pattern.permute.xlu0 11
      %894 = vperm.xlu0 %893, %v473
      %v895 = vpop.permute.xlu0 %894
      %v897 = vmul.f32 %v890, %v895
      %v898 = vmul.f32 %v891, %v895
      %v899 = vmul.f32 %v892, %v895
      %903 = vrot.lane.b32.xlu0 %v897, 108
      %v904 = vpop.permute.xlu0 %903
      %905 = vrot.lane.b32.xlu0 %v898, 108
      %v906 = vpop.permute.xlu0 %905
      %907 = vrot.lane.b32.xlu0 %v899, 108
      %v908 = vpop.permute.xlu0 %907
      %vm909 = vcmask 883712
      %v910 = vsel %vm909, %v904, %v906
      %v911 = vsel %vm909, %v906, %v908
      %v915 = vadd.f32 %v878, %v910
      %v916 = vadd.f32 %v879, %v911
      %v917 = vadd.f32 %v880, %v908
      %918 = vrot.lane.b32.xlu0 %v459, 98
      %v919 = vpop.permute.xlu0 %918
      %920 = vrot.lane.b32.xlu0 %v460, 98
      %v921 = vpop.permute.xlu0 %920
      %vm922 = vcmask 801792
      %v923 = vsel %vm922, %v919, %v921
      %v927 = vmul.f32 %v919, 0.0
      %v928 = vmul.f32 %v360, %v923
      %v929 = vmul.f32 %v362, %v921
      %930 = vset.pattern.permute.xlu0 12
      %931 = vperm.xlu0 %930, %v473
      %v932 = vpop.permute.xlu0 %931
      %v934 = vmul.f32 %v927, %v932
      %v935 = vmul.f32 %v928, %v932
      %v936 = vmul.f32 %v929, %v932
      %940 = vrot.lane.b32.xlu0 %v934, 107
      %v941 = vpop.permute.xlu0 %940
      %942 = vrot.lane.b32.xlu0 %v935, 107
      %v943 = vpop.permute.xlu0 %942
      %944 = vrot.lane.b32.xlu0 %v936, 107
      %v945 = vpop.permute.xlu0 %944
      %vm946 = vcmask 875520
      %v947 = vsel %vm946, %v941, %v943
      %v948 = vsel %vm946, %v943, %v945
      %v952 = vadd.f32 %v915, %v947
      %v953 = vadd.f32 %v916, %v948
      %v954 = vadd.f32 %v917, %v945
      %955 = vrot.lane.b32.xlu0 %v471, 99
      %v956 = vpop.permute.xlu0 %955
      %957 = vrot.lane.b32.xlu0 %v472, 99
      %v958 = vpop.permute.xlu0 %957
      %vm959 = vcmask 809984
      %v960 = vsel %vm959, %v956, %v958
      %v964 = vmul.f32 %v956, 0.0
      %v965 = vmul.f32 %v360, %v960
      %v966 = vmul.f32 %v362, %v958
      %967 = vset.pattern.permute.xlu0 13
      %968 = vperm.xlu0 %967, %v473
      %v969 = vpop.permute.xlu0 %968
      %v971 = vmul.f32 %v964, %v969
      %v972 = vmul.f32 %v965, %v969
      %v973 = vmul.f32 %v966, %v969
      %977 = vrot.lane.b32.xlu0 %v971, 106
      %v978 = vpop.permute.xlu0 %977
      %979 = vrot.lane.b32.xlu0 %v972, 106
      %v980 = vpop.permute.xlu0 %979
      %981 = vrot.lane.b32.xlu0 %v973, 106
      %v982 = vpop.permute.xlu0 %981
      %vm983 = vcmask 867328
      %v984 = vsel %vm983, %v978, %v980
      %v985 = vsel %vm983, %v980, %v982
      %v989 = vadd.f32 %v952, %v984
      %v990 = vadd.f32 %v953, %v985
      %v991 = vadd.f32 %v954, %v982
      %992 = vrot.lane.b32.xlu0 %v401, 109
      %v993 = vpop.permute.xlu0 %992
      %994 = vrot.lane.b32.xlu0 %v402, 109
      %v995 = vpop.permute.xlu0 %994
      %v996 = vsel %vm872, %v993, %v995
      %v1000 = vmul.f32 %v993, 0.0
      %v1001 = vmul.f32 %v360, %v996
      %v1002 = vmul.f32 %v362, %v995
      %1003 = vset.pattern.permute.xlu0 14
      %1004 = vperm.xlu0 %1003, %v473
      %v1005 = vpop.permute.xlu0 %1004
      %v1007 = vmul.f32 %v1000, %v1005
      %v1008 = vmul.f32 %v1001, %v1005
      %v1009 = vmul.f32 %v1002, %v1005
      %1013 = vrot.lane.b32.xlu0 %v1007, 96
      %v1014 = vpop.permute.xlu0 %1013
      %1015 = vrot.lane.b32.xlu0 %v1008, 96
      %v1016 = vpop.permute.xlu0 %1015
      %1017 = vrot.lane.b32.xlu0 %v1009, 96
      %v1018 = vpop.permute.xlu0 %1017
      %v1019 = vsel %vm848, %v1014, %v1016
      %v1020 = vsel %vm848, %v1016, %v1018
      %v1024 = vadd.f32 %v989, %v1019
      %v1025 = vadd.f32 %v990, %v1020
      %v1026 = vadd.f32 %v991, %v1018
      %1027 = vrot.lane.b32.xlu0 %v413, 110
      %v1028 = vpop.permute.xlu0 %1027
      %1029 = vrot.lane.b32.xlu0 %v414, 110
      %v1030 = vpop.permute.xlu0 %1029
      %v1031 = vsel %vm835, %v1028, %v1030
      %v1035 = vmul.f32 %v1028, 0.0
      %v1036 = vmul.f32 %v360, %v1031
      %v1037 = vmul.f32 %v362, %v1030
      %1038 = vset.pattern.permute.xlu0 15
      %1039 = vperm.xlu0 %1038, %v473
      %v1040 = vpop.permute.xlu0 %1039
      %v1042 = vmul.f32 %v1035, %v1040
      %v1043 = vmul.f32 %v1036, %v1040
      %v1044 = vmul.f32 %v1037, %v1040
      %1048 = vrot.lane.b32.xlu0 %v1042, 95
      %v1049 = vpop.permute.xlu0 %1048
      %1050 = vrot.lane.b32.xlu0 %v1043, 95
      %v1051 = vpop.permute.xlu0 %1050
      %1052 = vrot.lane.b32.xlu0 %v1044, 95
      %v1053 = vpop.permute.xlu0 %1052
      %v1054 = vsel %vm811, %v1049, %v1051
      %v1055 = vsel %vm811, %v1051, %v1053
      %v1059 = vadd.f32 %v1024, %v1054
      %v1060 = vadd.f32 %v1025, %v1055
      %v1061 = vadd.f32 %v1026, %v1053
      %1062 = vrot.lane.b32.xlu0 %v425, 111
      %v1063 = vpop.permute.xlu0 %1062
      %1064 = vrot.lane.b32.xlu0 %v426, 111
      %v1065 = vpop.permute.xlu0 %1064
      %v1066 = vsel %vm798, %v1063, %v1065
      %v1070 = vmul.f32 %v1063, 0.0
      %v1071 = vmul.f32 %v360, %v1066
      %v1072 = vmul.f32 %v362, %v1065
      %1073 = vset.pattern.permute.xlu0 16
      %1074 = vperm.xlu0 %1073, %v473
      %v1075 = vpop.permute.xlu0 %1074
      %v1077 = vmul.f32 %v1070, %v1075
      %v1078 = vmul.f32 %v1071, %v1075
      %v1079 = vmul.f32 %v1072, %v1075
      %1083 = vrot.lane.b32.xlu0 %v1077, 94
      %v1084 = vpop.permute.xlu0 %1083
      %1085 = vrot.lane.b32.xlu0 %v1078, 94
      %v1086 = vpop.permute.xlu0 %1085
      %1087 = vrot.lane.b32.xlu0 %v1079, 94
      %v1088 = vpop.permute.xlu0 %1087
      %v1089 = vsel %vm774, %v1084, %v1086
      %v1090 = vsel %vm774, %v1086, %v1088
      %v1094 = vadd.f32 %v1059, %v1089
      %v1095 = vadd.f32 %v1060, %v1090
      %v1096 = vadd.f32 %v1061, %v1088
      %1097 = vrot.lane.b32.xlu0 %v435, 112
      %v1098 = vpop.permute.xlu0 %1097
      %1099 = vrot.lane.b32.xlu0 %v436, 112
      %v1100 = vpop.permute.xlu0 %1099
      %v1101 = vsel %vm761, %v1098, %v1100
      %v1105 = vmul.f32 %v1098, 0.0
      %v1106 = vmul.f32 %v360, %v1101
      %v1107 = vmul.f32 %v362, %v1100
      %1108 = vset.pattern.permute.xlu0 17
      %1109 = vperm.xlu0 %1108, %v473
      %v1110 = vpop.permute.xlu0 %1109
      %v1112 = vmul.f32 %v1105, %v1110
      %v1113 = vmul.f32 %v1106, %v1110
      %v1114 = vmul.f32 %v1107, %v1110
      %1118 = vrot.lane.b32.xlu0 %v1112, 93
      %v1119 = vpop.permute.xlu0 %1118
      %1120 = vrot.lane.b32.xlu0 %v1113, 93
      %v1121 = vpop.permute.xlu0 %1120
      %1122 = vrot.lane.b32.xlu0 %v1114, 93
      %v1123 = vpop.permute.xlu0 %1122
      %v1124 = vsel %vm737, %v1119, %v1121
      %v1125 = vsel %vm737, %v1121, %v1123
      %v1129 = vadd.f32 %v1094, %v1124
      %v1130 = vadd.f32 %v1095, %v1125
      %v1131 = vadd.f32 %v1096, %v1123
      %1132 = vrot.lane.b32.xlu0 %v447, 113
      %v1133 = vpop.permute.xlu0 %1132
      %1134 = vrot.lane.b32.xlu0 %v448, 113
      %v1135 = vpop.permute.xlu0 %1134
      %vm1136 = vcmask 924672
      %v1137 = vsel %vm1136, %v1133, %v1135
      %v1141 = vmul.f32 %v1133, 0.0
      %v1142 = vmul.f32 %v360, %v1137
      %v1143 = vmul.f32 %v362, %v1135
      %1144 = vset.pattern.permute.xlu0 18
      %1145 = vperm.xlu0 %1144, %v473
      %v1146 = vpop.permute.xlu0 %1145
      %v1148 = vmul.f32 %v1141, %v1146
      %v1149 = vmul.f32 %v1142, %v1146
      %v1150 = vmul.f32 %v1143, %v1146
      %1154 = vrot.lane.b32.xlu0 %v1148, 92
      %v1155 = vpop.permute.xlu0 %1154
      %1156 = vrot.lane.b32.xlu0 %v1149, 92
      %v1157 = vpop.permute.xlu0 %1156
      %1158 = vrot.lane.b32.xlu0 %v1150, 92
      %v1159 = vpop.permute.xlu0 %1158
      %vm1160 = vcmask 752640
      %v1161 = vsel %vm1160, %v1155, %v1157
      %v1162 = vsel %vm1160, %v1157, %v1159
      %v1166 = vadd.f32 %v1129, %v1161
      %v1167 = vadd.f32 %v1130, %v1162
      %v1168 = vadd.f32 %v1131, %v1159
      %1169 = vrot.lane.b32.xlu0 %v459, 114
      %v1170 = vpop.permute.xlu0 %1169
      %1171 = vrot.lane.b32.xlu0 %v460, 114
      %v1172 = vpop.permute.xlu0 %1171
      %vm1173 = vcmask 932864
      %v1174 = vsel %vm1173, %v1170, %v1172
      %v1178 = vmul.f32 %v1170, 0.0
      %v1179 = vmul.f32 %v360, %v1174
      %v1180 = vmul.f32 %v362, %v1172
      %1181 = vset.pattern.permute.xlu0 19
      %1182 = vperm.xlu0 %1181, %v473
      %v1183 = vpop.permute.xlu0 %1182
      %v1185 = vmul.f32 %v1178, %v1183
      %v1186 = vmul.f32 %v1179, %v1183
      %v1187 = vmul.f32 %v1180, %v1183
      %1191 = vrot.lane.b32.xlu0 %v1185, 91
      %v1192 = vpop.permute.xlu0 %1191
      %1193 = vrot.lane.b32.xlu0 %v1186, 91
      %v1194 = vpop.permute.xlu0 %1193
      %1195 = vrot.lane.b32.xlu0 %v1187, 91
      %v1196 = vpop.permute.xlu0 %1195
      %vm1197 = vcmask 744448
      %v1198 = vsel %vm1197, %v1192, %v1194
      %v1199 = vsel %vm1197, %v1194, %v1196
      %v1203 = vadd.f32 %v1166, %v1198
      %v1204 = vadd.f32 %v1167, %v1199
      %v1205 = vadd.f32 %v1168, %v1196
      %1206 = vrot.lane.b32.xlu0 %v471, 115
      %v1207 = vpop.permute.xlu0 %1206
      %1208 = vrot.lane.b32.xlu0 %v472, 115
      %v1209 = vpop.permute.xlu0 %1208
      %vm1210 = vcmask 941056
      %v1211 = vsel %vm1210, %v1207, %v1209
      %v1215 = vmul.f32 %v1207, 0.0
      %v1216 = vmul.f32 %v360, %v1211
      %v1217 = vmul.f32 %v362, %v1209
      %1218 = vset.pattern.permute.xlu0 20
      %1219 = vperm.xlu0 %1218, %v473
      %v1220 = vpop.permute.xlu0 %1219
      %v1222 = vmul.f32 %v1215, %v1220
      %v1223 = vmul.f32 %v1216, %v1220
      %v1224 = vmul.f32 %v1217, %v1220
      %1228 = vrot.lane.b32.xlu0 %v1222, 90
      %v1229 = vpop.permute.xlu0 %1228
      %1230 = vrot.lane.b32.xlu0 %v1223, 90
      %v1231 = vpop.permute.xlu0 %1230
      %1232 = vrot.lane.b32.xlu0 %v1224, 90
      %v1233 = vpop.permute.xlu0 %1232
      %vm1234 = vcmask 736256
      %v1235 = vsel %vm1234, %v1229, %v1231
      %v1236 = vsel %vm1234, %v1231, %v1233
      %v1240 = vadd.f32 %v1203, %v1235
      %v1241 = vadd.f32 %v1204, %v1236
      %v1242 = vadd.f32 %v1205, %v1233
      %1243 = vrot.lane.b32.xlu0 %v401, 125
      %v1244 = vpop.permute.xlu0 %1243
      %1245 = vrot.lane.b32.xlu0 %v402, 125
      %v1246 = vpop.permute.xlu0 %1245
      %v1247 = vsel %vm607, %v1244, %v1246
      %v1251 = vmul.f32 %v1244, 0.0
      %v1252 = vmul.f32 %v360, %v1247
      %v1253 = vmul.f32 %v362, %v1246
      %1254 = vset.pattern.permute.xlu0 21
      %1255 = vperm.xlu0 %1254, %v473
      %v1256 = vpop.permute.xlu0 %1255
      %v1258 = vmul.f32 %v1251, %v1256
      %v1259 = vmul.f32 %v1252, %v1256
      %v1260 = vmul.f32 %v1253, %v1256
      %1264 = vrot.lane.b32.xlu0 %v1258, 80
      %v1265 = vpop.permute.xlu0 %1264
      %1266 = vrot.lane.b32.xlu0 %v1259, 80
      %v1267 = vpop.permute.xlu0 %1266
      %1268 = vrot.lane.b32.xlu0 %v1260, 80
      %v1269 = vpop.permute.xlu0 %1268
      %v1270 = vsel %vm583, %v1265, %v1267
      %v1271 = vsel %vm583, %v1267, %v1269
      %v1275 = vadd.f32 %v1240, %v1270
      %v1276 = vadd.f32 %v1241, %v1271
      %v1277 = vadd.f32 %v1242, %v1269
      %1278 = vrot.lane.b32.xlu0 %v413, 126
      %v1279 = vpop.permute.xlu0 %1278
      %1280 = vrot.lane.b32.xlu0 %v414, 126
      %v1281 = vpop.permute.xlu0 %1280
      %v1282 = vsel %vm568, %v1279, %v1281
      %v1286 = vmul.f32 %v1279, 0.0
      %v1287 = vmul.f32 %v360, %v1282
      %v1288 = vmul.f32 %v362, %v1281
      %1289 = vset.pattern.permute.xlu0 22
      %1290 = vperm.xlu0 %1289, %v473
      %v1291 = vpop.permute.xlu0 %1290
      %v1293 = vmul.f32 %v1286, %v1291
      %v1294 = vmul.f32 %v1287, %v1291
      %v1295 = vmul.f32 %v1288, %v1291
      %1299 = vrot.lane.b32.xlu0 %v1293, 79
      %v1300 = vpop.permute.xlu0 %1299
      %1301 = vrot.lane.b32.xlu0 %v1294, 79
      %v1302 = vpop.permute.xlu0 %1301
      %1303 = vrot.lane.b32.xlu0 %v1295, 79
      %v1304 = vpop.permute.xlu0 %1303
      %v1305 = vsel %vm544, %v1300, %v1302
      %v1306 = vsel %vm544, %v1302, %v1304
      %v1310 = vadd.f32 %v1275, %v1305
      %v1311 = vadd.f32 %v1276, %v1306
      %v1312 = vadd.f32 %v1277, %v1304
      %1313 = vrot.lane.b32.xlu0 %v425, 127
      %v1314 = vpop.permute.xlu0 %1313
      %1315 = vrot.lane.b32.xlu0 %v426, 127
      %v1316 = vpop.permute.xlu0 %1315
      %v1317 = vsel %vm529, %v1314, %v1316
      %v1321 = vmul.f32 %v1314, 0.0
      %v1322 = vmul.f32 %v360, %v1317
      %v1323 = vmul.f32 %v362, %v1316
      %1324 = vset.pattern.permute.xlu0 23
      %1325 = vperm.xlu0 %1324, %v473
      %v1326 = vpop.permute.xlu0 %1325
      %v1328 = vmul.f32 %v1321, %v1326
      %v1329 = vmul.f32 %v1322, %v1326
      %v1330 = vmul.f32 %v1323, %v1326
      %1334 = vrot.lane.b32.xlu0 %v1328, 78
      %v1335 = vpop.permute.xlu0 %1334
      %1336 = vrot.lane.b32.xlu0 %v1329, 78
      %v1337 = vpop.permute.xlu0 %1336
      %1338 = vrot.lane.b32.xlu0 %v1330, 78
      %v1339 = vpop.permute.xlu0 %1338
      %v1340 = vsel %vm505, %v1335, %v1337
      %v1341 = vsel %vm505, %v1337, %v1339
      %v1345 = vadd.f32 %v1310, %v1340
      %v1346 = vadd.f32 %v1311, %v1341
      %v1347 = vadd.f32 %v1312, %v1339
      %v1348 = vmul.f32 %v360, %v435
      %v1349 = vmul.f32 %v362, %v436
      %1350 = vset.pattern.permute.xlu0 24
      %1351 = vperm.xlu0 %1350, %v473
      %v1352 = vpop.permute.xlu0 %1351
      %v1354 = vmul.f32 %v1348, %v1352
      %v1355 = vmul.f32 %v1349, %v1352
      %1358 = vrot.lane.b32.xlu0 %v1354, 77
      %v1359 = vpop.permute.xlu0 %1358
      %1360 = vrot.lane.b32.xlu0 %v1355, 77
      %v1361 = vpop.permute.xlu0 %1360
      %v1362 = vsel %vm480, %v1359, %v1361
      %v1366 = vadd.f32 %v1345, %v1359
      %v1367 = vadd.f32 %v1346, %v1362
      %v1368 = vadd.f32 %v1347, %v1361
      %1369 = vrot.lane.b32.xlu0 %v447, 1
      %v1370 = vpop.permute.xlu0 %1369
      %1371 = vrot.lane.b32.xlu0 %v448, 1
      %v1372 = vpop.permute.xlu0 %1371
      %vm1373 = vcmask 7168
      %v1374 = vsel %vm1373, %v1370, %v1372
      %v1378 = vmul.f32 %v360, %v1370
      %v1379 = vmul.f32 %v362, %v1374
      %v1380 = vmul.f32 %v1372, 0.0
      %1381 = vset.pattern.permute.xlu0 25
      %1382 = vperm.xlu0 %1381, %v473
      %v1383 = vpop.permute.xlu0 %1382
      %v1385 = vmul.f32 %v1378, %v1383
      %v1386 = vmul.f32 %v1379, %v1383
      %v1387 = vmul.f32 %v1380, %v1383
      %1391 = vrot.lane.b32.xlu0 %v1385, 76
      %v1392 = vpop.permute.xlu0 %1391
      %1393 = vrot.lane.b32.xlu0 %v1386, 76
      %v1394 = vpop.permute.xlu0 %1393
      %1395 = vrot.lane.b32.xlu0 %v1387, 76
      %v1396 = vpop.permute.xlu0 %1395
      %vm1397 = vcmask 621568
      %v1398 = vsel %vm1397, %v1392, %v1394
      %v1399 = vsel %vm1397, %v1394, %v1396
      %v1403 = vadd.f32 %v1366, %v1392
      %v1404 = vadd.f32 %v1367, %v1398
      %v1405 = vadd.f32 %v1368, %v1399
      %1406 = vrot.lane.b32.xlu0 %v459, 2
      %v1407 = vpop.permute.xlu0 %1406
      %1408 = vrot.lane.b32.xlu0 %v460, 2
      %v1409 = vpop.permute.xlu0 %1408
      %vm1410 = vcmask 15360
      %v1411 = vsel %vm1410, %v1407, %v1409
      %v1415 = vmul.f32 %v360, %v1407
      %v1416 = vmul.f32 %v362, %v1411
      %v1417 = vmul.f32 %v1409, 0.0
      %1418 = vset.pattern.permute.xlu0 26
      %1419 = vperm.xlu0 %1418, %v473
      %v1420 = vpop.permute.xlu0 %1419
      %v1422 = vmul.f32 %v1415, %v1420
      %v1423 = vmul.f32 %v1416, %v1420
      %v1424 = vmul.f32 %v1417, %v1420
      %1428 = vrot.lane.b32.xlu0 %v1422, 75
      %v1429 = vpop.permute.xlu0 %1428
      %1430 = vrot.lane.b32.xlu0 %v1423, 75
      %v1431 = vpop.permute.xlu0 %1430
      %1432 = vrot.lane.b32.xlu0 %v1424, 75
      %v1433 = vpop.permute.xlu0 %1432
      %vm1434 = vcmask 613376
      %v1435 = vsel %vm1434, %v1429, %v1431
      %v1436 = vsel %vm1434, %v1431, %v1433
      %v1440 = vadd.f32 %v1403, %v1429
      %v1441 = vadd.f32 %v1404, %v1435
      %v1442 = vadd.f32 %v1405, %v1436
      %1443 = vrot.lane.b32.xlu0 %v471, 3
      %v1444 = vpop.permute.xlu0 %1443
      %1445 = vrot.lane.b32.xlu0 %v472, 3
      %v1446 = vpop.permute.xlu0 %1445
      %vm1447 = vcmask 23552
      %v1448 = vsel %vm1447, %v1444, %v1446
      %v1452 = vmul.f32 %v360, %v1444
      %v1453 = vmul.f32 %v362, %v1448
      %v1454 = vmul.f32 %v1446, 0.0
      %1455 = vset.pattern.permute.xlu0 27
      %1456 = vperm.xlu0 %1455, %v473
      %v1457 = vpop.permute.xlu0 %1456
      %v1459 = vmul.f32 %v1452, %v1457
      %v1460 = vmul.f32 %v1453, %v1457
      %v1461 = vmul.f32 %v1454, %v1457
      %1465 = vrot.lane.b32.xlu0 %v1459, 74
      %v1466 = vpop.permute.xlu0 %1465
      %1467 = vrot.lane.b32.xlu0 %v1460, 74
      %v1468 = vpop.permute.xlu0 %1467
      %1469 = vrot.lane.b32.xlu0 %v1461, 74
      %v1470 = vpop.permute.xlu0 %1469
      %vm1471 = vcmask 605184
      %v1472 = vsel %vm1471, %v1466, %v1468
      %v1473 = vsel %vm1471, %v1468, %v1470
      %v1477 = vadd.f32 %v1440, %v1466
      %v1478 = vadd.f32 %v1441, %v1472
      %v1479 = vadd.f32 %v1442, %v1473
      %1480 = vrot.lane.b32.xlu0 %v401, 13
      %v1481 = vpop.permute.xlu0 %1480
      %1482 = vrot.lane.b32.xlu0 %v402, 13
      %v1483 = vpop.permute.xlu0 %1482
      %vm1484 = vcmask 105472
      %v1485 = vsel %vm1484, %v1481, %v1483
      %v1489 = vmul.f32 %v360, %v1481
      %v1490 = vmul.f32 %v362, %v1485
      %v1491 = vmul.f32 %v1483, 0.0
      %1492 = vset.pattern.permute.xlu0 28
      %1493 = vperm.xlu0 %1492, %v473
      %v1494 = vpop.permute.xlu0 %1493
      %v1496 = vmul.f32 %v1489, %v1494
      %v1497 = vmul.f32 %v1490, %v1494
      %v1498 = vmul.f32 %v1491, %v1494
      %1502 = vrot.lane.b32.xlu0 %v1496, 64
      %v1503 = vpop.permute.xlu0 %1502
      %1504 = vrot.lane.b32.xlu0 %v1497, 64
      %v1505 = vpop.permute.xlu0 %1504
      %1506 = vrot.lane.b32.xlu0 %v1498, 64
      %v1507 = vpop.permute.xlu0 %1506
      %vm1508 = vcmask 523264
      %v1509 = vsel %vm1508, %v1503, %v1505
      %v1510 = vsel %vm1508, %v1505, %v1507
      %v1514 = vadd.f32 %v1477, %v1503
      %v1515 = vadd.f32 %v1478, %v1509
      %v1516 = vadd.f32 %v1479, %v1510
      %1517 = vrot.lane.b32.xlu0 %v413, 14
      %v1518 = vpop.permute.xlu0 %1517
      %1519 = vrot.lane.b32.xlu0 %v414, 14
      %v1520 = vpop.permute.xlu0 %1519
      %vm1521 = vcmask 113664
      %v1522 = vsel %vm1521, %v1518, %v1520
      %v1526 = vmul.f32 %v360, %v1518
      %v1527 = vmul.f32 %v362, %v1522
      %v1528 = vmul.f32 %v1520, 0.0
      %1529 = vset.pattern.permute.xlu0 29
      %1530 = vperm.xlu0 %1529, %v473
      %v1531 = vpop.permute.xlu0 %1530
      %v1533 = vmul.f32 %v1526, %v1531
      %v1534 = vmul.f32 %v1527, %v1531
      %v1535 = vmul.f32 %v1528, %v1531
      %1539 = vrot.lane.b32.xlu0 %v1533, 63
      %v1540 = vpop.permute.xlu0 %1539
      %1541 = vrot.lane.b32.xlu0 %v1534, 63
      %v1542 = vpop.permute.xlu0 %1541
      %1543 = vrot.lane.b32.xlu0 %v1535, 63
      %v1544 = vpop.permute.xlu0 %1543
      %vm1545 = vcmask 515072
      %v1546 = vsel %vm1545, %v1540, %v1542
      %v1547 = vsel %vm1545, %v1542, %v1544
      %v1551 = vadd.f32 %v1514, %v1540
      %v1552 = vadd.f32 %v1515, %v1546
      %v1553 = vadd.f32 %v1516, %v1547
      %1554 = vrot.lane.b32.xlu0 %v425, 15
      %v1555 = vpop.permute.xlu0 %1554
      %1556 = vrot.lane.b32.xlu0 %v426, 15
      %v1557 = vpop.permute.xlu0 %1556
      %vm1558 = vcmask 121856
      %v1559 = vsel %vm1558, %v1555, %v1557
      %v1563 = vmul.f32 %v360, %v1555
      %v1564 = vmul.f32 %v362, %v1559
      %v1565 = vmul.f32 %v1557, 0.0
      %1566 = vset.pattern.permute.xlu0 30
      %1567 = vperm.xlu0 %1566, %v473
      %v1568 = vpop.permute.xlu0 %1567
      %v1570 = vmul.f32 %v1563, %v1568
      %v1571 = vmul.f32 %v1564, %v1568
      %v1572 = vmul.f32 %v1565, %v1568
      %1576 = vrot.lane.b32.xlu0 %v1570, 62
      %v1577 = vpop.permute.xlu0 %1576
      %1578 = vrot.lane.b32.xlu0 %v1571, 62
      %v1579 = vpop.permute.xlu0 %1578
      %1580 = vrot.lane.b32.xlu0 %v1572, 62
      %v1581 = vpop.permute.xlu0 %1580
      %vm1582 = vcmask 506880
      %v1583 = vsel %vm1582, %v1577, %v1579
      %v1584 = vsel %vm1582, %v1579, %v1581
      %v1588 = vadd.f32 %v1551, %v1577
      %v1589 = vadd.f32 %v1552, %v1583
      %v1590 = vadd.f32 %v1553, %v1584
      %1591 = vrot.lane.b32.xlu0 %v435, 16
      %v1592 = vpop.permute.xlu0 %1591
      %1593 = vrot.lane.b32.xlu0 %v436, 16
      %v1594 = vpop.permute.xlu0 %1593
      %vm1595 = vcmask 130048
      %v1596 = vsel %vm1595, %v1592, %v1594
      %v1600 = vmul.f32 %v360, %v1592
      %v1601 = vmul.f32 %v362, %v1596
      %v1602 = vmul.f32 %v1594, 0.0
      %1603 = vset.pattern.permute.xlu0 31
      %1604 = vperm.xlu0 %1603, %v473
      %v1605 = vpop.permute.xlu0 %1604
      %v1607 = vmul.f32 %v1600, %v1605
      %v1608 = vmul.f32 %v1601, %v1605
      %v1609 = vmul.f32 %v1602, %v1605
      %1613 = vrot.lane.b32.xlu0 %v1607, 61
      %v1614 = vpop.permute.xlu0 %1613
      %1615 = vrot.lane.b32.xlu0 %v1608, 61
      %v1616 = vpop.permute.xlu0 %1615
      %1617 = vrot.lane.b32.xlu0 %v1609, 61
      %v1618 = vpop.permute.xlu0 %1617
      %vm1619 = vcmask 498688
      %v1620 = vsel %vm1619, %v1614, %v1616
      %v1621 = vsel %vm1619, %v1616, %v1618
      %v1625 = vadd.f32 %v1588, %v1614
      %v1626 = vadd.f32 %v1589, %v1620
      %v1627 = vadd.f32 %v1590, %v1621
      %1628 = vrot.lane.b32.xlu0 %v447, 17
      %v1629 = vpop.permute.xlu0 %1628
      %1630 = vrot.lane.b32.xlu0 %v448, 17
      %v1631 = vpop.permute.xlu0 %1630
      %vm1632 = vcmask 138240
      %v1633 = vsel %vm1632, %v1629, %v1631
      %v1637 = vmul.f32 %v360, %v1629
      %v1638 = vmul.f32 %v362, %v1633
      %v1639 = vmul.f32 %v1631, 0.0
      %1640 = vset.pattern.permute.xlu0 32
      %1641 = vperm.xlu0 %1640, %v473
      %v1642 = vpop.permute.xlu0 %1641
      %v1644 = vmul.f32 %v1637, %v1642
      %v1645 = vmul.f32 %v1638, %v1642
      %v1646 = vmul.f32 %v1639, %v1642
      %1650 = vrot.lane.b32.xlu0 %v1644, 60
      %v1651 = vpop.permute.xlu0 %1650
      %1652 = vrot.lane.b32.xlu0 %v1645, 60
      %v1653 = vpop.permute.xlu0 %1652
      %1654 = vrot.lane.b32.xlu0 %v1646, 60
      %v1655 = vpop.permute.xlu0 %1654
      %vm1656 = vcmask 490496
      %v1657 = vsel %vm1656, %v1651, %v1653
      %v1658 = vsel %vm1656, %v1653, %v1655
      %v1662 = vadd.f32 %v1625, %v1651
      %v1663 = vadd.f32 %v1626, %v1657
      %v1664 = vadd.f32 %v1627, %v1658
      %1665 = vrot.lane.b32.xlu0 %v459, 18
      %v1666 = vpop.permute.xlu0 %1665
      %1667 = vrot.lane.b32.xlu0 %v460, 18
      %v1668 = vpop.permute.xlu0 %1667
      %vm1669 = vcmask 146432
      %v1670 = vsel %vm1669, %v1666, %v1668
      %v1674 = vmul.f32 %v360, %v1666
      %v1675 = vmul.f32 %v362, %v1670
      %v1676 = vmul.f32 %v1668, 0.0
      %1677 = vset.pattern.permute.xlu0 33
      %1678 = vperm.xlu0 %1677, %v473
      %v1679 = vpop.permute.xlu0 %1678
      %v1681 = vmul.f32 %v1674, %v1679
      %v1682 = vmul.f32 %v1675, %v1679
      %v1683 = vmul.f32 %v1676, %v1679
      %1687 = vrot.lane.b32.xlu0 %v1681, 59
      %v1688 = vpop.permute.xlu0 %1687
      %1689 = vrot.lane.b32.xlu0 %v1682, 59
      %v1690 = vpop.permute.xlu0 %1689
      %1691 = vrot.lane.b32.xlu0 %v1683, 59
      %v1692 = vpop.permute.xlu0 %1691
      %vm1693 = vcmask 482304
      %v1694 = vsel %vm1693, %v1688, %v1690
      %v1695 = vsel %vm1693, %v1690, %v1692
      %v1699 = vadd.f32 %v1662, %v1688
      %v1700 = vadd.f32 %v1663, %v1694
      %v1701 = vadd.f32 %v1664, %v1695
      %1702 = vrot.lane.b32.xlu0 %v471, 19
      %v1703 = vpop.permute.xlu0 %1702
      %1704 = vrot.lane.b32.xlu0 %v472, 19
      %v1705 = vpop.permute.xlu0 %1704
      %vm1706 = vcmask 154624
      %v1707 = vsel %vm1706, %v1703, %v1705
      %v1711 = vmul.f32 %v360, %v1703
      %v1712 = vmul.f32 %v362, %v1707
      %v1713 = vmul.f32 %v1705, 0.0
      %1714 = vset.pattern.permute.xlu0 34
      %1715 = vperm.xlu0 %1714, %v473
      %v1716 = vpop.permute.xlu0 %1715
      %v1718 = vmul.f32 %v1711, %v1716
      %v1719 = vmul.f32 %v1712, %v1716
      %v1720 = vmul.f32 %v1713, %v1716
      %1724 = vrot.lane.b32.xlu0 %v1718, 58
      %v1725 = vpop.permute.xlu0 %1724
      %1726 = vrot.lane.b32.xlu0 %v1719, 58
      %v1727 = vpop.permute.xlu0 %1726
      %1728 = vrot.lane.b32.xlu0 %v1720, 58
      %v1729 = vpop.permute.xlu0 %1728
      %vm1730 = vcmask 474112
      %v1731 = vsel %vm1730, %v1725, %v1727
      %v1732 = vsel %vm1730, %v1727, %v1729
      %v1736 = vadd.f32 %v1699, %v1725
      %v1737 = vadd.f32 %v1700, %v1731
      %v1738 = vadd.f32 %v1701, %v1732
      %1739 = vrot.lane.b32.xlu0 %v401, 29
      %v1740 = vpop.permute.xlu0 %1739
      %1741 = vrot.lane.b32.xlu0 %v402, 29
      %v1742 = vpop.permute.xlu0 %1741
      %vm1743 = vcmask 236544
      %v1744 = vsel %vm1743, %v1740, %v1742
      %v1748 = vmul.f32 %v360, %v1740
      %v1749 = vmul.f32 %v362, %v1744
      %v1750 = vmul.f32 %v1742, 0.0
      %1751 = vset.pattern.permute.xlu0 35
      %1752 = vperm.xlu0 %1751, %v473
      %v1753 = vpop.permute.xlu0 %1752
      %v1755 = vmul.f32 %v1748, %v1753
      %v1756 = vmul.f32 %v1749, %v1753
      %v1757 = vmul.f32 %v1750, %v1753
      %1761 = vrot.lane.b32.xlu0 %v1755, 48
      %v1762 = vpop.permute.xlu0 %1761
      %1763 = vrot.lane.b32.xlu0 %v1756, 48
      %v1764 = vpop.permute.xlu0 %1763
      %1765 = vrot.lane.b32.xlu0 %v1757, 48
      %v1766 = vpop.permute.xlu0 %1765
      %vm1767 = vcmask 392192
      %v1768 = vsel %vm1767, %v1762, %v1764
      %v1769 = vsel %vm1767, %v1764, %v1766
      %v1773 = vadd.f32 %v1736, %v1762
      %v1774 = vadd.f32 %v1737, %v1768
      %v1775 = vadd.f32 %v1738, %v1769
      %1776 = vrot.lane.b32.xlu0 %v413, 30
      %v1777 = vpop.permute.xlu0 %1776
      %1778 = vrot.lane.b32.xlu0 %v414, 30
      %v1779 = vpop.permute.xlu0 %1778
      %vm1780 = vcmask 244736
      %v1781 = vsel %vm1780, %v1777, %v1779
      %v1785 = vmul.f32 %v360, %v1777
      %v1786 = vmul.f32 %v362, %v1781
      %v1787 = vmul.f32 %v1779, 0.0
      %1788 = vset.pattern.permute.xlu0 36
      %1789 = vperm.xlu0 %1788, %v473
      %v1790 = vpop.permute.xlu0 %1789
      %v1792 = vmul.f32 %v1785, %v1790
      %v1793 = vmul.f32 %v1786, %v1790
      %v1794 = vmul.f32 %v1787, %v1790
      %1798 = vrot.lane.b32.xlu0 %v1792, 47
      %v1799 = vpop.permute.xlu0 %1798
      %1800 = vrot.lane.b32.xlu0 %v1793, 47
      %v1801 = vpop.permute.xlu0 %1800
      %1802 = vrot.lane.b32.xlu0 %v1794, 47
      %v1803 = vpop.permute.xlu0 %1802
      %vm1804 = vcmask 384000
      %v1805 = vsel %vm1804, %v1799, %v1801
      %v1806 = vsel %vm1804, %v1801, %v1803
      %v1810 = vadd.f32 %v1773, %v1799
      %v1811 = vadd.f32 %v1774, %v1805
      %v1812 = vadd.f32 %v1775, %v1806
      %1813 = vrot.lane.b32.xlu0 %v425, 31
      %v1814 = vpop.permute.xlu0 %1813
      %1815 = vrot.lane.b32.xlu0 %v426, 31
      %v1816 = vpop.permute.xlu0 %1815
      %vm1817 = vcmask 252928
      %v1818 = vsel %vm1817, %v1814, %v1816
      %v1822 = vmul.f32 %v360, %v1814
      %v1823 = vmul.f32 %v362, %v1818
      %v1824 = vmul.f32 %v1816, 0.0
      %1825 = vset.pattern.permute.xlu0 37
      %1826 = vperm.xlu0 %1825, %v473
      %v1827 = vpop.permute.xlu0 %1826
      %v1829 = vmul.f32 %v1822, %v1827
      %v1830 = vmul.f32 %v1823, %v1827
      %v1831 = vmul.f32 %v1824, %v1827
      %1835 = vrot.lane.b32.xlu0 %v1829, 46
      %v1836 = vpop.permute.xlu0 %1835
      %1837 = vrot.lane.b32.xlu0 %v1830, 46
      %v1838 = vpop.permute.xlu0 %1837
      %1839 = vrot.lane.b32.xlu0 %v1831, 46
      %v1840 = vpop.permute.xlu0 %1839
      %vm1841 = vcmask 375808
      %v1842 = vsel %vm1841, %v1836, %v1838
      %v1843 = vsel %vm1841, %v1838, %v1840
      %v1847 = vadd.f32 %v1810, %v1836
      %v1848 = vadd.f32 %v1811, %v1842
      %v1849 = vadd.f32 %v1812, %v1843
      %1850 = vrot.lane.b32.xlu0 %v435, 32
      %v1851 = vpop.permute.xlu0 %1850
      %1852 = vrot.lane.b32.xlu0 %v436, 32
      %v1853 = vpop.permute.xlu0 %1852
      %vm1854 = vcmask 261120
      %v1855 = vsel %vm1854, %v1851, %v1853
      %v1859 = vmul.f32 %v360, %v1851
      %v1860 = vmul.f32 %v362, %v1855
      %v1861 = vmul.f32 %v1853, 0.0
      %1862 = vset.pattern.permute.xlu0 38
      %1863 = vperm.xlu0 %1862, %v473
      %v1864 = vpop.permute.xlu0 %1863
      %v1866 = vmul.f32 %v1859, %v1864
      %v1867 = vmul.f32 %v1860, %v1864
      %v1868 = vmul.f32 %v1861, %v1864
      %1872 = vrot.lane.b32.xlu0 %v1866, 45
      %v1873 = vpop.permute.xlu0 %1872
      %1874 = vrot.lane.b32.xlu0 %v1867, 45
      %v1875 = vpop.permute.xlu0 %1874
      %1876 = vrot.lane.b32.xlu0 %v1868, 45
      %v1877 = vpop.permute.xlu0 %1876
      %vm1878 = vcmask 367616
      %v1879 = vsel %vm1878, %v1873, %v1875
      %v1880 = vsel %vm1878, %v1875, %v1877
      %v1884 = vadd.f32 %v1847, %v1873
      %v1885 = vadd.f32 %v1848, %v1879
      %v1886 = vadd.f32 %v1849, %v1880
      %1887 = vrot.lane.b32.xlu0 %v447, 33
      %v1888 = vpop.permute.xlu0 %1887
      %1889 = vrot.lane.b32.xlu0 %v448, 33
      %v1890 = vpop.permute.xlu0 %1889
      %vm1891 = vcmask 269312
      %v1892 = vsel %vm1891, %v1888, %v1890
      %v1896 = vmul.f32 %v360, %v1888
      %v1897 = vmul.f32 %v362, %v1892
      %v1898 = vmul.f32 %v1890, 0.0
      %1899 = vset.pattern.permute.xlu0 39
      %1900 = vperm.xlu0 %1899, %v473
      %v1901 = vpop.permute.xlu0 %1900
      %v1903 = vmul.f32 %v1896, %v1901
      %v1904 = vmul.f32 %v1897, %v1901
      %v1905 = vmul.f32 %v1898, %v1901
      %1909 = vrot.lane.b32.xlu0 %v1903, 44
      %v1910 = vpop.permute.xlu0 %1909
      %1911 = vrot.lane.b32.xlu0 %v1904, 44
      %v1912 = vpop.permute.xlu0 %1911
      %1913 = vrot.lane.b32.xlu0 %v1905, 44
      %v1914 = vpop.permute.xlu0 %1913
      %vm1915 = vcmask 359424
      %v1916 = vsel %vm1915, %v1910, %v1912
      %v1917 = vsel %vm1915, %v1912, %v1914
      %v1921 = vadd.f32 %v1884, %v1910
      %v1922 = vadd.f32 %v1885, %v1916
      %v1923 = vadd.f32 %v1886, %v1917
      %1924 = vrot.lane.b32.xlu0 %v459, 34
      %v1925 = vpop.permute.xlu0 %1924
      %1926 = vrot.lane.b32.xlu0 %v460, 34
      %v1927 = vpop.permute.xlu0 %1926
      %vm1928 = vcmask 277504
      %v1929 = vsel %vm1928, %v1925, %v1927
      %v1933 = vmul.f32 %v360, %v1925
      %v1934 = vmul.f32 %v362, %v1929
      %v1935 = vmul.f32 %v1927, 0.0
      %1936 = vset.pattern.permute.xlu0 40
      %1937 = vperm.xlu0 %1936, %v473
      %v1938 = vpop.permute.xlu0 %1937
      %v1940 = vmul.f32 %v1933, %v1938
      %v1941 = vmul.f32 %v1934, %v1938
      %v1942 = vmul.f32 %v1935, %v1938
      %1946 = vrot.lane.b32.xlu0 %v1940, 43
      %v1947 = vpop.permute.xlu0 %1946
      %1948 = vrot.lane.b32.xlu0 %v1941, 43
      %v1949 = vpop.permute.xlu0 %1948
      %1950 = vrot.lane.b32.xlu0 %v1942, 43
      %v1951 = vpop.permute.xlu0 %1950
      %vm1952 = vcmask 351232
      %v1953 = vsel %vm1952, %v1947, %v1949
      %v1954 = vsel %vm1952, %v1949, %v1951
      %v1958 = vadd.f32 %v1921, %v1947
      %v1959 = vadd.f32 %v1922, %v1953
      %v1960 = vadd.f32 %v1923, %v1954
      %1961 = vrot.lane.b32.xlu0 %v471, 35
      %v1962 = vpop.permute.xlu0 %1961
      %1963 = vrot.lane.b32.xlu0 %v472, 35
      %v1964 = vpop.permute.xlu0 %1963
      %vm1965 = vcmask 285696
      %v1966 = vsel %vm1965, %v1962, %v1964
      %v1970 = vmul.f32 %v360, %v1962
      %v1971 = vmul.f32 %v362, %v1966
      %v1972 = vmul.f32 %v1964, 0.0
      %1973 = vset.pattern.permute.xlu0 41
      %1974 = vperm.xlu0 %1973, %v473
      %v1975 = vpop.permute.xlu0 %1974
      %v1977 = vmul.f32 %v1970, %v1975
      %v1978 = vmul.f32 %v1971, %v1975
      %v1979 = vmul.f32 %v1972, %v1975
      %1983 = vrot.lane.b32.xlu0 %v1977, 42
      %v1984 = vpop.permute.xlu0 %1983
      %1985 = vrot.lane.b32.xlu0 %v1978, 42
      %v1986 = vpop.permute.xlu0 %1985
      %1987 = vrot.lane.b32.xlu0 %v1979, 42
      %v1988 = vpop.permute.xlu0 %1987
      %vm1989 = vcmask 343040
      %v1990 = vsel %vm1989, %v1984, %v1986
      %v1991 = vsel %vm1989, %v1986, %v1988
      %v1995 = vadd.f32 %v1958, %v1984
      %v1996 = vadd.f32 %v1959, %v1990
      %v1997 = vadd.f32 %v1960, %v1991
      %1998 = vrot.lane.b32.xlu0 %v401, 45
      %v1999 = vpop.permute.xlu0 %1998
      %2000 = vrot.lane.b32.xlu0 %v402, 45
      %v2001 = vpop.permute.xlu0 %2000
      %v2002 = vsel %vm1878, %v1999, %v2001
      %v2006 = vmul.f32 %v360, %v1999
      %v2007 = vmul.f32 %v362, %v2002
      %v2008 = vmul.f32 %v2001, 0.0
      %2009 = vset.pattern.permute.xlu0 42
      %2010 = vperm.xlu0 %2009, %v473
      %v2011 = vpop.permute.xlu0 %2010
      %v2013 = vmul.f32 %v2006, %v2011
      %v2014 = vmul.f32 %v2007, %v2011
      %v2015 = vmul.f32 %v2008, %v2011
      %2019 = vrot.lane.b32.xlu0 %v2013, 32
      %v2020 = vpop.permute.xlu0 %2019
      %2021 = vrot.lane.b32.xlu0 %v2014, 32
      %v2022 = vpop.permute.xlu0 %2021
      %2023 = vrot.lane.b32.xlu0 %v2015, 32
      %v2024 = vpop.permute.xlu0 %2023
      %v2025 = vsel %vm1854, %v2020, %v2022
      %v2026 = vsel %vm1854, %v2022, %v2024
      %v2030 = vadd.f32 %v1995, %v2020
      %v2031 = vadd.f32 %v1996, %v2025
      %v2032 = vadd.f32 %v1997, %v2026
      %2033 = vrot.lane.b32.xlu0 %v413, 46
      %v2034 = vpop.permute.xlu0 %2033
      %2035 = vrot.lane.b32.xlu0 %v414, 46
      %v2036 = vpop.permute.xlu0 %2035
      %v2037 = vsel %vm1841, %v2034, %v2036
      %v2041 = vmul.f32 %v360, %v2034
      %v2042 = vmul.f32 %v362, %v2037
      %v2043 = vmul.f32 %v2036, 0.0
      %2044 = vset.pattern.permute.xlu0 43
      %2045 = vperm.xlu0 %2044, %v473
      %v2046 = vpop.permute.xlu0 %2045
      %v2048 = vmul.f32 %v2041, %v2046
      %v2049 = vmul.f32 %v2042, %v2046
      %v2050 = vmul.f32 %v2043, %v2046
      %2054 = vrot.lane.b32.xlu0 %v2048, 31
      %v2055 = vpop.permute.xlu0 %2054
      %2056 = vrot.lane.b32.xlu0 %v2049, 31
      %v2057 = vpop.permute.xlu0 %2056
      %2058 = vrot.lane.b32.xlu0 %v2050, 31
      %v2059 = vpop.permute.xlu0 %2058
      %v2060 = vsel %vm1817, %v2055, %v2057
      %v2061 = vsel %vm1817, %v2057, %v2059
      %v2065 = vadd.f32 %v2030, %v2055
      %v2066 = vadd.f32 %v2031, %v2060
      %v2067 = vadd.f32 %v2032, %v2061
      %2068 = vrot.lane.b32.xlu0 %v425, 47
      %v2069 = vpop.permute.xlu0 %2068
      %2070 = vrot.lane.b32.xlu0 %v426, 47
      %v2071 = vpop.permute.xlu0 %2070
      %v2072 = vsel %vm1804, %v2069, %v2071
      %v2076 = vmul.f32 %v360, %v2069
      %v2077 = vmul.f32 %v362, %v2072
      %v2078 = vmul.f32 %v2071, 0.0
      %2079 = vset.pattern.permute.xlu0 44
      %2080 = vperm.xlu0 %2079, %v473
      %v2081 = vpop.permute.xlu0 %2080
      %v2083 = vmul.f32 %v2076, %v2081
      %v2084 = vmul.f32 %v2077, %v2081
      %v2085 = vmul.f32 %v2078, %v2081
      %2089 = vrot.lane.b32.xlu0 %v2083, 30
      %v2090 = vpop.permute.xlu0 %2089
      %2091 = vrot.lane.b32.xlu0 %v2084, 30
      %v2092 = vpop.permute.xlu0 %2091
      %2093 = vrot.lane.b32.xlu0 %v2085, 30
      %v2094 = vpop.permute.xlu0 %2093
      %v2095 = vsel %vm1780, %v2090, %v2092
      %v2096 = vsel %vm1780, %v2092, %v2094
      %v2100 = vadd.f32 %v2065, %v2090
      %v2101 = vadd.f32 %v2066, %v2095
      %v2102 = vadd.f32 %v2067, %v2096
      %2103 = vrot.lane.b32.xlu0 %v435, 48
      %v2104 = vpop.permute.xlu0 %2103
      %2105 = vrot.lane.b32.xlu0 %v436, 48
      %v2106 = vpop.permute.xlu0 %2105
      %v2107 = vsel %vm1767, %v2104, %v2106
      %v2111 = vmul.f32 %v360, %v2104
      %v2112 = vmul.f32 %v362, %v2107
      %v2113 = vmul.f32 %v2106, 0.0
      %2114 = vset.pattern.permute.xlu0 45
      %2115 = vperm.xlu0 %2114, %v473
      %v2116 = vpop.permute.xlu0 %2115
      %v2118 = vmul.f32 %v2111, %v2116
      %v2119 = vmul.f32 %v2112, %v2116
      %v2120 = vmul.f32 %v2113, %v2116
      %2124 = vrot.lane.b32.xlu0 %v2118, 29
      %v2125 = vpop.permute.xlu0 %2124
      %2126 = vrot.lane.b32.xlu0 %v2119, 29
      %v2127 = vpop.permute.xlu0 %2126
      %2128 = vrot.lane.b32.xlu0 %v2120, 29
      %v2129 = vpop.permute.xlu0 %2128
      %v2130 = vsel %vm1743, %v2125, %v2127
      %v2131 = vsel %vm1743, %v2127, %v2129
      %v2135 = vadd.f32 %v2100, %v2125
      %v2136 = vadd.f32 %v2101, %v2130
      %v2137 = vadd.f32 %v2102, %v2131
      %2138 = vrot.lane.b32.xlu0 %v447, 49
      %v2139 = vpop.permute.xlu0 %2138
      %2140 = vrot.lane.b32.xlu0 %v448, 49
      %v2141 = vpop.permute.xlu0 %2140
      %vm2142 = vcmask 400384
      %v2143 = vsel %vm2142, %v2139, %v2141
      %v2147 = vmul.f32 %v360, %v2139
      %v2148 = vmul.f32 %v362, %v2143
      %v2149 = vmul.f32 %v2141, 0.0
      %2150 = vset.pattern.permute.xlu0 46
      %2151 = vperm.xlu0 %2150, %v473
      %v2152 = vpop.permute.xlu0 %2151
      %v2154 = vmul.f32 %v2147, %v2152
      %v2155 = vmul.f32 %v2148, %v2152
      %v2156 = vmul.f32 %v2149, %v2152
      %2160 = vrot.lane.b32.xlu0 %v2154, 28
      %v2161 = vpop.permute.xlu0 %2160
      %2162 = vrot.lane.b32.xlu0 %v2155, 28
      %v2163 = vpop.permute.xlu0 %2162
      %2164 = vrot.lane.b32.xlu0 %v2156, 28
      %v2165 = vpop.permute.xlu0 %2164
      %vm2166 = vcmask 228352
      %v2167 = vsel %vm2166, %v2161, %v2163
      %v2168 = vsel %vm2166, %v2163, %v2165
      %v2172 = vadd.f32 %v2135, %v2161
      %v2173 = vadd.f32 %v2136, %v2167
      %v2174 = vadd.f32 %v2137, %v2168
      %2175 = vrot.lane.b32.xlu0 %v459, 50
      %v2176 = vpop.permute.xlu0 %2175
      %2177 = vrot.lane.b32.xlu0 %v460, 50
      %v2178 = vpop.permute.xlu0 %2177
      %vm2179 = vcmask 408576
      %v2180 = vsel %vm2179, %v2176, %v2178
      %v2184 = vmul.f32 %v360, %v2176
      %v2185 = vmul.f32 %v362, %v2180
      %v2186 = vmul.f32 %v2178, 0.0
      %2187 = vset.pattern.permute.xlu0 47
      %2188 = vperm.xlu0 %2187, %v473
      %v2189 = vpop.permute.xlu0 %2188
      %v2191 = vmul.f32 %v2184, %v2189
      %v2192 = vmul.f32 %v2185, %v2189
      %v2193 = vmul.f32 %v2186, %v2189
      %2197 = vrot.lane.b32.xlu0 %v2191, 27
      %v2198 = vpop.permute.xlu0 %2197
      %2199 = vrot.lane.b32.xlu0 %v2192, 27
      %v2200 = vpop.permute.xlu0 %2199
      %2201 = vrot.lane.b32.xlu0 %v2193, 27
      %v2202 = vpop.permute.xlu0 %2201
      %vm2203 = vcmask 220160
      %v2204 = vsel %vm2203, %v2198, %v2200
      %v2205 = vsel %vm2203, %v2200, %v2202
      %v2209 = vadd.f32 %v2172, %v2198
      %v2210 = vadd.f32 %v2173, %v2204
      %v2211 = vadd.f32 %v2174, %v2205
      %2212 = vrot.lane.b32.xlu0 %v471, 51
      %v2213 = vpop.permute.xlu0 %2212
      %2214 = vrot.lane.b32.xlu0 %v472, 51
      %v2215 = vpop.permute.xlu0 %2214
      %vm2216 = vcmask 416768
      %v2217 = vsel %vm2216, %v2213, %v2215
      %v2221 = vmul.f32 %v360, %v2213
      %v2222 = vmul.f32 %v362, %v2217
      %v2223 = vmul.f32 %v2215, 0.0
      %2224 = vset.pattern.permute.xlu0 48
      %2225 = vperm.xlu0 %2224, %v473
      %v2226 = vpop.permute.xlu0 %2225
      %v2228 = vmul.f32 %v2221, %v2226
      %v2229 = vmul.f32 %v2222, %v2226
      %v2230 = vmul.f32 %v2223, %v2226
      %2234 = vrot.lane.b32.xlu0 %v2228, 26
      %v2235 = vpop.permute.xlu0 %2234
      %2236 = vrot.lane.b32.xlu0 %v2229, 26
      %v2237 = vpop.permute.xlu0 %2236
      %2238 = vrot.lane.b32.xlu0 %v2230, 26
      %v2239 = vpop.permute.xlu0 %2238
      %vm2240 = vcmask 211968
      %v2241 = vsel %vm2240, %v2235, %v2237
      %v2242 = vsel %vm2240, %v2237, %v2239
      %v2246 = vadd.f32 %v2209, %v2235
      %v2247 = vadd.f32 %v2210, %v2241
      %v2248 = vadd.f32 %v2211, %v2242
      %v2249 = vld [vmem:[%s2] sm:$0xf]
      %2251 = vset.pattern.permute.xlu0 0
      %2252 = vperm.xlu0 %2251, %v2249
      %v2253 = vpop.permute.xlu0 %2252
      %v2255 = vadd.f32 %v2246, %v2253
      %v2256 = vadd.f32 %v2247, %v2253
      %v2257 = vadd.f32 %v2248, %v2253
      %v2258 = vld [vmem:[%s3] sm:$0xf]
      %v2259 = vld [vmem:[%s4] sm:$0xf]
      %v2260 = vld [vmem:[%s9] sm:$0xf]
      %v2261 = vld [vmem:[%s5] sm:$0xff]
      %v2262 = vld [vmem:[%s5 + $0x8] sm:$0xff]
      %v2263 = vld [vmem:[%s7] sm:$0xf]
      %v2264 = vld [vmem:[%s6] sm:$0xff]
      %v2265 = vld [vmem:[%s6 + $0x8] sm:$0xff]
      %2267 = vset.pattern.permute.xlu0 0
      %2268 = vperm.xlu0 %2267, %v2264
      %v2269 = vpop.permute.xlu0 %2268
      %2272 = vset.pattern.permute.xlu0 0
      %2273 = vperm.xlu0 %2272, %v2265
      %v2274 = vpop.permute.xlu0 %2273
      %v2276 = vld [vmem:[%s8] sm:$0xf]
      %2278 = vset.pattern.permute.xlu0 0
      %2279 = vperm.xlu0 %2278, %v2276
      %v2280 = vpop.permute.xlu0 %2279
      %vm2282 = vcmask 1044072
      %v2283 = vsel %vm2282, %v2255, 0.0
      %v2284 = vrot.slane %v2283, 4
      %v2285 = vadd.f32 %v2283, %v2284
      %v2286 = vrot.slane %v2285, 2
      %v2287 = vadd.f32 %v2285, %v2286
      %v2288 = vrot.slane %v2287, 1
      %v2289 = vadd.f32 %v2287, %v2288
      %vm2290 = vcmask 1043456
      %v2291 = vsel %vm2290, %v2256, 0.0
      %v2292 = vrot.slane %v2291, 4
      %v2293 = vadd.f32 %v2291, %v2292
      %v2294 = vrot.slane %v2293, 2
      %v2295 = vadd.f32 %v2293, %v2294
      %v2296 = vrot.slane %v2295, 1
      %v2297 = vadd.f32 %v2295, %v2296
      %vm2298 = vcmask 625664
      %v2299 = vsel %vm2298, %v2257, 0.0
      %v2300 = vrot.slane %v2299, 4
      %v2301 = vadd.f32 %v2299, %v2300
      %v2302 = vrot.slane %v2301, 2
      %v2303 = vadd.f32 %v2301, %v2302
      %v2304 = vrot.slane %v2303, 1
      %v2305 = vadd.f32 %v2303, %v2304
      %v2306 = vrcp.pop 4.0
      %v2307 = vmul.f32 %v2289, %v2306
      %v2308 = vmul.f32 %v2297, %v2306
      %v2309 = vmul.f32 %v2305, %v2306
      %v2310 = vsub.f32 %v2255, %v2307
      %v2311 = vsub.f32 %v2256, %v2308
      %v2312 = vsub.f32 %v2257, %v2309
      %v2313 = vmul.f32 %v2310, %v2310
      %v2314 = vmul.f32 %v2311, %v2311
      %v2315 = vmul.f32 %v2312, %v2312
      %v2316 = vsel %vm2282, %v2313, 0.0
      %v2317 = vrot.slane %v2316, 4
      %v2318 = vadd.f32 %v2316, %v2317
      %v2319 = vrot.slane %v2318, 2
      %v2320 = vadd.f32 %v2318, %v2319
      %v2321 = vrot.slane %v2320, 1
      %v2322 = vadd.f32 %v2320, %v2321
      %v2323 = vsel %vm2290, %v2314, 0.0
      %v2324 = vrot.slane %v2323, 4
      %v2325 = vadd.f32 %v2323, %v2324
      %v2326 = vrot.slane %v2325, 2
      %v2327 = vadd.f32 %v2325, %v2326
      %v2328 = vrot.slane %v2327, 1
      %v2329 = vadd.f32 %v2327, %v2328
      %v2330 = vsel %vm2298, %v2315, 0.0
      %v2331 = vrot.slane %v2330, 4
      %v2332 = vadd.f32 %v2330, %v2331
      %v2333 = vrot.slane %v2332, 2
      %v2334 = vadd.f32 %v2332, %v2333
      %v2335 = vrot.slane %v2334, 1
      %v2336 = vadd.f32 %v2334, %v2335
      %v2337 = vmul.f32 %v2322, %v2306
      %v2338 = vmul.f32 %v2329, %v2306
      %v2339 = vmul.f32 %v2336, %v2306
      %v2340 = vadd.f32 %v2337, 1e-06
      %v2341 = vadd.f32 %v2338, 1e-06
      %v2342 = vadd.f32 %v2339, 1e-06
      %v2343 = vrsqrt.pop %v2340
      %v2344 = vrsqrt.pop %v2341
      %v2345 = vrsqrt.pop %v2342
      %v2346 = vmul.f32 %v2310, %v2343
      %v2347 = vmul.f32 %v2311, %v2344
      %v2348 = vmul.f32 %v2312, %v2345
      %2350 = vset.pattern.permute.xlu0 0
      %2351 = vperm.xlu0 %2350, %v2258
      %v2352 = vpop.permute.xlu0 %2351
      %v2354 = vmul.f32 %v2346, %v2352
      %v2355 = vmul.f32 %v2347, %v2352
      %v2356 = vmul.f32 %v2348, %v2352
      %2358 = vset.pattern.permute.xlu0 0
      %2359 = vperm.xlu0 %2358, %v2259
      %v2360 = vpop.permute.xlu0 %2359
      %v2362 = vadd.f32 %v2354, %v2360
      %v2363 = vadd.f32 %v2355, %v2360
      %v2364 = vadd.f32 %v2356, %v2360
      %2366 = vset.pattern.permute.xlu0 0
      %2367 = vperm.xlu0 %2366, %v2261
      %v2368 = vpop.permute.xlu0 %2367
      %2371 = vset.pattern.permute.xlu0 0
      %2372 = vperm.xlu0 %2371, %v2262
      %v2373 = vpop.permute.xlu0 %2372
      %v2375 = vlaneseq
      %v2376 = vshrl.u32 %v2375, 7
      %v2377 = vsub.s32 0, %v2376
      %v2378 = vrot.slane %v2362, %v2377
      %v2379 = vlaneseq
      %v2380 = vshrl.u32 %v2379, 7
      %v2381 = vsub.s32 0, %v2380
      %v2382 = vrot.slane %v2363, %v2381
      %v2383 = vlaneseq
      %v2384 = vshrl.u32 %v2383, 7
      %v2385 = vsub.s32 0, %v2384
      %v2386 = vrot.slane %v2364, %v2385
      %v2387 = vmul.f32 %v2368, %v2378
      %v2388 = vmul.f32 %v2368, %v2382
      %v2389 = vmul.f32 %v2368, %v2386
      %v2390 = vmul.f32 %v2373, %v2378
      %v2391 = vmul.f32 %v2373, %v2382
      %v2392 = vmul.f32 %v2373, %v2386
      %v2393 = vadd.f32 %v2269, %v2387
      %v2394 = vadd.f32 %v2269, %v2388
      %v2395 = vadd.f32 %v2269, %v2389
      %v2396 = vadd.f32 %v2274, %v2390
      %v2397 = vadd.f32 %v2274, %v2391
      %v2398 = vadd.f32 %v2274, %v2392
      %2399 = vset.pattern.permute.xlu0 1
      %2400 = vperm.xlu0 %2399, %v2261
      %v2401 = vpop.permute.xlu0 %2400
      %2403 = vset.pattern.permute.xlu0 1
      %2404 = vperm.xlu0 %2403, %v2262
      %v2405 = vpop.permute.xlu0 %2404
      %v2407 = vlaneseq
      %v2408 = vshrl.u32 %v2407, 7
      %v2409 = vsub.s32 1, %v2408
      %v2410 = vrot.slane %v2362, %v2409
      %v2411 = vlaneseq
      %v2412 = vshrl.u32 %v2411, 7
      %v2413 = vsub.s32 1, %v2412
      %v2414 = vrot.slane %v2363, %v2413
      %v2415 = vlaneseq
      %v2416 = vshrl.u32 %v2415, 7
      %v2417 = vsub.s32 1, %v2416
      %v2418 = vrot.slane %v2364, %v2417
      %v2419 = vmul.f32 %v2401, %v2410
      %v2420 = vmul.f32 %v2401, %v2414
      %v2421 = vmul.f32 %v2401, %v2418
      %v2422 = vmul.f32 %v2405, %v2410
      %v2423 = vmul.f32 %v2405, %v2414
      %v2424 = vmul.f32 %v2405, %v2418
      %v2425 = vadd.f32 %v2393, %v2419
      %v2426 = vadd.f32 %v2394, %v2420
      %v2427 = vadd.f32 %v2395, %v2421
      %v2428 = vadd.f32 %v2396, %v2422
      %v2429 = vadd.f32 %v2397, %v2423
      %v2430 = vadd.f32 %v2398, %v2424
      %2431 = vset.pattern.permute.xlu0 2
      %2432 = vperm.xlu0 %2431, %v2261
      %v2433 = vpop.permute.xlu0 %2432
      %2435 = vset.pattern.permute.xlu0 2
      %2436 = vperm.xlu0 %2435, %v2262
      %v2437 = vpop.permute.xlu0 %2436
      %v2439 = vlaneseq
      %v2440 = vshrl.u32 %v2439, 7
      %v2441 = vsub.s32 2, %v2440
      %v2442 = vrot.slane %v2362, %v2441
      %v2443 = vlaneseq
      %v2444 = vshrl.u32 %v2443, 7
      %v2445 = vsub.s32 2, %v2444
      %v2446 = vrot.slane %v2363, %v2445
      %v2447 = vlaneseq
      %v2448 = vshrl.u32 %v2447, 7
      %v2449 = vsub.s32 2, %v2448
      %v2450 = vrot.slane %v2364, %v2449
      %v2451 = vmul.f32 %v2433, %v2442
      %v2452 = vmul.f32 %v2433, %v2446
      %v2453 = vmul.f32 %v2433, %v2450
      %v2454 = vmul.f32 %v2437, %v2442
      %v2455 = vmul.f32 %v2437, %v2446
      %v2456 = vmul.f32 %v2437, %v2450
      %v2457 = vadd.f32 %v2425, %v2451
      %v2458 = vadd.f32 %v2426, %v2452
      %v2459 = vadd.f32 %v2427, %v2453
      %v2460 = vadd.f32 %v2428, %v2454
      %v2461 = vadd.f32 %v2429, %v2455
      %v2462 = vadd.f32 %v2430, %v2456
      %2463 = vset.pattern.permute.xlu0 3
      %2464 = vperm.xlu0 %2463, %v2261
      %v2465 = vpop.permute.xlu0 %2464
      %2467 = vset.pattern.permute.xlu0 3
      %2468 = vperm.xlu0 %2467, %v2262
      %v2469 = vpop.permute.xlu0 %2468
      %v2471 = vlaneseq
      %v2472 = vshrl.u32 %v2471, 7
      %v2473 = vsub.s32 3, %v2472
      %v2474 = vrot.slane %v2362, %v2473
      %v2475 = vlaneseq
      %v2476 = vshrl.u32 %v2475, 7
      %v2477 = vsub.s32 3, %v2476
      %v2478 = vrot.slane %v2363, %v2477
      %v2479 = vlaneseq
      %v2480 = vshrl.u32 %v2479, 7
      %v2481 = vsub.s32 3, %v2480
      %v2482 = vrot.slane %v2364, %v2481
      %v2483 = vmul.f32 %v2465, %v2474
      %v2484 = vmul.f32 %v2465, %v2478
      %v2485 = vmul.f32 %v2465, %v2482
      %v2486 = vmul.f32 %v2469, %v2474
      %v2487 = vmul.f32 %v2469, %v2478
      %v2488 = vmul.f32 %v2469, %v2482
      %v2489 = vadd.f32 %v2457, %v2483
      %v2490 = vadd.f32 %v2458, %v2484
      %v2491 = vadd.f32 %v2459, %v2485
      %v2492 = vadd.f32 %v2460, %v2486
      %v2493 = vadd.f32 %v2461, %v2487
      %v2494 = vadd.f32 %v2462, %v2488
      %v2495 = vmul.f32 %v2489, 0.5
      %v2496 = vmul.f32 %v2490, 0.5
      %v2497 = vmul.f32 %v2491, 0.5
      %v2498 = vmul.f32 %v2492, 0.5
      %v2499 = vmul.f32 %v2493, 0.5
      %v2500 = vmul.f32 %v2494, 0.5
      %v2501 = vmul.f32 %v2489, 0.70710677
      %v2502 = vmul.f32 %v2490, 0.70710677
      %v2503 = vmul.f32 %v2491, 0.70710677
      %v2504 = vmul.f32 %v2492, 0.70710677
      %v2505 = vmul.f32 %v2493, 0.70710677
      %v2506 = vmul.f32 %v2494, 0.70710677
      %v2507 = verf.f32.pop %v2501
      %v2508 = verf.f32.pop %v2502
      %v2509 = verf.f32.pop %v2503
      %v2510 = verf.f32.pop %v2504
      %v2511 = verf.f32.pop %v2505
      %v2512 = verf.f32.pop %v2506
      %v2513 = vadd.f32 %v2507, 1.0
      %v2514 = vadd.f32 %v2508, 1.0
      %v2515 = vadd.f32 %v2509, 1.0
      %v2516 = vadd.f32 %v2510, 1.0
      %v2517 = vadd.f32 %v2511, 1.0
      %v2518 = vadd.f32 %v2512, 1.0
      %v2519 = vmul.f32 %v2495, %v2513
      %v2520 = vmul.f32 %v2496, %v2514
      %v2521 = vmul.f32 %v2497, %v2515
      %v2522 = vmul.f32 %v2498, %v2516
      %v2523 = vmul.f32 %v2499, %v2517
      %v2524 = vmul.f32 %v2500, %v2518
      %2526 = vset.pattern.permute.xlu0 0
      %2527 = vperm.xlu0 %2526, %v2263
      %v2528 = vpop.permute.xlu0 %2527
      %v2530 = vlaneseq
      %v2531 = vshrl.u32 %v2530, 7
      %v2532 = vsub.s32 0, %v2531
      %v2533 = vrot.slane %v2519, %v2532
      %v2534 = vlaneseq
      %v2535 = vshrl.u32 %v2534, 7
      %v2536 = vsub.s32 0, %v2535
      %v2537 = vrot.slane %v2520, %v2536
      %v2538 = vlaneseq
      %v2539 = vshrl.u32 %v2538, 7
      %v2540 = vsub.s32 0, %v2539
      %v2541 = vrot.slane %v2521, %v2540
      %v2542 = vmul.f32 %v2528, %v2533
      %v2543 = vmul.f32 %v2528, %v2537
      %v2544 = vmul.f32 %v2528, %v2541
      %v2545 = vadd.f32 %v2280, %v2542
      %v2546 = vadd.f32 %v2280, %v2543
      %v2547 = vadd.f32 %v2280, %v2544
      %2548 = vset.pattern.permute.xlu0 1
      %2549 = vperm.xlu0 %2548, %v2263
      %v2550 = vpop.permute.xlu0 %2549
      %v2552 = vlaneseq
      %v2553 = vshrl.u32 %v2552, 7
      %v2554 = vsub.s32 1, %v2553
      %v2555 = vrot.slane %v2519, %v2554
      %v2556 = vlaneseq
      %v2557 = vshrl.u32 %v2556, 7
      %v2558 = vsub.s32 1, %v2557
      %v2559 = vrot.slane %v2520, %v2558
      %v2560 = vlaneseq
      %v2561 = vshrl.u32 %v2560, 7
      %v2562 = vsub.s32 1, %v2561
      %v2563 = vrot.slane %v2521, %v2562
      %v2564 = vmul.f32 %v2550, %v2555
      %v2565 = vmul.f32 %v2550, %v2559
      %v2566 = vmul.f32 %v2550, %v2563
      %v2567 = vadd.f32 %v2545, %v2564
      %v2568 = vadd.f32 %v2546, %v2565
      %v2569 = vadd.f32 %v2547, %v2566
      %2570 = vset.pattern.permute.xlu0 2
      %2571 = vperm.xlu0 %2570, %v2263
      %v2572 = vpop.permute.xlu0 %2571
      %v2574 = vlaneseq
      %v2575 = vshrl.u32 %v2574, 7
      %v2576 = vsub.s32 2, %v2575
      %v2577 = vrot.slane %v2519, %v2576
      %v2578 = vlaneseq
      %v2579 = vshrl.u32 %v2578, 7
      %v2580 = vsub.s32 2, %v2579
      %v2581 = vrot.slane %v2520, %v2580
      %v2582 = vlaneseq
      %v2583 = vshrl.u32 %v2582, 7
      %v2584 = vsub.s32 2, %v2583
      %v2585 = vrot.slane %v2521, %v2584
      %v2586 = vmul.f32 %v2572, %v2577
      %v2587 = vmul.f32 %v2572, %v2581
      %v2588 = vmul.f32 %v2572, %v2585
      %v2589 = vadd.f32 %v2567, %v2586
      %v2590 = vadd.f32 %v2568, %v2587
      %v2591 = vadd.f32 %v2569, %v2588
      %2592 = vset.pattern.permute.xlu0 3
      %2593 = vperm.xlu0 %2592, %v2263
      %v2594 = vpop.permute.xlu0 %2593
      %v2596 = vlaneseq
      %v2597 = vshrl.u32 %v2596, 7
      %v2598 = vsub.s32 3, %v2597
      %v2599 = vrot.slane %v2519, %v2598
      %v2600 = vlaneseq
      %v2601 = vshrl.u32 %v2600, 7
      %v2602 = vsub.s32 3, %v2601
      %v2603 = vrot.slane %v2520, %v2602
      %v2604 = vlaneseq
      %v2605 = vshrl.u32 %v2604, 7
      %v2606 = vsub.s32 3, %v2605
      %v2607 = vrot.slane %v2521, %v2606
      %v2608 = vmul.f32 %v2594, %v2599
      %v2609 = vmul.f32 %v2594, %v2603
      %v2610 = vmul.f32 %v2594, %v2607
      %v2611 = vadd.f32 %v2589, %v2608
      %v2612 = vadd.f32 %v2590, %v2609
      %v2613 = vadd.f32 %v2591, %v2610
      %2614 = vset.pattern.permute.xlu0 4
      %2615 = vperm.xlu0 %2614, %v2263
      %v2616 = vpop.permute.xlu0 %2615
      %v2618 = vlaneseq
      %v2619 = vshrl.u32 %v2618, 7
      %v2620 = vsub.s32 4, %v2619
      %v2621 = vrot.slane %v2519, %v2620
      %v2622 = vlaneseq
      %v2623 = vshrl.u32 %v2622, 7
      %v2624 = vsub.s32 4, %v2623
      %v2625 = vrot.slane %v2520, %v2624
      %v2626 = vlaneseq
      %v2627 = vshrl.u32 %v2626, 7
      %v2628 = vsub.s32 4, %v2627
      %v2629 = vrot.slane %v2521, %v2628
      %v2630 = vmul.f32 %v2616, %v2621
      %v2631 = vmul.f32 %v2616, %v2625
      %v2632 = vmul.f32 %v2616, %v2629
      %v2633 = vadd.f32 %v2611, %v2630
      %v2634 = vadd.f32 %v2612, %v2631
      %v2635 = vadd.f32 %v2613, %v2632
      %2636 = vset.pattern.permute.xlu0 5
      %2637 = vperm.xlu0 %2636, %v2263
      %v2638 = vpop.permute.xlu0 %2637
      %v2640 = vlaneseq
      %v2641 = vshrl.u32 %v2640, 7
      %v2642 = vsub.s32 5, %v2641
      %v2643 = vrot.slane %v2519, %v2642
      %v2644 = vlaneseq
      %v2645 = vshrl.u32 %v2644, 7
      %v2646 = vsub.s32 5, %v2645
      %v2647 = vrot.slane %v2520, %v2646
      %v2648 = vlaneseq
      %v2649 = vshrl.u32 %v2648, 7
      %v2650 = vsub.s32 5, %v2649
      %v2651 = vrot.slane %v2521, %v2650
      %v2652 = vmul.f32 %v2638, %v2643
      %v2653 = vmul.f32 %v2638, %v2647
      %v2654 = vmul.f32 %v2638, %v2651
      %v2655 = vadd.f32 %v2633, %v2652
      %v2656 = vadd.f32 %v2634, %v2653
      %v2657 = vadd.f32 %v2635, %v2654
      %2658 = vset.pattern.permute.xlu0 6
      %2659 = vperm.xlu0 %2658, %v2263
      %v2660 = vpop.permute.xlu0 %2659
      %v2662 = vlaneseq
      %v2663 = vshrl.u32 %v2662, 7
      %v2664 = vsub.s32 6, %v2663
      %v2665 = vrot.slane %v2519, %v2664
      %v2666 = vlaneseq
      %v2667 = vshrl.u32 %v2666, 7
      %v2668 = vsub.s32 6, %v2667
      %v2669 = vrot.slane %v2520, %v2668
      %v2670 = vlaneseq
      %v2671 = vshrl.u32 %v2670, 7
      %v2672 = vsub.s32 6, %v2671
      %v2673 = vrot.slane %v2521, %v2672
      %v2674 = vmul.f32 %v2660, %v2665
      %v2675 = vmul.f32 %v2660, %v2669
      %v2676 = vmul.f32 %v2660, %v2673
      %v2677 = vadd.f32 %v2655, %v2674
      %v2678 = vadd.f32 %v2656, %v2675
      %v2679 = vadd.f32 %v2657, %v2676
      %2680 = vset.pattern.permute.xlu0 7
      %2681 = vperm.xlu0 %2680, %v2263
      %v2682 = vpop.permute.xlu0 %2681
      %v2684 = vlaneseq
      %v2685 = vshrl.u32 %v2684, 7
      %v2686 = vsub.s32 7, %v2685
      %v2687 = vrot.slane %v2519, %v2686
      %v2688 = vlaneseq
      %v2689 = vshrl.u32 %v2688, 7
      %v2690 = vsub.s32 7, %v2689
      %v2691 = vrot.slane %v2520, %v2690
      %v2692 = vlaneseq
      %v2693 = vshrl.u32 %v2692, 7
      %v2694 = vsub.s32 7, %v2693
      %v2695 = vrot.slane %v2521, %v2694
      %v2696 = vmul.f32 %v2682, %v2687
      %v2697 = vmul.f32 %v2682, %v2691
      %v2698 = vmul.f32 %v2682, %v2695
      %v2699 = vadd.f32 %v2677, %v2696
      %v2700 = vadd.f32 %v2678, %v2697
      %v2701 = vadd.f32 %v2679, %v2698
      %2702 = vset.pattern.permute.xlu0 8
      %2703 = vperm.xlu0 %2702, %v2263
      %v2704 = vpop.permute.xlu0 %2703
      %v2706 = vlaneseq
      %v2707 = vshrl.u32 %v2706, 7
      %v2708 = vsub.s32 0, %v2707
      %v2709 = vrot.slane %v2522, %v2708
      %v2710 = vlaneseq
      %v2711 = vshrl.u32 %v2710, 7
      %v2712 = vsub.s32 0, %v2711
      %v2713 = vrot.slane %v2523, %v2712
      %v2714 = vlaneseq
      %v2715 = vshrl.u32 %v2714, 7
      %v2716 = vsub.s32 0, %v2715
      %v2717 = vrot.slane %v2524, %v2716
      %v2718 = vmul.f32 %v2704, %v2709
      %v2719 = vmul.f32 %v2704, %v2713
      %v2720 = vmul.f32 %v2704, %v2717
      %v2721 = vadd.f32 %v2699, %v2718
      %v2722 = vadd.f32 %v2700, %v2719
      %v2723 = vadd.f32 %v2701, %v2720
      %2724 = vset.pattern.permute.xlu0 9
      %2725 = vperm.xlu0 %2724, %v2263
      %v2726 = vpop.permute.xlu0 %2725
      %v2728 = vlaneseq
      %v2729 = vshrl.u32 %v2728, 7
      %v2730 = vsub.s32 1, %v2729
      %v2731 = vrot.slane %v2522, %v2730
      %v2732 = vlaneseq
      %v2733 = vshrl.u32 %v2732, 7
      %v2734 = vsub.s32 1, %v2733
      %v2735 = vrot.slane %v2523, %v2734
      %v2736 = vlaneseq
      %v2737 = vshrl.u32 %v2736, 7
      %v2738 = vsub.s32 1, %v2737
      %v2739 = vrot.slane %v2524, %v2738
      %v2740 = vmul.f32 %v2726, %v2731
      %v2741 = vmul.f32 %v2726, %v2735
      %v2742 = vmul.f32 %v2726, %v2739
      %v2743 = vadd.f32 %v2721, %v2740
      %v2744 = vadd.f32 %v2722, %v2741
      %v2745 = vadd.f32 %v2723, %v2742
      %2746 = vset.pattern.permute.xlu0 10
      %2747 = vperm.xlu0 %2746, %v2263
      %v2748 = vpop.permute.xlu0 %2747
      %v2750 = vlaneseq
      %v2751 = vshrl.u32 %v2750, 7
      %v2752 = vsub.s32 2, %v2751
      %v2753 = vrot.slane %v2522, %v2752
      %v2754 = vlaneseq
      %v2755 = vshrl.u32 %v2754, 7
      %v2756 = vsub.s32 2, %v2755
      %v2757 = vrot.slane %v2523, %v2756
      %v2758 = vlaneseq
      %v2759 = vshrl.u32 %v2758, 7
      %v2760 = vsub.s32 2, %v2759
      %v2761 = vrot.slane %v2524, %v2760
      %v2762 = vmul.f32 %v2748, %v2753
      %v2763 = vmul.f32 %v2748, %v2757
      %v2764 = vmul.f32 %v2748, %v2761
      %v2765 = vadd.f32 %v2743, %v2762
      %v2766 = vadd.f32 %v2744, %v2763
      %v2767 = vadd.f32 %v2745, %v2764
      %2768 = vset.pattern.permute.xlu0 11
      %2769 = vperm.xlu0 %2768, %v2263
      %v2770 = vpop.permute.xlu0 %2769
      %v2772 = vlaneseq
      %v2773 = vshrl.u32 %v2772, 7
      %v2774 = vsub.s32 3, %v2773
      %v2775 = vrot.slane %v2522, %v2774
      %v2776 = vlaneseq
      %v2777 = vshrl.u32 %v2776, 7
      %v2778 = vsub.s32 3, %v2777
      %v2779 = vrot.slane %v2523, %v2778
      %v2780 = vlaneseq
      %v2781 = vshrl.u32 %v2780, 7
      %v2782 = vsub.s32 3, %v2781
      %v2783 = vrot.slane %v2524, %v2782
      %v2784 = vmul.f32 %v2770, %v2775
      %v2785 = vmul.f32 %v2770, %v2779
      %v2786 = vmul.f32 %v2770, %v2783
      %v2787 = vadd.f32 %v2765, %v2784
      %v2788 = vadd.f32 %v2766, %v2785
      %v2789 = vadd.f32 %v2767, %v2786
      %2790 = vset.pattern.permute.xlu0 12
      %2791 = vperm.xlu0 %2790, %v2263
      %v2792 = vpop.permute.xlu0 %2791
      %v2794 = vlaneseq
      %v2795 = vshrl.u32 %v2794, 7
      %v2796 = vsub.s32 4, %v2795
      %v2797 = vrot.slane %v2522, %v2796
      %v2798 = vlaneseq
      %v2799 = vshrl.u32 %v2798, 7
      %v2800 = vsub.s32 4, %v2799
      %v2801 = vrot.slane %v2523, %v2800
      %v2802 = vlaneseq
      %v2803 = vshrl.u32 %v2802, 7
      %v2804 = vsub.s32 4, %v2803
      %v2805 = vrot.slane %v2524, %v2804
      %v2806 = vmul.f32 %v2792, %v2797
      %v2807 = vmul.f32 %v2792, %v2801
      %v2808 = vmul.f32 %v2792, %v2805
      %v2809 = vadd.f32 %v2787, %v2806
      %v2810 = vadd.f32 %v2788, %v2807
      %v2811 = vadd.f32 %v2789, %v2808
      %2812 = vset.pattern.permute.xlu0 13
      %2813 = vperm.xlu0 %2812, %v2263
      %v2814 = vpop.permute.xlu0 %2813
      %v2816 = vlaneseq
      %v2817 = vshrl.u32 %v2816, 7
      %v2818 = vsub.s32 5, %v2817
      %v2819 = vrot.slane %v2522, %v2818
      %v2820 = vlaneseq
      %v2821 = vshrl.u32 %v2820, 7
      %v2822 = vsub.s32 5, %v2821
      %v2823 = vrot.slane %v2523, %v2822
      %v2824 = vlaneseq
      %v2825 = vshrl.u32 %v2824, 7
      %v2826 = vsub.s32 5, %v2825
      %v2827 = vrot.slane %v2524, %v2826
      %v2828 = vmul.f32 %v2814, %v2819
      %v2829 = vmul.f32 %v2814, %v2823
      %v2830 = vmul.f32 %v2814, %v2827
      %v2831 = vadd.f32 %v2809, %v2828
      %v2832 = vadd.f32 %v2810, %v2829
      %v2833 = vadd.f32 %v2811, %v2830
      %2834 = vset.pattern.permute.xlu0 14
      %2835 = vperm.xlu0 %2834, %v2263
      %v2836 = vpop.permute.xlu0 %2835
      %v2838 = vlaneseq
      %v2839 = vshrl.u32 %v2838, 7
      %v2840 = vsub.s32 6, %v2839
      %v2841 = vrot.slane %v2522, %v2840
      %v2842 = vlaneseq
      %v2843 = vshrl.u32 %v2842, 7
      %v2844 = vsub.s32 6, %v2843
      %v2845 = vrot.slane %v2523, %v2844
      %v2846 = vlaneseq
      %v2847 = vshrl.u32 %v2846, 7
      %v2848 = vsub.s32 6, %v2847
      %v2849 = vrot.slane %v2524, %v2848
      %v2850 = vmul.f32 %v2836, %v2841
      %v2851 = vmul.f32 %v2836, %v2845
      %v2852 = vmul.f32 %v2836, %v2849
      %v2853 = vadd.f32 %v2831, %v2850
      %v2854 = vadd.f32 %v2832, %v2851
      %v2855 = vadd.f32 %v2833, %v2852
      %2856 = vset.pattern.permute.xlu0 15
      %2857 = vperm.xlu0 %2856, %v2263
      %v2858 = vpop.permute.xlu0 %2857
      %v2860 = vlaneseq
      %v2861 = vshrl.u32 %v2860, 7
      %v2862 = vsub.s32 7, %v2861
      %v2863 = vrot.slane %v2522, %v2862
      %v2864 = vlaneseq
      %v2865 = vshrl.u32 %v2864, 7
      %v2866 = vsub.s32 7, %v2865
      %v2867 = vrot.slane %v2523, %v2866
      %v2868 = vlaneseq
      %v2869 = vshrl.u32 %v2868, 7
      %v2870 = vsub.s32 7, %v2869
      %v2871 = vrot.slane %v2524, %v2870
      %v2872 = vmul.f32 %v2858, %v2863
      %v2873 = vmul.f32 %v2858, %v2867
      %v2874 = vmul.f32 %v2858, %v2871
      %v2875 = vadd.f32 %v2853, %v2872
      %v2876 = vadd.f32 %v2854, %v2873
      %v2877 = vadd.f32 %v2855, %v2874
      %2879 = vset.pattern.permute.xlu0 0
      %2880 = vperm.xlu0 %2879, %v2260
      %v2881 = vpop.permute.xlu0 %2880
      %v2883 = vmul.f32 %v2881, %v2875
      %v2884 = vmul.f32 %v2881, %v2876
      %v2885 = vmul.f32 %v2881, %v2877
      %v2889 = vcombine.low %v2883, %v2884
      %2890 = vrot.lane.b32.xlu0 %v2889, 51
      %v2891 = vpop.permute.xlu0 %2890
      %2892 = vrot.lane.b32.xlu0 %v2885, 51
      %v2893 = vpop.permute.xlu0 %2892
      %v2894 = vrot.slane %v2891, 4
      %v2895 = vrot.slane %v2893, 4
      %v2896 = vsel %vm2290, %v2894, %v2895
      %v2897 = vsel %vm2216, %v2891, %v2896
      %v2899 = vadd.f32 %v360, %v2897
      %2900 = vst [vmem:[%s359] sm:$0xff] %v2899
      %p2901 = scmp.lt.s32.totalorder %s21, 1
      %s2902 = scalar_select %p2901, %s21, 1
      %s2903 = smul.addr %s2902, 2
      %s2904 = smul.addr %s2903, 4
      %s2905 = scalar_lea.vmem %s10, %s2904
      // Predicated region
      $region61: #{convnext_block.1} parent=59 // pred_check
        %p2906 = pneg %p254
      $region62: #{convnext_block.1} parent=59 // pred_check_branch
        %2908 = sbr.rel (%p2906) target = $region64
      $region63: #{convnext_block.1} parent=59 // pred_region
        _
      $region64: #{convnext_block.1} parent=59 // pred_fallthru
        _
    $region60: #{convnext_block.1} parent=5 // pred_fallthru
      _
    %p2909 = scmp.le.s32.totalorder 2, %s16
    // Predicated region
    $region65: #{convnext_block.1} parent=5 // pred_check
      %p2910 = pneg %p2909
    $region66: #{convnext_block.1} parent=5 // pred_check_branch
      %2912 = sbr.rel (%p2910) target = $region68
    $region67: #{convnext_block.1} parent=5 // pred_region
      %s2913 = ssub.s32 %s16, 2
      // Predicated region
      $region69: #{convnext_block.1} parent=67 // pred_check
        %p2914 = pneg %p260
      $region70: #{convnext_block.1} parent=67 // pred_check_branch
        %2916 = sbr.rel (%p2914) target = $region72
      $region71: #{convnext_block.1} parent=67 // pred_region
        %p2917 = scmp.lt.s32.totalorder %s22, 1
        %s2918 = scalar_select %p2917, %s22, 1
        %s2919 = smul.addr %s2918, 2
        %s2920 = smul.addr %s2919, 4
        %s2921 = scalar_lea.vmem %s10, %s2920
      $region72: #{convnext_block.1} parent=67 // pred_fallthru
        _
    $region68: #{convnext_block.1} parent=5 // pred_fallthru
      _
  $region6: #{convnext_block.1} parent=0 // loop_footer
    %s20 = sadd.s32 1, %s16
  $region7: #{convnext_block.1} parent=0 // loop_footer_branch
    %15 = sbr.rel target = $region3
  $region8: #{convnext_block.1} parent=0 // loop_exit
    _

</llo_original>
